<compile_context>
chip_gen: v7x
topology: tpu7x:2x2x1
jax: 0.10.0
libtpu: 0.0.40
codegen_flags: <defaults>
</compile_context>

<pallas_src>
import functools

import jax
import jax.numpy as jnp
from jax.experimental import pallas as pl
from jax.experimental.pallas import tpu as pltpu


def clstm_kernel(x_ref, h0_ref, c0_ref, wh_ref, gsum_ref, eye_ref,
                 gamma_ref, beta_ref,
                 out_ref, clast_ref,
                 h_ref, c_ref, acc_ref,
                 *, H, W, K, F):
    s = pl.program_id(1)                  # sequence step (grid = (B, S))
    HW = H * W
    C = 4 * F
    p = (K - 1) // 2
    NT = (((1,), (1,)), ((), ()))         # dot_general "A @ B.T" dims (MXU transpose)

    @pl.when(s == 0)
    def _init():
        h_ref[...] = h0_ref[0]
        c_ref[...] = c0_ref[0]

    # ---- 1) gate pre-activations: precomputed x-path + recurrent h-path conv.
    acc_ref[...] = x_ref[0, 0]                              # (H, W, 4F) f32
    h_bf = h_ref[...].astype(jnp.bfloat16)                  # bf16 MXU feed
    taps = jnp.dot(h_bf, wh_ref[...],
                   preferred_element_type=jnp.float32)      # (HW, K*K*4F)
    for dy in range(K):
        oy = dy - p
        y0, y1 = max(0, -oy), H - max(0, oy)
        for dx in range(K):
            ox = dx - p
            x0, x1 = max(0, -ox), W - max(0, ox)
            t = dy * K + dx
            ct = taps[:, t * C:(t + 1) * C].reshape(H, W, C)   # lane-tile-aligned slice
            acc_ref[y0:y1, x0:x1, :] += ct[y0 + oy:y1 + oy, x0 + ox:x1 + ox, :]

    # ---- 2) GroupNorm over (H*W, 32-channel groups): maskless, group sums via a
    #         tiny block-diagonal matmul that also broadcasts back to channels.
    gates = acc_ref[...].reshape(HW, C)
    inv_n = 1.0 / float(HW * 32)
    g3 = gates.reshape(HW // 8, 8, C)
    s1 = jnp.sum(g3, axis=0)                                              # (8, C)
    mu = jnp.sum(jnp.dot(s1, gsum_ref[...], preferred_element_type=jnp.float32),
                 axis=0, keepdims=True) * inv_n                           # (1, C)
    d = gates - mu
    d3 = (d * d).reshape(HW // 8, 8, C)
    s2 = jnp.sum(d3, axis=0)                                              # (8, C)
    var = jnp.sum(jnp.dot(s2, gsum_ref[...], preferred_element_type=jnp.float32),
                  axis=0, keepdims=True) * inv_n                          # (1, C)
    yn = d * jax.lax.rsqrt(var + 1e-5) * gamma_ref[...] + beta_ref[...]

    # ---- 3) LSTM gating (f32 VPU/EUP math; safe on v5e too).
    ig = jax.nn.sigmoid(yn[:, 0 * F:1 * F])
    fg = jax.nn.sigmoid(yn[:, 1 * F:2 * F])
    gg = jnp.tanh(yn[:, 2 * F:3 * F])
    og = jax.nn.sigmoid(yn[:, 3 * F:4 * F])
    c_new = fg * c_ref[...] + ig * gg
    h_new = og * jnp.tanh(c_new)
    c_ref[...] = c_new
    h_ref[...] = h_new

    # ---- 4) lane-dense (F, H*W) stores (already NCHW); transpose done on MXU.
    out_ref[0, 0] = jax.lax.dot_general(
        eye_ref[...], h_new, NT, preferred_element_type=jnp.float32
    ).astype(out_ref.dtype)

    @pl.when(s == pl.num_programs(1) - 1)
    def _final():
        clast_ref[0] = jax.lax.dot_general(
            eye_ref[...], c_new, NT, preferred_element_type=jnp.float32
        ).astype(clast_ref.dtype)


def clstm_forward(inputs, params, *, shape, input_channels, filter_size,
                  num_features, seq_len=None, hidden_state=None):
    """Mirrors CLSTM_cell.forward.

    inputs       : (S, B, Cin, H, W) NCHW, or None (zeros; needs hidden_state+seq_len)
    hidden_state : (h0, c0), each (B, F, H, W), or None -> zeros
    returns      : (outputs (S, B, F, H, W), (h_last, c_last))
    """
    H, W = shape
    K = filter_size
    p = (K - 1) // 2
    F = num_features
    C = 4 * F
    Cin = input_channels
    assert C % 32 == 0, "GroupNorm group width is 32 in the original module"
    assert (H * W) % 8 == 0

    if inputs is None:
        assert hidden_state is not None and seq_len is not None
        B = hidden_state[0].shape[0]
        S = seq_len
        inputs = jnp.zeros((S, B, Cin, H, W), jnp.float32)
    else:
        S = seq_len if seq_len is not None else inputs.shape[0]
        inputs = inputs[:S]
        B = inputs.shape[1]
    if hidden_state is None:
        h0 = jnp.zeros((B, F, H, W), jnp.float32)
        c0 = jnp.zeros((B, F, H, W), jnp.float32)
    else:
        h0, c0 = hidden_state

    w = params["conv_w"].astype(jnp.float32)     # (4F, Cin+F, K, K)  OIHW
    bias = params["conv_b"].astype(jnp.float32)  # (4F,)

    # ---- x path hoisted out of the recurrence: one big conv over all S steps.
    wx_hwio = jnp.transpose(w[:, :Cin], (2, 3, 1, 0))               # (K, K, Cin, 4F)
    x_nhwc = jnp.transpose(inputs, (0, 1, 3, 4, 2)).astype(jnp.float32)
    x_nhwc = x_nhwc.reshape(S * B, H, W, Cin)
    x_gates = jax.lax.conv_general_dilated(
        x_nhwc, wx_hwio, (1, 1), [(p, p), (p, p)],
        dimension_numbers=("NHWC", "HWIO", "NHWC"),
        precision=jax.lax.Precision.HIGHEST)
    x_gates = (x_gates + bias.reshape(1, 1, 1, C)).reshape(S, B, H, W, C)

    # ---- h-path weight: all K*K taps and all 4F outputs fused into one matmul
    #      RHS (F, K*K*4F), fed to the MXU as bf16 (f32 accumulation in-kernel).
    wh = jnp.transpose(w[:, Cin:], (2, 3, 1, 0))                    # (K, K, F, 4F)
    wh = jnp.transpose(wh, (2, 0, 1, 3)).reshape(F, K * K * C).astype(jnp.bfloat16)

    # ---- small constants: block-diagonal group-sum matrix, identity, GN affine.
    ch = jnp.arange(C, dtype=jnp.int32)
    gsum = (ch[:, None] // 32 == ch[None, :] // 32).astype(jnp.float32)   # (4F, 4F)
    eye_f = jnp.eye(F, dtype=jnp.float32)
    gamma = params["gn_w"].reshape(1, C).astype(jnp.float32)
    beta = params["gn_b"].reshape(1, C).astype(jnp.float32)

    # ---- initial state in (B, H*W, F) layout.
    h0_k = jnp.transpose(h0.reshape(B, F, H * W), (0, 2, 1)).astype(jnp.float32)
    c0_k = jnp.transpose(c0.reshape(B, F, H * W), (0, 2, 1)).astype(jnp.float32)

    HW = H * W
    kernel = functools.partial(clstm_kernel, H=H, W=W, K=K, F=F)

    grid_spec = pltpu.PrefetchScalarGridSpec(
        num_scalar_prefetch=0,
        grid=(B, S),                       # batch parallel (v7x megacore), seq serial
        in_specs=[
            pl.BlockSpec((1, 1, H, W, C), lambda b, s: (s, b, 0, 0, 0)),  # x-gates
            pl.BlockSpec((1, HW, F), lambda b, s: (b, 0, 0)),             # h0
            pl.BlockSpec((1, HW, F), lambda b, s: (b, 0, 0)),             # c0
            pl.BlockSpec((F, K * K * C), lambda b, s: (0, 0)),            # fused Wh
            pl.BlockSpec((C, C), lambda b, s: (0, 0)),                    # group-sum
            pl.BlockSpec((F, F), lambda b, s: (0, 0)),                    # eye(F)
            pl.BlockSpec((1, C), lambda b, s: (0, 0)),                    # gamma
            pl.BlockSpec((1, C), lambda b, s: (0, 0)),                    # beta
        ],
        out_specs=(
            pl.BlockSpec((1, 1, F, HW), lambda b, s: (s, b, 0, 0)),       # all-step hy
            pl.BlockSpec((1, F, HW), lambda b, s: (b, 0, 0)),             # final cy
        ),
        scratch_shapes=[
            pltpu.VMEM((HW, F), jnp.float32),     # carried hidden state
            pltpu.VMEM((HW, F), jnp.float32),     # carried cell state
            pltpu.VMEM((H, W, C), jnp.float32),   # gate pre-activation accumulator
        ],
    )

    out_all, c_last = pl.pallas_call(
        kernel,
        out_shape=(jax.ShapeDtypeStruct((S, B, F, HW), jnp.float32),
                   jax.ShapeDtypeStruct((B, F, HW), jnp.float32)),
        grid_spec=grid_spec,
        compiler_params=pltpu.CompilerParams(
            dimension_semantics=("parallel", "arbitrary"),
            vmem_limit_bytes=32 * 1024 * 1024),
    )(x_gates, h0_k, c0_k, wh, gsum, eye_f, gamma, beta)

    outputs = out_all.reshape(S, B, F, H, W)      # kernel stores are already NCHW
    h_last = outputs[-1]
    c_last = c_last.reshape(B, F, H, W)
    return outputs, (h_last, c_last)


def clstm_reference(inputs, params, *, shape, input_channels, filter_size,
                    num_features, seq_len):
    """Pure-JAX NCHW reference matching the PyTorch forward (f32)."""
    H, W = shape
    F = num_features
    p = (filter_size - 1) // 2
    B = inputs.shape[1]
    groups = (4 * F) // 32

    def conv(x, w, b):
        y = jax.lax.conv_general_dilated(x, w, (1, 1), [(p, p), (p, p)],
                                         dimension_numbers=("NCHW", "OIHW", "NCHW"),
                                         precision=jax.lax.Precision.HIGHEST)
        return y + b.reshape(1, -1, 1, 1)

    def gn(x, gamma, beta, g, eps=1e-5):
        Bn, Cc, Hh, Ww = x.shape
        xg = x.reshape(Bn, g, Cc // g, Hh, Ww)
        mu = xg.mean(axis=(2, 3, 4), keepdims=True)
        var = ((xg - mu) ** 2).mean(axis=(2, 3, 4), keepdims=True)
        xn = ((xg - mu) / jnp.sqrt(var + eps)).reshape(Bn, Cc, Hh, Ww)
        return xn * gamma.reshape(1, -1, 1, 1) + beta.reshape(1, -1, 1, 1)

    h = jnp.zeros((B, F, H, W), jnp.float32)
    c = jnp.zeros((B, F, H, W), jnp.float32)
    outs = []
    for t in range(seq_len):
        x = inputs[t]
        comb = jnp.concatenate([x, h], axis=1)
        gates = gn(conv(comb, params["conv_w"], params["conv_b"]),
                   params["gn_w"], params["gn_b"], groups)
        i = jax.nn.sigmoid(gates[:, :F])
        f = jax.nn.sigmoid(gates[:, F:2 * F])
        g = jnp.tanh(gates[:, 2 * F:3 * F])
        o = jax.nn.sigmoid(gates[:, 3 * F:])
        c = f * c + i * g
        h = o * jnp.tanh(c)
        outs.append(h)
    return jnp.stack(outs), (h, c)


if __name__ == "__main__":
    key = jax.random.PRNGKey(0)
    shape = (16, 16)
    input_channels = 4
    filter_size = 3
    num_features = 32
    S, B = 8, 2
    H, W = shape
    Cin_total = input_channels + num_features
    C = 4 * num_features

    ks = jax.random.split(key, 5)
    params = {
        "conv_w": 0.1 * jax.random.normal(ks[0], (C, Cin_total, filter_size, filter_size), jnp.float32),
        "conv_b": 0.1 * jax.random.normal(ks[1], (C,), jnp.float32),
        "gn_w": 1.0 + 0.1 * jax.random.normal(ks[2], (C,), jnp.float32),
        "gn_b": 0.1 * jax.random.normal(ks[3], (C,), jnp.float32),
    }
    inputs = jax.random.normal(ks[4], (S, B, input_channels, H, W), jnp.float32)

    outputs, (h_last, c_last) = clstm_forward(
        inputs, params, shape=shape, input_channels=input_channels,
        filter_size=filter_size, num_features=num_features, seq_len=S)
    jax.block_until_ready((outputs, h_last, c_last))
    assert outputs.shape == (S, B, num_features, H, W)
    assert h_last.shape == (B, num_features, H, W)
    assert c_last.shape == (B, num_features, H, W)

    ref_out, (ref_h, ref_c) = clstm_reference(
        inputs, params, shape=shape, input_channels=input_channels,
        filter_size=filter_size, num_features=num_features, seq_len=S)

    # Tolerance reflects the bf16 MXU feed on the recurrent h-path conv
    # (per the performance review); all other math is f32.
    assert float(jnp.max(jnp.abs(outputs - ref_out))) < 5e-2
    assert float(jnp.max(jnp.abs(h_last - ref_h))) < 5e-2
    assert float(jnp.max(jnp.abs(c_last - ref_c))) < 5e-2

    print("KERNEL_OK")
</pallas_src>

<mosaic_0001>
module attributes {stable_mosaic.version = 11 : i64} {
  func.func @clstm_kernel(%arg0: i32, %arg1: i32, %arg2: memref<1x1x16x16x128xf32, #tpu.memory_space<vmem>>, %arg3: memref<1x256x32xf32, #tpu.memory_space<vmem>>, %arg4: memref<1x256x32xf32, #tpu.memory_space<vmem>>, %arg5: memref<32x1152xbf16, #tpu.memory_space<vmem>>, %arg6: memref<128x128xf32, #tpu.memory_space<vmem>>, %arg7: memref<32x32xf32, #tpu.memory_space<vmem>>, %arg8: memref<1x128xf32, #tpu.memory_space<vmem>>, %arg9: memref<1x128xf32, #tpu.memory_space<vmem>>, %arg10: memref<1x1x32x256xf32, #tpu.memory_space<vmem>>, %arg11: memref<1x32x256xf32, #tpu.memory_space<vmem>>, %arg12: memref<256x32xf32, #tpu.memory_space<vmem>>, %arg13: memref<256x32xf32, #tpu.memory_space<vmem>>, %arg14: memref<16x16x128xf32, #tpu.memory_space<vmem>>) attributes {dimension_semantics = [#tpu.dimension_semantics<parallel>, #tpu.dimension_semantics<arbitrary>], iteration_bounds = array<i64: 2, 8>, scalar_prefetch = 0 : i64, scratch_operands = 3 : i64, tpu.core_type = #tpu.core_type<tc>, window_params = [{transform_indices = @transform_0, window_bounds = array<i64: 1, 1, 16, 16, 128>}, {transform_indices = @transform_1, window_bounds = array<i64: 1, 256, 32>}, {transform_indices = @transform_2, window_bounds = array<i64: 1, 256, 32>}, {pipeline_mode = #tpu.pipeline_mode<synchronous>, transform_indices = @transform_3, window_bounds = array<i64: 32, 1152>}, {pipeline_mode = #tpu.pipeline_mode<synchronous>, transform_indices = @transform_4, window_bounds = array<i64: 128, 128>}, {pipeline_mode = #tpu.pipeline_mode<synchronous>, transform_indices = @transform_5, window_bounds = array<i64: 32, 32>}, {pipeline_mode = #tpu.pipeline_mode<synchronous>, transform_indices = @transform_6, window_bounds = array<i64: 1, 128>}, {pipeline_mode = #tpu.pipeline_mode<synchronous>, transform_indices = @transform_7, window_bounds = array<i64: 1, 128>}, {transform_indices = @transform_8, window_bounds = array<i64: 1, 1, 32, 256>}, {transform_indices = @transform_9, window_bounds = array<i64: 1, 32, 256>}]} {
    %c0_i32 = arith.constant 0 : i32
    %0 = arith.cmpi eq, %arg1, %c0_i32 : i32
    %1 = arith.extui %0 : i1 to i32
    %c0_i32_0 = arith.constant 0 : i32
    %2 = arith.cmpi ne, %1, %c0_i32_0 : i32
    scf.if %2 {
      %c0_102 = arith.constant 0 : index
      %c0_103 = arith.constant 0 : index
      %c0_104 = arith.constant 0 : index
      %131 = vector.load %arg3[%c0_102, %c0_103, %c0_104] : memref<1x256x32xf32, #tpu.memory_space<vmem>>, vector<1x256x32xf32>
      %132 = vector.shape_cast %131 : vector<1x256x32xf32> to vector<256x32xf32>
      %c0_105 = arith.constant 0 : index
      %c0_106 = arith.constant 0 : index
      %133 = vector.load %arg12[%c0_105, %c0_106] : memref<256x32xf32, #tpu.memory_space<vmem>>, vector<256x32xf32>
      tpu.vector_store %arg12[%c0_105, %c0_106], %132 {strides = array<i32>} : memref<256x32xf32, #tpu.memory_space<vmem>>, vector<256x32xf32>,
      %c0_107 = arith.constant 0 : index
      %c0_108 = arith.constant 0 : index
      %c0_109 = arith.constant 0 : index
      %134 = vector.load %arg4[%c0_107, %c0_108, %c0_109] : memref<1x256x32xf32, #tpu.memory_space<vmem>>, vector<1x256x32xf32>
      %135 = vector.shape_cast %134 : vector<1x256x32xf32> to vector<256x32xf32>
      %c0_110 = arith.constant 0 : index
      %c0_111 = arith.constant 0 : index
      %136 = vector.load %arg13[%c0_110, %c0_111] : memref<256x32xf32, #tpu.memory_space<vmem>>, vector<256x32xf32>
      tpu.vector_store %arg13[%c0_110, %c0_111], %135 {strides = array<i32>} : memref<256x32xf32, #tpu.memory_space<vmem>>, vector<256x32xf32>,
    } else {
    }
    %c0 = arith.constant 0 : index
    %c0_1 = arith.constant 0 : index
    %c0_2 = arith.constant 0 : index
    %c0_3 = arith.constant 0 : index
    %c0_4 = arith.constant 0 : index
    %3 = vector.load %arg2[%c0, %c0_1, %c0_2, %c0_3, %c0_4] : memref<1x1x16x16x128xf32, #tpu.memory_space<vmem>>, vector<1x1x16x16x128xf32>
    %4 = vector.shape_cast %3 : vector<1x1x16x16x128xf32> to vector<16x16x128xf32>
    %c0_5 = arith.constant 0 : index
    %c0_6 = arith.constant 0 : index
    %c0_7 = arith.constant 0 : index
    %5 = vector.load %arg14[%c0_5, %c0_6, %c0_7] : memref<16x16x128xf32, #tpu.memory_space<vmem>>, vector<16x16x128xf32>
    tpu.vector_store %arg14[%c0_5, %c0_6, %c0_7], %4 {strides = array<i32>} : memref<16x16x128xf32, #tpu.memory_space<vmem>>, vector<16x16x128xf32>,
    %c0_8 = arith.constant 0 : index
    %c0_9 = arith.constant 0 : index
    %6 = vector.load %arg12[%c0_8, %c0_9] : memref<256x32xf32, #tpu.memory_space<vmem>>, vector<256x32xf32>
    %7 = arith.truncf %6 : vector<256x32xf32> to vector<256x32xbf16>
    %c0_10 = arith.constant 0 : index
    %c0_11 = arith.constant 0 : index
    %8 = vector.load %arg5[%c0_10, %c0_11] : memref<32x1152xbf16, #tpu.memory_space<vmem>>, vector<32x1152xbf16>
    %cst = arith.constant dense<0.000000e+00> : vector<256x1152xf32>
    %9 = tpu.matmul %7, %8, %cst {dimension_numbers = #tpu.dot_dimension_numbers<[1], [0], [0], [1], [0, 0, 1, 1], [], []>} : vector<256x32xbf16>, vector<32x1152xbf16>, vector<256x1152xf32> -> vector<256x1152xf32>
    %10 = vector.extract_strided_slice %9 {offsets = [0, 0], sizes = [256, 128], strides = [1, 1]} : vector<256x1152xf32> to vector<256x128xf32>
    %11 = vector.shape_cast %10 : vector<256x128xf32> to vector<16x16x128xf32>
    %c1 = arith.constant 1 : index
    %c1_12 = arith.constant 1 : index
    %c0_13 = arith.constant 0 : index
    %12 = vector.load %arg14[%c1, %c1_12, %c0_13] : memref<16x16x128xf32, #tpu.memory_space<vmem>>, vector<15x15x128xf32>
    %13 = vector.extract_strided_slice %11 {offsets = [0, 0, 0], sizes = [15, 15, 128], strides = [1, 1, 1]} : vector<16x16x128xf32> to vector<15x15x128xf32>
    %14 = arith.addf %12, %13 : vector<15x15x128xf32>
    %c1_14 = arith.constant 1 : index
    %c1_15 = arith.constant 1 : index
    %c0_16 = arith.constant 0 : index
    %15 = vector.load %arg14[%c1_14, %c1_15, %c0_16] : memref<16x16x128xf32, #tpu.memory_space<vmem>>, vector<15x15x128xf32>
    tpu.vector_store %arg14[%c1_14, %c1_15, %c0_16], %14 {strides = array<i32>} : memref<16x16x128xf32, #tpu.memory_space<vmem>>, vector<15x15x128xf32>,
    %16 = vector.extract_strided_slice %9 {offsets = [0, 128], sizes = [256, 128], strides = [1, 1]} : vector<256x1152xf32> to vector<256x128xf32>
    %17 = vector.shape_cast %16 : vector<256x128xf32> to vector<16x16x128xf32>
    %c1_17 = arith.constant 1 : index
    %c0_18 = arith.constant 0 : index
    %c0_19 = arith.constant 0 : index
    %18 = vector.load %arg14[%c1_17, %c0_18, %c0_19] : memref<16x16x128xf32, #tpu.memory_space<vmem>>, vector<15x16x128xf32>
    %19 = vector.extract_strided_slice %17 {offsets = [0, 0, 0], sizes = [15, 16, 128], strides = [1, 1, 1]} : vector<16x16x128xf32> to vector<15x16x128xf32>
    %20 = arith.addf %18, %19 : vector<15x16x128xf32>
    %c1_20 = arith.constant 1 : index
    %c0_21 = arith.constant 0 : index
    %c0_22 = arith.constant 0 : index
    %21 = vector.load %arg14[%c1_20, %c0_21, %c0_22] : memref<16x16x128xf32, #tpu.memory_space<vmem>>, vector<15x16x128xf32>
    tpu.vector_store %arg14[%c1_20, %c0_21, %c0_22], %20 {strides = array<i32>} : memref<16x16x128xf32, #tpu.memory_space<vmem>>, vector<15x16x128xf32>,
    %22 = vector.extract_strided_slice %9 {offsets = [0, 256], sizes = [256, 128], strides = [1, 1]} : vector<256x1152xf32> to vector<256x128xf32>
    %23 = vector.shape_cast %22 : vector<256x128xf32> to vector<16x16x128xf32>
    %c1_23 = arith.constant 1 : index
    %c0_24 = arith.constant 0 : index
    %c0_25 = arith.constant 0 : index
    %24 = vector.load %arg14[%c1_23, %c0_24, %c0_25] : memref<16x16x128xf32, #tpu.memory_space<vmem>>, vector<15x15x128xf32>
    %25 = vector.extract_strided_slice %23 {offsets = [0, 1, 0], sizes = [15, 15, 128], strides = [1, 1, 1]} : vector<16x16x128xf32> to vector<15x15x128xf32>
    %26 = arith.addf %24, %25 : vector<15x15x128xf32>
    %c1_26 = arith.constant 1 : index
    %c0_27 = arith.constant 0 : index
    %c0_28 = arith.constant 0 : index
    %27 = vector.load %arg14[%c1_26, %c0_27, %c0_28] : memref<16x16x128xf32, #tpu.memory_space<vmem>>, vector<15x15x128xf32>
    tpu.vector_store %arg14[%c1_26, %c0_27, %c0_28], %26 {strides = array<i32>} : memref<16x16x128xf32, #tpu.memory_space<vmem>>, vector<15x15x128xf32>,
    %28 = vector.extract_strided_slice %9 {offsets = [0, 384], sizes = [256, 128], strides = [1, 1]} : vector<256x1152xf32> to vector<256x128xf32>
    %29 = vector.shape_cast %28 : vector<256x128xf32> to vector<16x16x128xf32>
    %c0_29 = arith.constant 0 : index
    %c1_30 = arith.constant 1 : index
    %c0_31 = arith.constant 0 : index
    %30 = vector.load %arg14[%c0_29, %c1_30, %c0_31] : memref<16x16x128xf32, #tpu.memory_space<vmem>>, vector<16x15x128xf32>
    %31 = vector.extract_strided_slice %29 {offsets = [0, 0, 0], sizes = [16, 15, 128], strides = [1, 1, 1]} : vector<16x16x128xf32> to vector<16x15x128xf32>
    %32 = arith.addf %30, %31 : vector<16x15x128xf32>
    %c0_32 = arith.constant 0 : index
    %c1_33 = arith.constant 1 : index
    %c0_34 = arith.constant 0 : index
    %33 = vector.load %arg14[%c0_32, %c1_33, %c0_34] : memref<16x16x128xf32, #tpu.memory_space<vmem>>, vector<16x15x128xf32>
    tpu.vector_store %arg14[%c0_32, %c1_33, %c0_34], %32 {strides = array<i32>} : memref<16x16x128xf32, #tpu.memory_space<vmem>>, vector<16x15x128xf32>,
    %34 = vector.extract_strided_slice %9 {offsets = [0, 512], sizes = [256, 128], strides = [1, 1]} : vector<256x1152xf32> to vector<256x128xf32>
    %35 = vector.shape_cast %34 : vector<256x128xf32> to vector<16x16x128xf32>
    %c0_35 = arith.constant 0 : index
    %c0_36 = arith.constant 0 : index
    %c0_37 = arith.constant 0 : index
    %36 = vector.load %arg14[%c0_35, %c0_36, %c0_37] : memref<16x16x128xf32, #tpu.memory_space<vmem>>, vector<16x16x128xf32>
    %37 = arith.addf %36, %35 : vector<16x16x128xf32>
    %c0_38 = arith.constant 0 : index
    %c0_39 = arith.constant 0 : index
    %c0_40 = arith.constant 0 : index
    %38 = vector.load %arg14[%c0_38, %c0_39, %c0_40] : memref<16x16x128xf32, #tpu.memory_space<vmem>>, vector<16x16x128xf32>
    tpu.vector_store %arg14[%c0_38, %c0_39, %c0_40], %37 {strides = array<i32>} : memref<16x16x128xf32, #tpu.memory_space<vmem>>, vector<16x16x128xf32>,
    %39 = vector.extract_strided_slice %9 {offsets = [0, 640], sizes = [256, 128], strides = [1, 1]} : vector<256x1152xf32> to vector<256x128xf32>
    %40 = vector.shape_cast %39 : vector<256x128xf32> to vector<16x16x128xf32>
    %c0_41 = arith.constant 0 : index
    %c0_42 = arith.constant 0 : index
    %c0_43 = arith.constant 0 : index
    %41 = vector.load %arg14[%c0_41, %c0_42, %c0_43] : memref<16x16x128xf32, #tpu.memory_space<vmem>>, vector<16x15x128xf32>
    %42 = vector.extract_strided_slice %40 {offsets = [0, 1, 0], sizes = [16, 15, 128], strides = [1, 1, 1]} : vector<16x16x128xf32> to vector<16x15x128xf32>
    %43 = arith.addf %41, %42 : vector<16x15x128xf32>
    %c0_44 = arith.constant 0 : index
    %c0_45 = arith.constant 0 : index
    %c0_46 = arith.constant 0 : index
    %44 = vector.load %arg14[%c0_44, %c0_45, %c0_46] : memref<16x16x128xf32, #tpu.memory_space<vmem>>, vector<16x15x128xf32>
    tpu.vector_store %arg14[%c0_44, %c0_45, %c0_46], %43 {strides = array<i32>} : memref<16x16x128xf32, #tpu.memory_space<vmem>>, vector<16x15x128xf32>,
    %45 = vector.extract_strided_slice %9 {offsets = [0, 768], sizes = [256, 128], strides = [1, 1]} : vector<256x1152xf32> to vector<256x128xf32>
    %46 = vector.shape_cast %45 : vector<256x128xf32> to vector<16x16x128xf32>
    %c0_47 = arith.constant 0 : index
    %c1_48 = arith.constant 1 : index
    %c0_49 = arith.constant 0 : index
    %47 = vector.load %arg14[%c0_47, %c1_48, %c0_49] : memref<16x16x128xf32, #tpu.memory_space<vmem>>, vector<15x15x128xf32>
    %48 = vector.extract_strided_slice %46 {offsets = [1, 0, 0], sizes = [15, 15, 128], strides = [1, 1, 1]} : vector<16x16x128xf32> to vector<15x15x128xf32>
    %49 = arith.addf %47, %48 : vector<15x15x128xf32>
    %c0_50 = arith.constant 0 : index
    %c1_51 = arith.constant 1 : index
    %c0_52 = arith.constant 0 : index
    %50 = vector.load %arg14[%c0_50, %c1_51, %c0_52] : memref<16x16x128xf32, #tpu.memory_space<vmem>>, vector<15x15x128xf32>
    tpu.vector_store %arg14[%c0_50, %c1_51, %c0_52], %49 {strides = array<i32>} : memref<16x16x128xf32, #tpu.memory_space<vmem>>, vector<15x15x128xf32>,
    %51 = vector.extract_strided_slice %9 {offsets = [0, 896], sizes = [256, 128], strides = [1, 1]} : vector<256x1152xf32> to vector<256x128xf32>
    %52 = vector.shape_cast %51 : vector<256x128xf32> to vector<16x16x128xf32>
    %c0_53 = arith.constant 0 : index
    %c0_54 = arith.constant 0 : index
    %c0_55 = arith.constant 0 : index
    %53 = vector.load %arg14[%c0_53, %c0_54, %c0_55] : memref<16x16x128xf32, #tpu.memory_space<vmem>>, vector<15x16x128xf32>
    %54 = vector.extract_strided_slice %52 {offsets = [1, 0, 0], sizes = [15, 16, 128], strides = [1, 1, 1]} : vector<16x16x128xf32> to vector<15x16x128xf32>
    %55 = arith.addf %53, %54 : vector<15x16x128xf32>
    %c0_56 = arith.constant 0 : index
    %c0_57 = arith.constant 0 : index
    %c0_58 = arith.constant 0 : index
    %56 = vector.load %arg14[%c0_56, %c0_57, %c0_58] : memref<16x16x128xf32, #tpu.memory_space<vmem>>, vector<15x16x128xf32>
    tpu.vector_store %arg14[%c0_56, %c0_57, %c0_58], %55 {strides = array<i32>} : memref<16x16x128xf32, #tpu.memory_space<vmem>>, vector<15x16x128xf32>,
    %57 = vector.extract_strided_slice %9 {offsets = [0, 1024], sizes = [256, 128], strides = [1, 1]} : vector<256x1152xf32> to vector<256x128xf32>
    %58 = vector.shape_cast %57 : vector<256x128xf32> to vector<16x16x128xf32>
    %c0_59 = arith.constant 0 : index
    %c0_60 = arith.constant 0 : index
    %c0_61 = arith.constant 0 : index
    %59 = vector.load %arg14[%c0_59, %c0_60, %c0_61] : memref<16x16x128xf32, #tpu.memory_space<vmem>>, vector<15x15x128xf32>
    %60 = vector.extract_strided_slice %58 {offsets = [1, 1, 0], sizes = [15, 15, 128], strides = [1, 1, 1]} : vector<16x16x128xf32> to vector<15x15x128xf32>
    %61 = arith.addf %59, %60 : vector<15x15x128xf32>
    %c0_62 = arith.constant 0 : index
    %c0_63 = arith.constant 0 : index
    %c0_64 = arith.constant 0 : index
    %62 = vector.load %arg14[%c0_62, %c0_63, %c0_64] : memref<16x16x128xf32, #tpu.memory_space<vmem>>, vector<15x15x128xf32>
    tpu.vector_store %arg14[%c0_62, %c0_63, %c0_64], %61 {strides = array<i32>} : memref<16x16x128xf32, #tpu.memory_space<vmem>>, vector<15x15x128xf32>,
    %c0_65 = arith.constant 0 : index
    %c0_66 = arith.constant 0 : index
    %c0_67 = arith.constant 0 : index
    %63 = vector.load %arg14[%c0_65, %c0_66, %c0_67] : memref<16x16x128xf32, #tpu.memory_space<vmem>>, vector<16x16x128xf32>
    %64 = vector.shape_cast %63 : vector<16x16x128xf32> to vector<256x128xf32>
    %65 = vector.shape_cast %64 : vector<256x128xf32> to vector<32x8x128xf32>
    %cst_68 = arith.constant dense<0.000000e+00> : vector<8x128xf32>
    %66 = vector.multi_reduction <add>, %65, %cst_68 [0] : vector<32x8x128xf32> to vector<8x128xf32>
    %c0_69 = arith.constant 0 : index
    %c0_70 = arith.constant 0 : index
    %67 = vector.load %arg6[%c0_69, %c0_70] : memref<128x128xf32, #tpu.memory_space<vmem>>, vector<128x128xf32>
    %cst_71 = arith.constant dense<0.000000e+00> : vector<8x128xf32>
    %68 = tpu.matmul %66, %67, %cst_71 {dimension_numbers = #tpu.dot_dimension_numbers<[1], [0], [0], [1], [0, 0, 1, 1], [], []>} : vector<8x128xf32>, vector<128x128xf32>, vector<8x128xf32> -> vector<8x128xf32>
    %cst_72 = arith.constant dense<0.000000e+00> : vector<128xf32>
    %69 = vector.multi_reduction <add>, %68, %cst_72 [0] : vector<8x128xf32> to vector<128xf32>
    %70 = vector.shape_cast %69 : vector<128xf32> to vector<1x128xf32>
    %cst_73 = arith.constant 1.22070313E-4 : f32
    %71 = vector.broadcast %cst_73 : f32 to vector<1x128xf32>
    %72 = arith.mulf %70, %71 : vector<1x128xf32>
    %73 = vector.broadcast %72 : vector<1x128xf32> to vector<256x128xf32>
    %74 = arith.subf %64, %73 : vector<256x128xf32>
    %75 = arith.mulf %74, %74 : vector<256x128xf32>
    %76 = vector.shape_cast %75 : vector<256x128xf32> to vector<32x8x128xf32>
    %cst_74 = arith.constant dense<0.000000e+00> : vector<8x128xf32>
    %77 = vector.multi_reduction <add>, %76, %cst_74 [0] : vector<32x8x128xf32> to vector<8x128xf32>
    %c0_75 = arith.constant 0 : index
    %c0_76 = arith.constant 0 : index
    %78 = vector.load %arg6[%c0_75, %c0_76] : memref<128x128xf32, #tpu.memory_space<vmem>>, vector<128x128xf32>
    %cst_77 = arith.constant dense<0.000000e+00> : vector<8x128xf32>
    %79 = tpu.matmul %77, %78, %cst_77 {dimension_numbers = #tpu.dot_dimension_numbers<[1], [0], [0], [1], [0, 0, 1, 1], [], []>} : vector<8x128xf32>, vector<128x128xf32>, vector<8x128xf32> -> vector<8x128xf32>
    %cst_78 = arith.constant dense<0.000000e+00> : vector<128xf32>
    %80 = vector.multi_reduction <add>, %79, %cst_78 [0] : vector<8x128xf32> to vector<128xf32>
    %81 = vector.shape_cast %80 : vector<128xf32> to vector<1x128xf32>
    %cst_79 = arith.constant 1.22070313E-4 : f32
    %82 = vector.broadcast %cst_79 : f32 to vector<1x128xf32>
    %83 = arith.mulf %81, %82 : vector<1x128xf32>
    %cst_80 = arith.constant 9.99999974E-6 : f32
    %84 = vector.broadcast %cst_80 : f32 to vector<1x128xf32>
    %85 = arith.addf %83, %84 : vector<1x128xf32>
    %86 = math.rsqrt %85 : vector<1x128xf32>
    %87 = vector.broadcast %86 : vector<1x128xf32> to vector<256x128xf32>
    %88 = arith.mulf %74, %87 : vector<256x128xf32>
    %c0_81 = arith.constant 0 : index
    %c0_82 = arith.constant 0 : index
    %89 = vector.load %arg8[%c0_81, %c0_82] : memref<1x128xf32, #tpu.memory_space<vmem>>, vector<1x128xf32>
    %90 = vector.broadcast %89 : vector<1x128xf32> to vector<256x128xf32>
    %91 = arith.mulf %88, %90 : vector<256x128xf32>
    %c0_83 = arith.constant 0 : index
    %c0_84 = arith.constant 0 : index
    %92 = vector.load %arg9[%c0_83, %c0_84] : memref<1x128xf32, #tpu.memory_space<vmem>>, vector<1x128xf32>
    %93 = vector.broadcast %92 : vector<1x128xf32> to vector<256x128xf32>
    %94 = arith.addf %91, %93 : vector<256x128xf32>
    %95 = vector.extract_strided_slice %94 {offsets = [0, 0], sizes = [256, 32], strides = [1, 1]} : vector<256x128xf32> to vector<256x32xf32>
    %96 = arith.negf %95 : vector<256x32xf32>
    %97 = math.exp %96 : vector<256x32xf32>
    %cst_85 = arith.constant 1.000000e+00 : f32
    %98 = vector.broadcast %cst_85 : f32 to vector<256x32xf32>
    %99 = arith.addf %98, %97 : vector<256x32xf32>
    %100 = arith.divf %98, %99 : vector<256x32xf32>
    %101 = vector.extract_strided_slice %94 {offsets = [0, 32], sizes = [256, 32], strides = [1, 1]} : vector<256x128xf32> to vector<256x32xf32>
    %102 = arith.negf %101 : vector<256x32xf32>
    %103 = math.exp %102 : vector<256x32xf32>
    %cst_86 = arith.constant 1.000000e+00 : f32
    %104 = vector.broadcast %cst_86 : f32 to vector<256x32xf32>
    %105 = arith.addf %104, %103 : vector<256x32xf32>
    %106 = arith.divf %104, %105 : vector<256x32xf32>
    %107 = vector.extract_strided_slice %94 {offsets = [0, 64], sizes = [256, 32], strides = [1, 1]} : vector<256x128xf32> to vector<256x32xf32>
    %108 = math.tanh %107 : vector<256x32xf32>
    %109 = vector.extract_strided_slice %94 {offsets = [0, 96], sizes = [256, 32], strides = [1, 1]} : vector<256x128xf32> to vector<256x32xf32>
    %110 = arith.negf %109 : vector<256x32xf32>
    %111 = math.exp %110 : vector<256x32xf32>
    %cst_87 = arith.constant 1.000000e+00 : f32
    %112 = vector.broadcast %cst_87 : f32 to vector<256x32xf32>
    %113 = arith.addf %112, %111 : vector<256x32xf32>
    %114 = arith.divf %112, %113 : vector<256x32xf32>
    %c0_88 = arith.constant 0 : index
    %c0_89 = arith.constant 0 : index
    %115 = vector.load %arg13[%c0_88, %c0_89] : memref<256x32xf32, #tpu.memory_space<vmem>>, vector<256x32xf32>
    %116 = arith.mulf %106, %115 : vector<256x32xf32>
    %117 = arith.mulf %100, %108 : vector<256x32xf32>
    %118 = arith.addf %116, %117 : vector<256x32xf32>
    %119 = math.tanh %118 : vector<256x32xf32>
    %120 = arith.mulf %114, %119 : vector<256x32xf32>
    %c0_90 = arith.constant 0 : index
    %c0_91 = arith.constant 0 : index
    %121 = vector.load %arg13[%c0_90, %c0_91] : memref<256x32xf32, #tpu.memory_space<vmem>>, vector<256x32xf32>
    tpu.vector_store %arg13[%c0_90, %c0_91], %118 {strides = array<i32>} : memref<256x32xf32, #tpu.memory_space<vmem>>, vector<256x32xf32>,
    %c0_92 = arith.constant 0 : index
    %c0_93 = arith.constant 0 : index
    %122 = vector.load %arg12[%c0_92, %c0_93] : memref<256x32xf32, #tpu.memory_space<vmem>>, vector<256x32xf32>
    tpu.vector_store %arg12[%c0_92, %c0_93], %120 {strides = array<i32>} : memref<256x32xf32, #tpu.memory_space<vmem>>, vector<256x32xf32>,
    %c0_94 = arith.constant 0 : index
    %c0_95 = arith.constant 0 : index
    %123 = vector.load %arg7[%c0_94, %c0_95] : memref<32x32xf32, #tpu.memory_space<vmem>>, vector<32x32xf32>
    %cst_96 = arith.constant dense<0.000000e+00> : vector<32x256xf32>
    %124 = tpu.matmul %123, %120, %cst_96 {dimension_numbers = #tpu.dot_dimension_numbers<[1], [1], [0], [0], [0, 0, 1, 0], [], []>} : vector<32x32xf32>, vector<256x32xf32>, vector<32x256xf32> -> vector<32x256xf32>
    %c0_97 = arith.constant 0 : index
    %c0_98 = arith.constant 0 : index
    %c0_99 = arith.constant 0 : index
    %c0_100 = arith.constant 0 : index
    %125 = vector.load %arg10[%c0_97, %c0_98, %c0_99, %c0_100] : memref<1x1x32x256xf32, #tpu.memory_space<vmem>>, vector<1x1x32x256xf32>
    %126 = vector.shape_cast %125 : vector<1x1x32x256xf32> to vector<32x256xf32>
    %127 = vector.shape_cast %124 : vector<32x256xf32> to vector<1x1x32x256xf32>
    tpu.vector_store %arg10[%c0_97, %c0_98, %c0_99, %c0_100], %127 {strides = array<i32>} : memref<1x1x32x256xf32, #tpu.memory_space<vmem>>, vector<1x1x32x256xf32>,
    %c7_i32 = arith.constant 7 : i32
    %128 = arith.cmpi eq, %arg1, %c7_i32 : i32
    %129 = arith.extui %128 : i1 to i32
    %c0_i32_101 = arith.constant 0 : i32
    %130 = arith.cmpi ne, %129, %c0_i32_101 : i32
    scf.if %130 {
      %c0_102 = arith.constant 0 : index
      %c0_103 = arith.constant 0 : index
      %131 = vector.load %arg7[%c0_102, %c0_103] : memref<32x32xf32, #tpu.memory_space<vmem>>, vector<32x32xf32>
      %cst_104 = arith.constant dense<0.000000e+00> : vector<32x256xf32>
      %132 = tpu.matmul %131, %118, %cst_104 {dimension_numbers = #tpu.dot_dimension_numbers<[1], [1], [0], [0], [0, 0, 1, 0], [], []>} : vector<32x32xf32>, vector<256x32xf32>, vector<32x256xf32> -> vector<32x256xf32>
      %c0_105 = arith.constant 0 : index
      %c0_106 = arith.constant 0 : index
      %c0_107 = arith.constant 0 : index
      %133 = vector.load %arg11[%c0_105, %c0_106, %c0_107] : memref<1x32x256xf32, #tpu.memory_space<vmem>>, vector<1x32x256xf32>
      %134 = vector.shape_cast %133 : vector<1x32x256xf32> to vector<32x256xf32>
      %135 = vector.shape_cast %132 : vector<32x256xf32> to vector<1x32x256xf32>
      tpu.vector_store %arg11[%c0_105, %c0_106, %c0_107], %135 {strides = array<i32>} : memref<1x32x256xf32, #tpu.memory_space<vmem>>, vector<1x32x256xf32>,
    } else {
    }
    return
  }
  func.func @transform_0(%arg0: i32, %arg1: i32) -> (i32, i32, i32, i32, i32) {
    %c0_i32 = arith.constant 0 : i32
    %c0_i32_0 = arith.constant 0 : i32
    %c0_i32_1 = arith.constant 0 : i32
    %c0_i32_2 = arith.constant 0 : i32
    return %arg1, %arg0, %c0_i32, %c0_i32_0, %c0_i32_1 : i32, i32, i32, i32, i32
  }
  func.func @transform_1(%arg0: i32, %arg1: i32) -> (i32, i32, i32) {
    %c0_i32 = arith.constant 0 : i32
    %c0_i32_0 = arith.constant 0 : i32
    %c0_i32_1 = arith.constant 0 : i32
    return %arg0, %c0_i32, %c0_i32_0 : i32, i32, i32
  }
  func.func @transform_2(%arg0: i32, %arg1: i32) -> (i32, i32, i32) {
    %c0_i32 = arith.constant 0 : i32
    %c0_i32_0 = arith.constant 0 : i32
    %c0_i32_1 = arith.constant 0 : i32
    return %arg0, %c0_i32, %c0_i32_0 : i32, i32, i32
  }
  func.func @transform_3(%arg0: i32, %arg1: i32) -> (i32, i32) {
    %c0_i32 = arith.constant 0 : i32
    %c0_i32_0 = arith.constant 0 : i32
    %c0_i32_1 = arith.constant 0 : i32
    return %c0_i32, %c0_i32_0 : i32, i32
  }
  func.func @transform_4(%arg0: i32, %arg1: i32) -> (i32, i32) {
    %c0_i32 = arith.constant 0 : i32
    %c0_i32_0 = arith.constant 0 : i32
    %c0_i32_1 = arith.constant 0 : i32
    return %c0_i32, %c0_i32_0 : i32, i32
  }
  func.func @transform_5(%arg0: i32, %arg1: i32) -> (i32, i32) {
    %c0_i32 = arith.constant 0 : i32
    %c0_i32_0 = arith.constant 0 : i32
    %c0_i32_1 = arith.constant 0 : i32
    return %c0_i32, %c0_i32_0 : i32, i32
  }
  func.func @transform_6(%arg0: i32, %arg1: i32) -> (i32, i32) {
    %c0_i32 = arith.constant 0 : i32
    %c0_i32_0 = arith.constant 0 : i32
    %c0_i32_1 = arith.constant 0 : i32
    return %c0_i32, %c0_i32_0 : i32, i32
  }
  func.func @transform_7(%arg0: i32, %arg1: i32) -> (i32, i32) {
    %c0_i32 = arith.constant 0 : i32
    %c0_i32_0 = arith.constant 0 : i32
    %c0_i32_1 = arith.constant 0 : i32
    return %c0_i32, %c0_i32_0 : i32, i32
  }
  func.func @transform_8(%arg0: i32, %arg1: i32) -> (i32, i32, i32, i32) {
    %c0_i32 = arith.constant 0 : i32
    %c0_i32_0 = arith.constant 0 : i32
    %c0_i32_1 = arith.constant 0 : i32
    return %arg1, %arg0, %c0_i32, %c0_i32_0 : i32, i32, i32, i32
  }
  func.func @transform_9(%arg0: i32, %arg1: i32) -> (i32, i32, i32) {
    %c0_i32 = arith.constant 0 : i32
    %c0_i32_0 = arith.constant 0 : i32
    %c0_i32_1 = arith.constant 0 : i32
    return %arg0, %c0_i32, %c0_i32_0 : i32, i32, i32
  }
}

</mosaic_0001>

<llo_original>
// kernel: tpu_custom_call.1
$region0: #{tpu_custom_call.1}
  #allocation0 [shape = 'u32[]', space=smem, size = 0x4, offset = 0x4, fixed_abs, tag = 'smem constant byte address 0x4 - core index']
  #allocation1 [shape = 'u32[144,128]{1,0:T(1,128)}', space=vmem, size = 0x12000, scoped, tag = 'internal scratch']
  #allocation2 [shape = 'f32[256,32]{1,0:T(8,128)}', space=vmem, size = 0x20000, scoped, tag = 'scratch operand']
  #allocation3 [shape = 'f32[256,32]{1,0:T(8,128)}', space=vmem, size = 0x20000, scoped, tag = 'scratch operand']
  #allocation4 [shape = 'f32[16,16,128]{2,1,0:T(8,128)}', space=vmem, size = 0x20000, scoped, tag = 'scratch operand']
  %s0 = inlined_call_operand.hbm [shape: f32[8,2,16,16,128], index: 0, kind: input, shape index: {}]
  %s1 = inlined_call_operand.vmem [shape: f32[2,256,32], index: 1, kind: input, shape index: {}]
  %s2 = inlined_call_operand.vmem [shape: f32[2,256,32], index: 2, kind: input, shape index: {}]
  %s3 = inlined_call_operand.hbm [shape: bf16[32,1152], index: 3, kind: input, shape index: {}]
  %s4 = inlined_call_operand.hbm [shape: f32[128,128], index: 4, kind: input, shape index: {}]
  %s5 = inlined_call_operand.hbm [shape: f32[32,32], index: 5, kind: input, shape index: {}]
  %s6 = inlined_call_operand.hbm [shape: f32[1,128], index: 6, kind: input, shape index: {}]
  %s7 = inlined_call_operand.hbm [shape: f32[1,128], index: 7, kind: input, shape index: {}]
  %s8 = inlined_call_operand.hbm [shape: f32[8,2,32,256], index: 8, kind: output, shape index: {0}]
  %s9 = inlined_call_operand.hbm [shape: f32[2,32,256], index: 9, kind: output, shape index: {1}]
  %10 = xla_tuple %s8, %s9
  %s11 = sld [smem:[#allocation0]]
  $region105: #{tpu_custom_call.1} parent=0
    _
  %s13 = ssub.s32 1, %s11
  %s14 = scalar_select 0, %s13, %s11
  $region1: #{tpu_custom_call.1} parent=0
    #allocation5 [shape = 'u8[262144]{0}', space=vmem, size = 0x40000, scoped, tag = 'input window, operand 0']
    #allocation6 [shape = 's32[2]{0}', space=sflag, size = 0x8, scoped, tag = 'scoped memory for tpu_custom_call.1']
    #allocation7 [shape = 's32[2]{0}', space=sflag, size = 0x8, scoped, tag = 'scoped memory for tpu_custom_call.1']
    #allocation8 [shape = 'u8[73728]{0}', space=vmem, size = 0x12000, scoped, tag = 'input window, operand 3, single buffered']
    #allocation9 [shape = 's32[1]{0}', space=sflag, size = 0x4, scoped, tag = 'scoped memory for tpu_custom_call.1']
    #allocation10 [shape = 'u8[65536]{0}', space=vmem, size = 0x10000, scoped, tag = 'input window, operand 4, single buffered']
    #allocation11 [shape = 'u8[16384]{0}', space=vmem, size = 0x4000, scoped, tag = 'input window, operand 5, single buffered']
    #allocation12 [shape = 's32[1]{0}', space=sflag, size = 0x4, scoped, tag = 'scoped memory for tpu_custom_call.1']
    #allocation13 [shape = 'u8[512]{0}', space=vmem, size = 0x400, scoped, tag = 'input window, operand 6, single buffered']
    #allocation14 [shape = 'u8[512]{0}', space=vmem, size = 0x400, scoped, tag = 'input window, operand 7, single buffered']
    #allocation15 [shape = 's32[1]{0}', space=sflag, size = 0x4, scoped, tag = 'scoped memory for tpu_custom_call.1']
    #allocation16 [shape = 'u8[65536]{0}', space=vmem, size = 0x10000, scoped, tag = 'output window, operand 0']
    #allocation17 [shape = 'u8[65536]{0}', space=vmem, size = 0x10000, scoped, tag = 'output window, operand 1']
    #allocation18 [shape = 's32[2]{0}', space=sflag, size = 0x8, scoped, tag = 'scoped memory for tpu_custom_call.1']
    %15 = vsyncpa [#allocation6], 0
    %s16 = scalar_lea.sflag [#allocation6], 1
    %17 = vsyncpa %s16, 0
    %18 = vsyncpa [#allocation9], 0
    %19 = vsyncpa [#allocation12], 0
    %20 = vsyncpa [#allocation15], 0
    %21 = vsyncpa [#allocation7], 0
    %s22 = scalar_lea.sflag [#allocation7], 1
    %23 = vsyncpa %s22, 0
    %24 = vsyncpa [#allocation18], 0
    %s25 = scalar_lea.sflag [#allocation18], 1
    %26 = vsyncpa %s25, 0
    loop: start=0, step=1, limit=18
    $region2: #{tpu_custom_call.1} parent=1 // loop_pre_header
      _
    $region3: #{tpu_custom_call.1} parent=1 // loop_header
      %s28 = sphi 0, %s32
      %p29 = scmp.ge.s32.totalorder %s28, 18
      %s35 = sphi 0, %s47
      %s36 = sphi 0, %s43
      %s37 = sphi 0, %s35
      %s38 = sphi 0, %s36
      %s39 = sphi 0, %s37
      %s40 = sphi 0, %s38
      %s52 = sphi 0, %s54
      %s55 = sphi 0, %s52
      %s56 = sphi 0, %s55
      %s72 = sphi 0, %s56
      %s78 = sphi 0, %s80
      %s81 = sphi 0, %s78
      %s82 = sphi 0, %s81
      %s98 = sphi 0, %s82
      %s104 = sphi 0, %s106
      %s107 = sphi 0, %s104
      %s108 = sphi 0, %s107
      %s124 = sphi 0, %s108
      %s128 = sphi 0, %s128
      %s130 = sphi 0, %s128
      %s131 = sphi 0, %s130
      %s145 = sphi 0, %s131
      %s149 = sphi 0, %s149
      %s151 = sphi 0, %s149
      %s152 = sphi 0, %s151
      %s166 = sphi 0, %s152
      %s170 = sphi 0, %s170
      %s172 = sphi 0, %s170
      %s173 = sphi 0, %s172
      %s187 = sphi 0, %s173
      %s191 = sphi 0, %s191
      %s193 = sphi 0, %s191
      %s194 = sphi 0, %s193
      %s208 = sphi 0, %s194
      %s212 = sphi 0, %s212
      %s214 = sphi 0, %s212
      %s215 = sphi 0, %s214
      %s229 = sphi 0, %s215
      %s237 = sphi 0, %s239
      %s240 = sphi 0, %s237
      %s241 = sphi 0, %s240
      %s257 = sphi 0, %s241
      %s263 = sphi 0, %s265
      %s266 = sphi 0, %s263
      %s267 = sphi 0, %s266
      %s283 = sphi 0, %s267
    $region4: #{tpu_custom_call.1} parent=1 // loop_header_branch
      %31 = sbr.rel (%p29) target = $region8
    $region5: #{tpu_custom_call.1} parent=1 // loop_body
      %s33 = ssub.s32 %s28, 1
      %s34 = ssub.s32 %s28, 2
      %s41 = sadd.s32 1, %s36
      %p42 = scmp.ge.s32.totalorder %s41, 8
      %s43 = scalar_select %p42, 0, %s41
      %s44 = sadd.s32 1, %s35
      %s45 = scalar_select %p42, %s44, %s35
      %p46 = scmp.ge.s32.totalorder %s45, 2
      %s47 = scalar_select %p46, 0, %s45
      %s48 = ssub.s32 %s36, %s43
      %s49 = ssub.s32 %s35, %s47
      %s50 = sor.u32 %s48, %s49
      %p51 = scmp.eq.s32.totalorder %s50, 0
      %s53 = sadd.s32 %s52, 1
      %s54 = scalar_select %p51, %s52, %s53
      %p57 = pneg %p51
      %p58 = scmp.eq.s32.totalorder %s28, 15
      %p59 = por %p57, %p58
      %p60 = scmp.ne.s32.totalorder %s52, %s55
      %p61 = scmp.eq.s32.totalorder %s28, 0
      %p62 = por %p60, %p61
      %p63 = scmp.ne.s32.totalorder %s52, %s55
      %p64 = scmp.eq.s32.totalorder %s33, 15
      %p65 = por %p63, %p64
      %p66 = scmp.ne.s32.totalorder %s55, %s56
      %p67 = scmp.eq.s32.totalorder %s33, 0
      %p68 = por %p66, %p67
      %p69 = scmp.ne.s32.totalorder %s55, %s56
      %p70 = scmp.eq.s32.totalorder %s34, 15
      %p71 = por %p69, %p70
      %p73 = scmp.ne.s32.totalorder %s56, %s72
      %p74 = scmp.eq.s32.totalorder %s34, 0
      %p75 = por %p73, %p74
      %s76 = ssub.s32 %s35, %s47
      %p77 = scmp.eq.s32.totalorder %s76, 0
      %s79 = sadd.s32 %s78, 1
      %s80 = scalar_select %p77, %s78, %s79
      %p83 = pneg %p77
      %p84 = scmp.eq.s32.totalorder %s28, 15
      %p85 = por %p83, %p84
      %p86 = scmp.ne.s32.totalorder %s78, %s81
      %p87 = scmp.eq.s32.totalorder %s28, 0
      %p88 = por %p86, %p87
      %p89 = scmp.ne.s32.totalorder %s78, %s81
      %p90 = scmp.eq.s32.totalorder %s33, 15
      %p91 = por %p89, %p90
      %p92 = scmp.ne.s32.totalorder %s81, %s82
      %p93 = scmp.eq.s32.totalorder %s33, 0
      %p94 = por %p92, %p93
      %p95 = scmp.ne.s32.totalorder %s81, %s82
      %p96 = scmp.eq.s32.totalorder %s34, 15
      %p97 = por %p95, %p96
      %p99 = scmp.ne.s32.totalorder %s82, %s98
      %p100 = scmp.eq.s32.totalorder %s34, 0
      %p101 = por %p99, %p100
      %s102 = ssub.s32 %s35, %s47
      %p103 = scmp.eq.s32.totalorder %s102, 0
      %s105 = sadd.s32 %s104, 1
      %s106 = scalar_select %p103, %s104, %s105
      %p109 = pneg %p103
      %p110 = scmp.eq.s32.totalorder %s28, 15
      %p111 = por %p109, %p110
      %p112 = scmp.ne.s32.totalorder %s104, %s107
      %p113 = scmp.eq.s32.totalorder %s28, 0
      %p114 = por %p112, %p113
      %p115 = scmp.ne.s32.totalorder %s104, %s107
      %p116 = scmp.eq.s32.totalorder %s33, 15
      %p117 = por %p115, %p116
      %p118 = scmp.ne.s32.totalorder %s107, %s108
      %p119 = scmp.eq.s32.totalorder %s33, 0
      %p120 = por %p118, %p119
      %p121 = scmp.ne.s32.totalorder %s107, %s108
      %p122 = scmp.eq.s32.totalorder %s34, 15
      %p123 = por %p121, %p122
      %p125 = scmp.ne.s32.totalorder %s108, %s124
      %p126 = scmp.eq.s32.totalorder %s34, 0
      %p127 = por %p125, %p126
      %s129 = sadd.s32 %s128, 1
      %p132 = scmp.eq.s32.totalorder %s28, 15
      %p133 = scmp.ne.s32.totalorder %s128, %s130
      %p134 = scmp.eq.s32.totalorder %s28, 0
      %p135 = por %p133, %p134
      %p136 = scmp.ne.s32.totalorder %s128, %s130
      %p137 = scmp.eq.s32.totalorder %s33, 15
      %p138 = por %p136, %p137
      %p139 = scmp.ne.s32.totalorder %s130, %s131
      %p140 = scmp.eq.s32.totalorder %s33, 0
      %p141 = por %p139, %p140
      %p142 = scmp.ne.s32.totalorder %s130, %s131
      %p143 = scmp.eq.s32.totalorder %s34, 15
      %p144 = por %p142, %p143
      %p146 = scmp.ne.s32.totalorder %s131, %s145
      %p147 = scmp.eq.s32.totalorder %s34, 0
      %p148 = por %p146, %p147
      %s150 = sadd.s32 %s149, 1
      %p153 = scmp.eq.s32.totalorder %s28, 15
      %p154 = scmp.ne.s32.totalorder %s149, %s151
      %p155 = scmp.eq.s32.totalorder %s28, 0
      %p156 = por %p154, %p155
      %p157 = scmp.ne.s32.totalorder %s149, %s151
      %p158 = scmp.eq.s32.totalorder %s33, 15
      %p159 = por %p157, %p158
      %p160 = scmp.ne.s32.totalorder %s151, %s152
      %p161 = scmp.eq.s32.totalorder %s33, 0
      %p162 = por %p160, %p161
      %p163 = scmp.ne.s32.totalorder %s151, %s152
      %p164 = scmp.eq.s32.totalorder %s34, 15
      %p165 = por %p163, %p164
      %p167 = scmp.ne.s32.totalorder %s152, %s166
      %p168 = scmp.eq.s32.totalorder %s34, 0
      %p169 = por %p167, %p168
      %s171 = sadd.s32 %s170, 1
      %p174 = scmp.eq.s32.totalorder %s28, 15
      %p175 = scmp.ne.s32.totalorder %s170, %s172
      %p176 = scmp.eq.s32.totalorder %s28, 0
      %p177 = por %p175, %p176
      %p178 = scmp.ne.s32.totalorder %s170, %s172
      %p179 = scmp.eq.s32.totalorder %s33, 15
      %p180 = por %p178, %p179
      %p181 = scmp.ne.s32.totalorder %s172, %s173
      %p182 = scmp.eq.s32.totalorder %s33, 0
      %p183 = por %p181, %p182
      %p184 = scmp.ne.s32.totalorder %s172, %s173
      %p185 = scmp.eq.s32.totalorder %s34, 15
      %p186 = por %p184, %p185
      %p188 = scmp.ne.s32.totalorder %s173, %s187
      %p189 = scmp.eq.s32.totalorder %s34, 0
      %p190 = por %p188, %p189
      %s192 = sadd.s32 %s191, 1
      %p195 = scmp.eq.s32.totalorder %s28, 15
      %p196 = scmp.ne.s32.totalorder %s191, %s193
      %p197 = scmp.eq.s32.totalorder %s28, 0
      %p198 = por %p196, %p197
      %p199 = scmp.ne.s32.totalorder %s191, %s193
      %p200 = scmp.eq.s32.totalorder %s33, 15
      %p201 = por %p199, %p200
      %p202 = scmp.ne.s32.totalorder %s193, %s194
      %p203 = scmp.eq.s32.totalorder %s33, 0
      %p204 = por %p202, %p203
      %p205 = scmp.ne.s32.totalorder %s193, %s194
      %p206 = scmp.eq.s32.totalorder %s34, 15
      %p207 = por %p205, %p206
      %p209 = scmp.ne.s32.totalorder %s194, %s208
      %p210 = scmp.eq.s32.totalorder %s34, 0
      %p211 = por %p209, %p210
      %s213 = sadd.s32 %s212, 1
      %p216 = scmp.eq.s32.totalorder %s28, 15
      %p217 = scmp.ne.s32.totalorder %s212, %s214
      %p218 = scmp.eq.s32.totalorder %s28, 0
      %p219 = por %p217, %p218
      %p220 = scmp.ne.s32.totalorder %s212, %s214
      %p221 = scmp.eq.s32.totalorder %s33, 15
      %p222 = por %p220, %p221
      %p223 = scmp.ne.s32.totalorder %s214, %s215
      %p224 = scmp.eq.s32.totalorder %s33, 0
      %p225 = por %p223, %p224
      %p226 = scmp.ne.s32.totalorder %s214, %s215
      %p227 = scmp.eq.s32.totalorder %s34, 15
      %p228 = por %p226, %p227
      %p230 = scmp.ne.s32.totalorder %s215, %s229
      %p231 = scmp.eq.s32.totalorder %s34, 0
      %p232 = por %p230, %p231
      %s233 = ssub.s32 %s36, %s43
      %s234 = ssub.s32 %s35, %s47
      %s235 = sor.u32 %s233, %s234
      %p236 = scmp.eq.s32.totalorder %s235, 0
      %s238 = sadd.s32 %s237, 1
      %s239 = scalar_select %p236, %s237, %s238
      %p242 = pneg %p236
      %p243 = scmp.eq.s32.totalorder %s28, 15
      %p244 = por %p242, %p243
      %p245 = scmp.ne.s32.totalorder %s237, %s240
      %p246 = scmp.eq.s32.totalorder %s28, 0
      %p247 = por %p245, %p246
      %p248 = scmp.ne.s32.totalorder %s237, %s240
      %p249 = scmp.eq.s32.totalorder %s33, 15
      %p250 = por %p248, %p249
      %p251 = scmp.ne.s32.totalorder %s240, %s241
      %p252 = scmp.eq.s32.totalorder %s33, 0
      %p253 = por %p251, %p252
      %p254 = scmp.ne.s32.totalorder %s240, %s241
      %p255 = scmp.eq.s32.totalorder %s34, 15
      %p256 = por %p254, %p255
      %p258 = scmp.ne.s32.totalorder %s241, %s257
      %p259 = scmp.eq.s32.totalorder %s34, 0
      %p260 = por %p258, %p259
      %s261 = ssub.s32 %s35, %s47
      %p262 = scmp.eq.s32.totalorder %s261, 0
      %s264 = sadd.s32 %s263, 1
      %s265 = scalar_select %p262, %s263, %s264
      %p268 = pneg %p262
      %p269 = scmp.eq.s32.totalorder %s28, 15
      %p270 = por %p268, %p269
      %p271 = scmp.ne.s32.totalorder %s263, %s266
      %p272 = scmp.eq.s32.totalorder %s28, 0
      %p273 = por %p271, %p272
      %p274 = scmp.ne.s32.totalorder %s263, %s266
      %p275 = scmp.eq.s32.totalorder %s33, 15
      %p276 = por %p274, %p275
      %p277 = scmp.ne.s32.totalorder %s266, %s267
      %p278 = scmp.eq.s32.totalorder %s33, 0
      %p279 = por %p277, %p278
      %p280 = scmp.ne.s32.totalorder %s266, %s267
      %p281 = scmp.eq.s32.totalorder %s34, 15
      %p282 = por %p280, %p281
      %p284 = scmp.ne.s32.totalorder %s267, %s283
      %p285 = scmp.eq.s32.totalorder %s34, 0
      %p286 = por %p284, %p285
      %p287 = scmp.le.s32.totalorder 1, %s28
      %p288 = scmp.lt.s32.totalorder %s28, 17
      %p289 = pnand %p287, %p288
      %p290 = pneg %p289
      // Predicated region
      $region9: #{tpu_custom_call.1} parent=5 // pred_check
        _
      $region10: #{tpu_custom_call.1} parent=5 // pred_check_branch
        %292 = sbr.rel (%p289) target = $region12
      $region11: #{tpu_custom_call.1} parent=5 // pred_region
        %s293 = ssub.s32 %s28, 1
        // Predicated region
        $region13: #{tpu_custom_call.1} parent=11 // pred_check
          %p294 = pneg %p141
        $region14: #{tpu_custom_call.1} parent=11 // pred_check_branch
          %296 = sbr.rel (%p294) target = $region16
        $region15: #{tpu_custom_call.1} parent=11 // pred_region
          %s298 = ssub.s32 2304, 2304
          %299 = vsyncadd [#allocation9], %s298
          %s300 = sshll.u32 [#allocation8], 4
          %s301 = int_to_ptr.vmem [resolvable:$true] %s300
          %306 = dma.hbm_to_vmem [thread:$0]  %s3, 2304, %s301, [#allocation9], 576, 576, 36
        $region16: #{tpu_custom_call.1} parent=11 // pred_fallthru
          _
        // Predicated region
        $region17: #{tpu_custom_call.1} parent=11 // pred_check
          %p307 = pneg %p162
        $region18: #{tpu_custom_call.1} parent=11 // pred_check_branch
          %309 = sbr.rel (%p307) target = $region20
        $region19: #{tpu_custom_call.1} parent=11 // pred_region
          %s311 = ssub.s32 2048, 2048
          %312 = vsyncadd [#allocation9], %s311
          %s313 = sshll.u32 [#allocation10], 4
          %s314 = int_to_ptr.vmem [resolvable:$true] %s313
          %319 = dma.hbm_to_vmem [thread:$0]  %s4, 2048, %s314, [#allocation9], 128, 128, 8
        $region20: #{tpu_custom_call.1} parent=11 // pred_fallthru
          _
        // Predicated region
        $region21: #{tpu_custom_call.1} parent=11 // pred_check
          %p320 = pneg %p183
        $region22: #{tpu_custom_call.1} parent=11 // pred_check_branch
          %322 = sbr.rel (%p320) target = $region24
        $region23: #{tpu_custom_call.1} parent=11 // pred_region
          %s324 = ssub.s32 512, 512
          %325 = vsyncadd [#allocation12], %s324
          %s326 = sshll.u32 [#allocation11], 4
          %s327 = int_to_ptr.vmem [resolvable:$true] %s326
          %332 = dma.hbm_to_vmem [thread:$0]  %s5, 512, %s327, [#allocation12], 128, 128, 8
        $region24: #{tpu_custom_call.1} parent=11 // pred_fallthru
          _
        // Predicated region
        $region25: #{tpu_custom_call.1} parent=11 // pred_check
          %p333 = pneg %p204
        $region26: #{tpu_custom_call.1} parent=11 // pred_check_branch
          %335 = sbr.rel (%p333) target = $region28
        $region27: #{tpu_custom_call.1} parent=11 // pred_region
          %s337 = ssub.s32 16, 16
          %338 = vsyncadd [#allocation12], %s337
          %s340 = sshll.u32 [#allocation13], 4
          %s341 = int_to_ptr.vmem [resolvable:$true] %s340
          %343 = dma.hbm_to_vmem [thread:$0]  %s6, 16, %s341, [#allocation12]
        $region28: #{tpu_custom_call.1} parent=11 // pred_fallthru
          _
        // Predicated region
        $region29: #{tpu_custom_call.1} parent=11 // pred_check
          %p344 = pneg %p225
        $region30: #{tpu_custom_call.1} parent=11 // pred_check_branch
          %346 = sbr.rel (%p344) target = $region32
        $region31: #{tpu_custom_call.1} parent=11 // pred_region
          %s348 = ssub.s32 16, 16
          %349 = vsyncadd [#allocation15], %s348
          %s351 = sshll.u32 [#allocation14], 4
          %s352 = int_to_ptr.vmem [resolvable:$true] %s351
          %354 = dma.hbm_to_vmem [thread:$0]  %s7, 16, %s352, [#allocation15]
        $region32: #{tpu_custom_call.1} parent=11 // pred_fallthru
          _
      $region12: #{tpu_custom_call.1} parent=5 // pred_fallthru
        _
      %p355 = scmp.lt.s32.totalorder %s28, 16
      // Predicated region
      $region33: #{tpu_custom_call.1} parent=5 // pred_check
        %p356 = pneg %p355
      $region34: #{tpu_custom_call.1} parent=5 // pred_check_branch
        %358 = sbr.rel (%p356) target = $region36
      $region35: #{tpu_custom_call.1} parent=5 // pred_region
        // Predicated region
        $region37: #{tpu_custom_call.1} parent=35 // pred_check
          %p359 = pneg %p62
        $region38: #{tpu_custom_call.1} parent=35 // pred_check_branch
          %361 = sbr.rel (%p359) target = $region40
        $region39: #{tpu_custom_call.1} parent=35 // pred_region
          %s362 = sand.u32 %s52, 1
          %s363 = scalar_lea.sflag [#allocation6], %s362
          %s364 = sand.u32 %s52, 1
          %s365 = smul.addr %s364, 256
          %s366 = scalar_lea.vmem [#allocation5], %s365
          %s368 = ssub.s32 4096, 4096
          %369 = vsyncadd %s363, %s368
          %s370 = smul.addr %s35, 32
          %s371 = smul.addr %s36, 64
          %s372 = sadd.s32 %s370, %s371
          %s373 = smul.addr %s372, 128
          %s374 = scalar_lea.hbm %s0, %s373
          %s375 = sshll.u32 %s366, 4
          %s376 = int_to_ptr.vmem [resolvable:$true] %s375
          %381 = dma.hbm_to_vmem [thread:$0]  %s374, 4096, %s376, %s363, 128, 128, 8
        $region40: #{tpu_custom_call.1} parent=35 // pred_fallthru
          _
        // Predicated region
        $region41: #{tpu_custom_call.1} parent=35 // pred_check
          %p382 = pneg %p88
        $region42: #{tpu_custom_call.1} parent=35 // pred_check_branch
          %384 = sbr.rel (%p382) target = $region44
        $region43: #{tpu_custom_call.1} parent=35 // pred_region
          %p385 = scmp.lt.s32.totalorder %s35, 1
          %s386 = scalar_select %p385, %s35, 1
          %s387 = smul.addr %s386, 32
          %s388 = smul.addr %s387, 8
          %s389 = scalar_lea.vmem %s1, %s388
        $region44: #{tpu_custom_call.1} parent=35 // pred_fallthru
          _
        // Predicated region
        $region45: #{tpu_custom_call.1} parent=35 // pred_check
          %p390 = pneg %p114
        $region46: #{tpu_custom_call.1} parent=35 // pred_check_branch
          %392 = sbr.rel (%p390) target = $region48
        $region47: #{tpu_custom_call.1} parent=35 // pred_region
          %p393 = scmp.lt.s32.totalorder %s35, 1
          %s394 = scalar_select %p393, %s35, 1
          %s395 = smul.addr %s394, 32
          %s396 = smul.addr %s395, 8
          %s397 = scalar_lea.vmem %s2, %s396
        $region48: #{tpu_custom_call.1} parent=35 // pred_fallthru
          _
      $region36: #{tpu_custom_call.1} parent=5 // pred_fallthru
        _
      %p398 = scmp.le.s32.totalorder 1, %s28
      %p399 = scmp.lt.s32.totalorder %s28, 17
      %p400 = pnand %p398, %p399
      %p401 = pneg %p400
      // Predicated region
      $region49: #{tpu_custom_call.1} parent=5 // pred_check
        _
      $region50: #{tpu_custom_call.1} parent=5 // pred_check_branch
        %403 = sbr.rel (%p400) target = $region52
      $region51: #{tpu_custom_call.1} parent=5 // pred_region
        %s404 = ssub.s32 %s28, 1
        %s405 = sand.u32 %s55, 1
        %s406 = scalar_lea.sflag [#allocation6], %s405
        %s407 = sand.u32 %s55, 1
        %s408 = smul.addr %s407, 256
        %s409 = scalar_lea.vmem [#allocation5], %s408
        // Predicated region
        $region53: #{tpu_custom_call.1} parent=51 // pred_check
          %p410 = pneg %p68
        $region54: #{tpu_custom_call.1} parent=51 // pred_check_branch
          %412 = sbr.rel (%p410) target = $region56
        $region55: #{tpu_custom_call.1} parent=51 // pred_region
          %413 = dma.done %s406, 4096
        $region56: #{tpu_custom_call.1} parent=51 // pred_fallthru
          _
        // Predicated region
        $region57: #{tpu_custom_call.1} parent=51 // pred_check
          %p414 = pneg %p141
        $region58: #{tpu_custom_call.1} parent=51 // pred_check_branch
          %416 = sbr.rel (%p414) target = $region60
        $region59: #{tpu_custom_call.1} parent=51 // pred_region
          %417 = dma.done [#allocation9], 2304
        $region60: #{tpu_custom_call.1} parent=51 // pred_fallthru
          _
        // Predicated region
        $region61: #{tpu_custom_call.1} parent=51 // pred_check
          %p418 = pneg %p162
        $region62: #{tpu_custom_call.1} parent=51 // pred_check_branch
          %420 = sbr.rel (%p418) target = $region64
        $region63: #{tpu_custom_call.1} parent=51 // pred_region
          %421 = dma.done [#allocation9], 2048
        $region64: #{tpu_custom_call.1} parent=51 // pred_fallthru
          _
        // Predicated region
        $region65: #{tpu_custom_call.1} parent=51 // pred_check
          %p422 = pneg %p183
        $region66: #{tpu_custom_call.1} parent=51 // pred_check_branch
          %424 = sbr.rel (%p422) target = $region68
        $region67: #{tpu_custom_call.1} parent=51 // pred_region
          %425 = dma.done [#allocation12], 512
        $region68: #{tpu_custom_call.1} parent=51 // pred_fallthru
          _
        // Predicated region
        $region69: #{tpu_custom_call.1} parent=51 // pred_check
          %p426 = pneg %p204
        $region70: #{tpu_custom_call.1} parent=51 // pred_check_branch
          %428 = sbr.rel (%p426) target = $region72
        $region71: #{tpu_custom_call.1} parent=51 // pred_region
          %429 = dma.done [#allocation12], 16
        $region72: #{tpu_custom_call.1} parent=51 // pred_fallthru
          _
        // Predicated region
        $region73: #{tpu_custom_call.1} parent=51 // pred_check
          %p430 = pneg %p225
        $region74: #{tpu_custom_call.1} parent=51 // pred_check_branch
          %432 = sbr.rel (%p430) target = $region76
        $region75: #{tpu_custom_call.1} parent=51 // pred_region
          %433 = dma.done [#allocation15], 16
        $region76: #{tpu_custom_call.1} parent=51 // pred_fallthru
          _
        %s434 = sand.u32 %s55, 1
        %s435 = scalar_lea.sflag [#allocation6], %s434
        %s436 = sand.u32 %s55, 1
        %s437 = smul.addr %s436, 256
        %s438 = scalar_lea.vmem [#allocation5], %s437
        %p439 = pneg %p68
        %p440 = pneg %p65
        %p441 = scmp.lt.s32.totalorder %s37, 1
        %s442 = scalar_select %p441, %s37, 1
        %s443 = smul.addr %s442, 32
        %s444 = smul.addr %s443, 8
        %s445 = scalar_lea.vmem %s1, %s444
        %p446 = pneg %p94
        %p447 = pneg %p91
        %p448 = scmp.lt.s32.totalorder %s37, 1
        %s449 = scalar_select %p448, %s37, 1
        %s450 = smul.addr %s449, 32
        %s451 = smul.addr %s450, 8
        %s452 = scalar_lea.vmem %s2, %s451
        %p453 = pneg %p120
        %p454 = pneg %p117
        %p455 = pneg %p141
        %p456 = pneg %p138
        %p457 = pneg %p162
        %p458 = pneg %p159
        %p459 = pneg %p183
        %p460 = pneg %p180
        %p461 = pneg %p204
        %p462 = pneg %p201
        %p463 = pneg %p225
        %p464 = pneg %p222
        %p465 = pneg %p253
        %p466 = pneg %p250
        %s467 = sand.u32 %s240, 1
        %s468 = scalar_lea.sflag [#allocation7], %s467
        %s469 = sand.u32 %s240, 1
        %s470 = smul.addr %s469, 64
        %s471 = scalar_lea.vmem [#allocation16], %s470
        %p472 = pneg %p279
        %p473 = pneg %p276
        %s474 = sand.u32 %s266, 1
        %s475 = scalar_lea.sflag [#allocation18], %s474
        %s476 = sand.u32 %s266, 1
        %s477 = smul.addr %s476, 64
        %s478 = scalar_lea.vmem [#allocation17], %s477
        %p479 = scmp.lt.s32.totalorder %s37, 1
        %s480 = scalar_select %p479, %s37, 1
        %s481 = smul.addr %s480, 32
        %s482 = smul.addr %s481, 8
        %s483 = scalar_lea.vmem %s1, %s482
        %p484 = scmp.lt.s32.totalorder %s37, 1
        %s485 = scalar_select %p484, %s37, 1
        %s486 = smul.addr %s485, 32
        %s487 = smul.addr %s486, 8
        %s488 = scalar_lea.vmem %s2, %s487
        %p490 = scmp.eq.s32.totalorder %s38, 0
        // Predicated region
        $region77: #{tpu_custom_call.1} parent=51 // pred_check
          %p491 = pneg %p490
        $region78: #{tpu_custom_call.1} parent=51 // pred_check_branch
          %493 = sbr.rel (%p491) target = $region80
        $region79: #{tpu_custom_call.1} parent=51 // pred_region
          %v494 = vld [vmem:[%s483] sm:$0xff]
          %v495 = vld [vmem:[%s483 + $0x8] sm:$0xff]
          %v496 = vld [vmem:[%s483 + $0x10] sm:$0xff]
          %v497 = vld [vmem:[%s483 + $0x18] sm:$0xff]
          %v498 = vld [vmem:[%s483 + $0x20] sm:$0xff]
          %v499 = vld [vmem:[%s483 + $0x28] sm:$0xff]
          %v500 = vld [vmem:[%s483 + $0x30] sm:$0xff]
          %v501 = vld [vmem:[%s483 + $0x38] sm:$0xff]
          %v502 = vld [vmem:[%s483 + $0x40] sm:$0xff]
          %v503 = vld [vmem:[%s483 + $0x48] sm:$0xff]
          %v504 = vld [vmem:[%s483 + $0x50] sm:$0xff]
          %v505 = vld [vmem:[%s483 + $0x58] sm:$0xff]
          %v506 = vld [vmem:[%s483 + $0x60] sm:$0xff]
          %v507 = vld [vmem:[%s483 + $0x68] sm:$0xff]
          %v508 = vld [vmem:[%s483 + $0x70] sm:$0xff]
          %v509 = vld [vmem:[%s483 + $0x78] sm:$0xff]
          %v510 = vld [vmem:[%s483 + $0x80] sm:$0xff]
          %v511 = vld [vmem:[%s483 + $0x88] sm:$0xff]
          %v512 = vld [vmem:[%s483 + $0x90] sm:$0xff]
          %v513 = vld [vmem:[%s483 + $0x98] sm:$0xff]
          %v514 = vld [vmem:[%s483 + $0xa0] sm:$0xff]
          %v515 = vld [vmem:[%s483 + $0xa8] sm:$0xff]
          %v516 = vld [vmem:[%s483 + $0xb0] sm:$0xff]
          %v517 = vld [vmem:[%s483 + $0xb8] sm:$0xff]
          %v518 = vld [vmem:[%s483 + $0xc0] sm:$0xff]
          %v519 = vld [vmem:[%s483 + $0xc8] sm:$0xff]
          %v520 = vld [vmem:[%s483 + $0xd0] sm:$0xff]
          %v521 = vld [vmem:[%s483 + $0xd8] sm:$0xff]
          %v522 = vld [vmem:[%s483 + $0xe0] sm:$0xff]
          %v523 = vld [vmem:[%s483 + $0xe8] sm:$0xff]
          %v524 = vld [vmem:[%s483 + $0xf0] sm:$0xff]
          %v525 = vld [vmem:[%s483 + $0xf8] sm:$0xff]
          %vm526 = vcmask 261120
          %527 = vst.msk [vmem:[#allocation2] sm:$0xff] %vm526, %v494
          %528 = vst.msk [vmem:[#allocation2 + $0x8] sm:$0xff] %vm526, %v495
          %529 = vst.msk [vmem:[#allocation2 + $0x10] sm:$0xff] %vm526, %v496
          %530 = vst.msk [vmem:[#allocation2 + $0x18] sm:$0xff] %vm526, %v497
          %531 = vst.msk [vmem:[#allocation2 + $0x20] sm:$0xff] %vm526, %v498
          %532 = vst.msk [vmem:[#allocation2 + $0x28] sm:$0xff] %vm526, %v499
          %533 = vst.msk [vmem:[#allocation2 + $0x30] sm:$0xff] %vm526, %v500
          %534 = vst.msk [vmem:[#allocation2 + $0x38] sm:$0xff] %vm526, %v501
          %535 = vst.msk [vmem:[#allocation2 + $0x40] sm:$0xff] %vm526, %v502
          %536 = vst.msk [vmem:[#allocation2 + $0x48] sm:$0xff] %vm526, %v503
          %537 = vst.msk [vmem:[#allocation2 + $0x50] sm:$0xff] %vm526, %v504
          %538 = vst.msk [vmem:[#allocation2 + $0x58] sm:$0xff] %vm526, %v505
          %539 = vst.msk [vmem:[#allocation2 + $0x60] sm:$0xff] %vm526, %v506
          %540 = vst.msk [vmem:[#allocation2 + $0x68] sm:$0xff] %vm526, %v507
          %541 = vst.msk [vmem:[#allocation2 + $0x70] sm:$0xff] %vm526, %v508
          %542 = vst.msk [vmem:[#allocation2 + $0x78] sm:$0xff] %vm526, %v509
          %543 = vst.msk [vmem:[#allocation2 + $0x80] sm:$0xff] %vm526, %v510
          %544 = vst.msk [vmem:[#allocation2 + $0x88] sm:$0xff] %vm526, %v511
          %545 = vst.msk [vmem:[#allocation2 + $0x90] sm:$0xff] %vm526, %v512
          %546 = vst.msk [vmem:[#allocation2 + $0x98] sm:$0xff] %vm526, %v513
          %547 = vst.msk [vmem:[#allocation2 + $0xa0] sm:$0xff] %vm526, %v514
          %548 = vst.msk [vmem:[#allocation2 + $0xa8] sm:$0xff] %vm526, %v515
          %549 = vst.msk [vmem:[#allocation2 + $0xb0] sm:$0xff] %vm526, %v516
          %550 = vst.msk [vmem:[#allocation2 + $0xb8] sm:$0xff] %vm526, %v517
          %551 = vst.msk [vmem:[#allocation2 + $0xc0] sm:$0xff] %vm526, %v518
          %552 = vst.msk [vmem:[#allocation2 + $0xc8] sm:$0xff] %vm526, %v519
          %553 = vst.msk [vmem:[#allocation2 + $0xd0] sm:$0xff] %vm526, %v520
          %554 = vst.msk [vmem:[#allocation2 + $0xd8] sm:$0xff] %vm526, %v521
          %555 = vst.msk [vmem:[#allocation2 + $0xe0] sm:$0xff] %vm526, %v522
          %556 = vst.msk [vmem:[#allocation2 + $0xe8] sm:$0xff] %vm526, %v523
          %557 = vst.msk [vmem:[#allocation2 + $0xf0] sm:$0xff] %vm526, %v524
          %558 = vst.msk [vmem:[#allocation2 + $0xf8] sm:$0xff] %vm526, %v525
          %v559 = vld [vmem:[%s488] sm:$0xff]
          %v560 = vld [vmem:[%s488 + $0x8] sm:$0xff]
          %v561 = vld [vmem:[%s488 + $0x10] sm:$0xff]
          %v562 = vld [vmem:[%s488 + $0x18] sm:$0xff]
          %v563 = vld [vmem:[%s488 + $0x20] sm:$0xff]
          %v564 = vld [vmem:[%s488 + $0x28] sm:$0xff]
          %v565 = vld [vmem:[%s488 + $0x30] sm:$0xff]
          %v566 = vld [vmem:[%s488 + $0x38] sm:$0xff]
          %v567 = vld [vmem:[%s488 + $0x40] sm:$0xff]
          %v568 = vld [vmem:[%s488 + $0x48] sm:$0xff]
          %v569 = vld [vmem:[%s488 + $0x50] sm:$0xff]
          %v570 = vld [vmem:[%s488 + $0x58] sm:$0xff]
          %v571 = vld [vmem:[%s488 + $0x60] sm:$0xff]
          %v572 = vld [vmem:[%s488 + $0x68] sm:$0xff]
          %v573 = vld [vmem:[%s488 + $0x70] sm:$0xff]
          %v574 = vld [vmem:[%s488 + $0x78] sm:$0xff]
          %v575 = vld [vmem:[%s488 + $0x80] sm:$0xff]
          %v576 = vld [vmem:[%s488 + $0x88] sm:$0xff]
          %v577 = vld [vmem:[%s488 + $0x90] sm:$0xff]
          %v578 = vld [vmem:[%s488 + $0x98] sm:$0xff]
          %v579 = vld [vmem:[%s488 + $0xa0] sm:$0xff]
          %v580 = vld [vmem:[%s488 + $0xa8] sm:$0xff]
          %v581 = vld [vmem:[%s488 + $0xb0] sm:$0xff]
          %v582 = vld [vmem:[%s488 + $0xb8] sm:$0xff]
          %v583 = vld [vmem:[%s488 + $0xc0] sm:$0xff]
          %v584 = vld [vmem:[%s488 + $0xc8] sm:$0xff]
          %v585 = vld [vmem:[%s488 + $0xd0] sm:$0xff]
          %v586 = vld [vmem:[%s488 + $0xd8] sm:$0xff]
          %v587 = vld [vmem:[%s488 + $0xe0] sm:$0xff]
          %v588 = vld [vmem:[%s488 + $0xe8] sm:$0xff]
          %v589 = vld [vmem:[%s488 + $0xf0] sm:$0xff]
          %v590 = vld [vmem:[%s488 + $0xf8] sm:$0xff]
          %591 = vst.msk [vmem:[#allocation3] sm:$0xff] %vm526, %v559
          %592 = vst.msk [vmem:[#allocation3 + $0x8] sm:$0xff] %vm526, %v560
          %593 = vst.msk [vmem:[#allocation3 + $0x10] sm:$0xff] %vm526, %v561
          %594 = vst.msk [vmem:[#allocation3 + $0x18] sm:$0xff] %vm526, %v562
          %595 = vst.msk [vmem:[#allocation3 + $0x20] sm:$0xff] %vm526, %v563
          %596 = vst.msk [vmem:[#allocation3 + $0x28] sm:$0xff] %vm526, %v564
          %597 = vst.msk [vmem:[#allocation3 + $0x30] sm:$0xff] %vm526, %v565
          %598 = vst.msk [vmem:[#allocation3 + $0x38] sm:$0xff] %vm526, %v566
          %599 = vst.msk [vmem:[#allocation3 + $0x40] sm:$0xff] %vm526, %v567
          %600 = vst.msk [vmem:[#allocation3 + $0x48] sm:$0xff] %vm526, %v568
          %601 = vst.msk [vmem:[#allocation3 + $0x50] sm:$0xff] %vm526, %v569
          %602 = vst.msk [vmem:[#allocation3 + $0x58] sm:$0xff] %vm526, %v570
          %603 = vst.msk [vmem:[#allocation3 + $0x60] sm:$0xff] %vm526, %v571
          %604 = vst.msk [vmem:[#allocation3 + $0x68] sm:$0xff] %vm526, %v572
          %605 = vst.msk [vmem:[#allocation3 + $0x70] sm:$0xff] %vm526, %v573
          %606 = vst.msk [vmem:[#allocation3 + $0x78] sm:$0xff] %vm526, %v574
          %607 = vst.msk [vmem:[#allocation3 + $0x80] sm:$0xff] %vm526, %v575
          %608 = vst.msk [vmem:[#allocation3 + $0x88] sm:$0xff] %vm526, %v576
          %609 = vst.msk [vmem:[#allocation3 + $0x90] sm:$0xff] %vm526, %v577
          %610 = vst.msk [vmem:[#allocation3 + $0x98] sm:$0xff] %vm526, %v578
          %611 = vst.msk [vmem:[#allocation3 + $0xa0] sm:$0xff] %vm526, %v579
          %612 = vst.msk [vmem:[#allocation3 + $0xa8] sm:$0xff] %vm526, %v580
          %613 = vst.msk [vmem:[#allocation3 + $0xb0] sm:$0xff] %vm526, %v581
          %614 = vst.msk [vmem:[#allocation3 + $0xb8] sm:$0xff] %vm526, %v582
          %615 = vst.msk [vmem:[#allocation3 + $0xc0] sm:$0xff] %vm526, %v583
          %616 = vst.msk [vmem:[#allocation3 + $0xc8] sm:$0xff] %vm526, %v584
          %617 = vst.msk [vmem:[#allocation3 + $0xd0] sm:$0xff] %vm526, %v585
          %618 = vst.msk [vmem:[#allocation3 + $0xd8] sm:$0xff] %vm526, %v586
          %619 = vst.msk [vmem:[#allocation3 + $0xe0] sm:$0xff] %vm526, %v587
          %620 = vst.msk [vmem:[#allocation3 + $0xe8] sm:$0xff] %vm526, %v588
          %621 = vst.msk [vmem:[#allocation3 + $0xf0] sm:$0xff] %vm526, %v589
          %622 = vst.msk [vmem:[#allocation3 + $0xf8] sm:$0xff] %vm526, %v590
        $region80: #{tpu_custom_call.1} parent=51 // pred_fallthru
          _
        %v623 = vld [vmem:[%s409] sm:$0xff]
        %v624 = vld [vmem:[%s409 + $0x8] sm:$0xff]
        %v625 = vld [vmem:[%s409 + $0x10] sm:$0xff]
        %v626 = vld [vmem:[%s409 + $0x18] sm:$0xff]
        %v627 = vld [vmem:[%s409 + $0x20] sm:$0xff]
        %v628 = vld [vmem:[%s409 + $0x28] sm:$0xff]
        %v629 = vld [vmem:[%s409 + $0x30] sm:$0xff]
        %v630 = vld [vmem:[%s409 + $0x38] sm:$0xff]
        %v631 = vld [vmem:[%s409 + $0x40] sm:$0xff]
        %v632 = vld [vmem:[%s409 + $0x48] sm:$0xff]
        %v633 = vld [vmem:[%s409 + $0x50] sm:$0xff]
        %v634 = vld [vmem:[%s409 + $0x58] sm:$0xff]
        %v635 = vld [vmem:[%s409 + $0x60] sm:$0xff]
        %v636 = vld [vmem:[%s409 + $0x68] sm:$0xff]
        %v637 = vld [vmem:[%s409 + $0x70] sm:$0xff]
        %v638 = vld [vmem:[%s409 + $0x78] sm:$0xff]
        %v639 = vld [vmem:[%s409 + $0x80] sm:$0xff]
        %v640 = vld [vmem:[%s409 + $0x88] sm:$0xff]
        %v641 = vld [vmem:[%s409 + $0x90] sm:$0xff]
        %v642 = vld [vmem:[%s409 + $0x98] sm:$0xff]
        %v643 = vld [vmem:[%s409 + $0xa0] sm:$0xff]
        %v644 = vld [vmem:[%s409 + $0xa8] sm:$0xff]
        %v645 = vld [vmem:[%s409 + $0xb0] sm:$0xff]
        %v646 = vld [vmem:[%s409 + $0xb8] sm:$0xff]
        %v647 = vld [vmem:[%s409 + $0xc0] sm:$0xff]
        %v648 = vld [vmem:[%s409 + $0xc8] sm:$0xff]
        %v649 = vld [vmem:[%s409 + $0xd0] sm:$0xff]
        %v650 = vld [vmem:[%s409 + $0xd8] sm:$0xff]
        %v651 = vld [vmem:[%s409 + $0xe0] sm:$0xff]
        %v652 = vld [vmem:[%s409 + $0xe8] sm:$0xff]
        %v653 = vld [vmem:[%s409 + $0xf0] sm:$0xff]
        %v654 = vld [vmem:[%s409 + $0xf8] sm:$0xff]
        %655 = vst [vmem:[#allocation4] sm:$0xff] %v623
        %656 = vst [vmem:[#allocation4 + $0x8] sm:$0xff] %v624
        %657 = vst [vmem:[#allocation4 + $0x10] sm:$0xff] %v625
        %658 = vst [vmem:[#allocation4 + $0x18] sm:$0xff] %v626
        %659 = vst [vmem:[#allocation4 + $0x20] sm:$0xff] %v627
        %660 = vst [vmem:[#allocation4 + $0x28] sm:$0xff] %v628
        %661 = vst [vmem:[#allocation4 + $0x30] sm:$0xff] %v629
        %662 = vst [vmem:[#allocation4 + $0x38] sm:$0xff] %v630
        %663 = vst [vmem:[#allocation4 + $0x40] sm:$0xff] %v631
        %664 = vst [vmem:[#allocation4 + $0x48] sm:$0xff] %v632
        %665 = vst [vmem:[#allocation4 + $0x50] sm:$0xff] %v633
        %666 = vst [vmem:[#allocation4 + $0x58] sm:$0xff] %v634
        %667 = vst [vmem:[#allocation4 + $0x60] sm:$0xff] %v635
        %668 = vst [vmem:[#allocation4 + $0x68] sm:$0xff] %v636
        %669 = vst [vmem:[#allocation4 + $0x70] sm:$0xff] %v637
        %670 = vst [vmem:[#allocation4 + $0x78] sm:$0xff] %v638
        %671 = vst [vmem:[#allocation4 + $0x80] sm:$0xff] %v639
        %672 = vst [vmem:[#allocation4 + $0x88] sm:$0xff] %v640
        %673 = vst [vmem:[#allocation4 + $0x90] sm:$0xff] %v641
        %674 = vst [vmem:[#allocation4 + $0x98] sm:$0xff] %v642
        %675 = vst [vmem:[#allocation4 + $0xa0] sm:$0xff] %v643
        %676 = vst [vmem:[#allocation4 + $0xa8] sm:$0xff] %v644
        %677 = vst [vmem:[#allocation4 + $0xb0] sm:$0xff] %v645
        %678 = vst [vmem:[#allocation4 + $0xb8] sm:$0xff] %v646
        %679 = vst [vmem:[#allocation4 + $0xc0] sm:$0xff] %v647
        %680 = vst [vmem:[#allocation4 + $0xc8] sm:$0xff] %v648
        %681 = vst [vmem:[#allocation4 + $0xd0] sm:$0xff] %v649
        %682 = vst [vmem:[#allocation4 + $0xd8] sm:$0xff] %v650
        %683 = vst [vmem:[#allocation4 + $0xe0] sm:$0xff] %v651
        %684 = vst [vmem:[#allocation4 + $0xe8] sm:$0xff] %v652
        %685 = vst [vmem:[#allocation4 + $0xf0] sm:$0xff] %v653
        %686 = vst [vmem:[#allocation4 + $0xf8] sm:$0xff] %v654
        %v687 = vld [vmem:[#allocation2] sm:$0xff]
        %v688 = vld [vmem:[#allocation2 + $0x8] sm:$0xff]
        %v689 = vld [vmem:[#allocation2 + $0x10] sm:$0xff]
        %v690 = vld [vmem:[#allocation2 + $0x18] sm:$0xff]
        %v691 = vld [vmem:[#allocation2 + $0x20] sm:$0xff]
        %v692 = vld [vmem:[#allocation2 + $0x28] sm:$0xff]
        %v693 = vld [vmem:[#allocation2 + $0x30] sm:$0xff]
        %v694 = vld [vmem:[#allocation2 + $0x38] sm:$0xff]
        %v695 = vld [vmem:[#allocation2 + $0x40] sm:$0xff]
        %v696 = vld [vmem:[#allocation2 + $0x48] sm:$0xff]
        %v697 = vld [vmem:[#allocation2 + $0x50] sm:$0xff]
        %v698 = vld [vmem:[#allocation2 + $0x58] sm:$0xff]
        %v699 = vld [vmem:[#allocation2 + $0x60] sm:$0xff]
        %v700 = vld [vmem:[#allocation2 + $0x68] sm:$0xff]
        %v701 = vld [vmem:[#allocation2 + $0x70] sm:$0xff]
        %v702 = vld [vmem:[#allocation2 + $0x78] sm:$0xff]
        %v703 = vld [vmem:[#allocation2 + $0x80] sm:$0xff]
        %v704 = vld [vmem:[#allocation2 + $0x88] sm:$0xff]
        %v705 = vld [vmem:[#allocation2 + $0x90] sm:$0xff]
        %v706 = vld [vmem:[#allocation2 + $0x98] sm:$0xff]
        %v707 = vld [vmem:[#allocation2 + $0xa0] sm:$0xff]
        %v708 = vld [vmem:[#allocation2 + $0xa8] sm:$0xff]
        %v709 = vld [vmem:[#allocation2 + $0xb0] sm:$0xff]
        %v710 = vld [vmem:[#allocation2 + $0xb8] sm:$0xff]
        %v711 = vld [vmem:[#allocation2 + $0xc0] sm:$0xff]
        %v712 = vld [vmem:[#allocation2 + $0xc8] sm:$0xff]
        %v713 = vld [vmem:[#allocation2 + $0xd0] sm:$0xff]
        %v714 = vld [vmem:[#allocation2 + $0xd8] sm:$0xff]
        %v715 = vld [vmem:[#allocation2 + $0xe0] sm:$0xff]
        %v716 = vld [vmem:[#allocation2 + $0xe8] sm:$0xff]
        %v717 = vld [vmem:[#allocation2 + $0xf0] sm:$0xff]
        %v718 = vld [vmem:[#allocation2 + $0xf8] sm:$0xff]
        %v719 = vpack.c.bf16 %v688, %v687
        %v720 = vpack.c.bf16 %v690, %v689
        %v721 = vpack.c.bf16 %v692, %v691
        %v722 = vpack.c.bf16 %v694, %v693
        %v723 = vpack.c.bf16 %v696, %v695
        %v724 = vpack.c.bf16 %v698, %v697
        %v725 = vpack.c.bf16 %v700, %v699
        %v726 = vpack.c.bf16 %v702, %v701
        %v727 = vpack.c.bf16 %v704, %v703
        %v728 = vpack.c.bf16 %v706, %v705
        %v729 = vpack.c.bf16 %v708, %v707
        %v730 = vpack.c.bf16 %v710, %v709
        %v731 = vpack.c.bf16 %v712, %v711
        %v732 = vpack.c.bf16 %v714, %v713
        %v733 = vpack.c.bf16 %v716, %v715
        %v734 = vpack.c.bf16 %v718, %v717
        %v735 = vld [vmem:[#allocation8] sm:$0xff]
        %v736 = vld [vmem:[#allocation8 + $0x8] sm:$0xff]
        %v737 = vld [vmem:[#allocation8 + $0x10] sm:$0xff]
        %v738 = vld [vmem:[#allocation8 + $0x18] sm:$0xff]
        %v739 = vld [vmem:[#allocation8 + $0x20] sm:$0xf]
        %v740 = vld [vmem:[#allocation8 + $0x24] sm:$0xff]
        %v741 = vld [vmem:[#allocation8 + $0x2c] sm:$0xff]
        %v742 = vld [vmem:[#allocation8 + $0x34] sm:$0xff]
        %v743 = vld [vmem:[#allocation8 + $0x3c] sm:$0xff]
        %v744 = vld [vmem:[#allocation8 + $0x44] sm:$0xf]
        %v745 = vld [vmem:[#allocation8 + $0x48] sm:$0xff]
        %v746 = vld [vmem:[#allocation8 + $0x50] sm:$0xff]
        %v747 = vld [vmem:[#allocation8 + $0x58] sm:$0xff]
        %v748 = vld [vmem:[#allocation8 + $0x60] sm:$0xff]
        %v749 = vld [vmem:[#allocation8 + $0x68] sm:$0xf]
        %v750 = vld [vmem:[#allocation8 + $0x6c] sm:$0xff]
        %v751 = vld [vmem:[#allocation8 + $0x74] sm:$0xff]
        %v752 = vld [vmem:[#allocation8 + $0x7c] sm:$0xff]
        %v753 = vld [vmem:[#allocation8 + $0x84] sm:$0xff]
        %v754 = vld [vmem:[#allocation8 + $0x8c] sm:$0xf]
        %v775 = vunpack.c.l.b16 %v735
        %v776 = vunpack.c.h.b16 %v735
        %v777 = vunpack.c.l.b16 %v736
        %v778 = vunpack.c.h.b16 %v736
        %v779 = vunpack.c.l.b16 %v737
        %v780 = vunpack.c.h.b16 %v737
        %v781 = vunpack.c.l.b16 %v738
        %v782 = vunpack.c.h.b16 %v738
        %v783 = vunpack.c.l.b16 %v739
        %v784 = vunpack.c.l.b16 %v740
        %v785 = vunpack.c.h.b16 %v740
        %v786 = vunpack.c.l.b16 %v741
        %v787 = vunpack.c.h.b16 %v741
        %v788 = vunpack.c.l.b16 %v742
        %v789 = vunpack.c.h.b16 %v742
        %v790 = vunpack.c.l.b16 %v743
        %v791 = vunpack.c.h.b16 %v743
        %v792 = vunpack.c.l.b16 %v744
        %v793 = vunpack.c.l.b16 %v745
        %v794 = vunpack.c.h.b16 %v745
        %v795 = vunpack.c.l.b16 %v746
        %v796 = vunpack.c.h.b16 %v746
        %v797 = vunpack.c.l.b16 %v747
        %v798 = vunpack.c.h.b16 %v747
        %v799 = vunpack.c.l.b16 %v748
        %v800 = vunpack.c.h.b16 %v748
        %v801 = vunpack.c.l.b16 %v749
        %v802 = vunpack.c.l.b16 %v750
        %v803 = vunpack.c.h.b16 %v750
        %v804 = vunpack.c.l.b16 %v751
        %v805 = vunpack.c.h.b16 %v751
        %v806 = vunpack.c.l.b16 %v752
        %v807 = vunpack.c.h.b16 %v752
        %v808 = vunpack.c.l.b16 %v753
        %v809 = vunpack.c.h.b16 %v753
        %v810 = vunpack.c.l.b16 %v754
        %v811 = vpack.c.b16 %v784, %v775
        %v812 = vpack.c.b16 %v785, %v776
        %v813 = vpack.c.b16 %v786, %v777
        %v814 = vpack.c.b16 %v787, %v778
        %v815 = vpack.c.b16 %v788, %v779
        %v816 = vpack.c.b16 %v789, %v780
        %v817 = vpack.c.b16 %v790, %v781
        %v818 = vpack.c.b16 %v791, %v782
        %v819 = vpack.c.b16 %v792, %v783
        %v820 = vpack.c.b16 %v802, %v793
        %v821 = vpack.c.b16 %v803, %v794
        %v822 = vpack.c.b16 %v804, %v795
        %v823 = vpack.c.b16 %v805, %v796
        %v824 = vpack.c.b16 %v806, %v797
        %v825 = vpack.c.b16 %v807, %v798
        %v826 = vpack.c.b16 %v808, %v799
        %v827 = vpack.c.b16 %v809, %v800
        %v828 = vpack.c.b16 %v810, %v801
        %vm847 = vcmask 261120
        %v849 = vsel %vm847, %v719, 0
        %v852 = vsel %vm847, %v720, 0
        %v855 = vsel %vm847, %v721, 0
        %v858 = vsel %vm847, %v722, 0
        %v861 = vsel %vm847, %v723, 0
        %v864 = vsel %vm847, %v724, 0
        %v867 = vsel %vm847, %v725, 0
        %v870 = vsel %vm847, %v726, 0
        %v873 = vsel %vm847, %v727, 0
        %v876 = vsel %vm847, %v728, 0
        %v879 = vsel %vm847, %v729, 0
        %v882 = vsel %vm847, %v730, 0
        %v885 = vsel %vm847, %v731, 0
        %v888 = vsel %vm847, %v732, 0
        %v891 = vsel %vm847, %v733, 0
        %v894 = vsel %vm847, %v734, 0
        %896 = vmatprep.subr.bf16.mxu0 %v812
        %897 = vmatpush1.bf16.msra.mxu0 %v811
        %898 = vmatprep.subr.bf16.mxu0 %v821
        %899 = vmatpush1.bf16.msra.mxu0 %v820
        %900 = vmatprep.subr.bf16.mxu0 0
        %901 = vmatpush1.bf16.msra.mxu0 0
        %902 = vmatprep.subr.bf16.mxu0 0
        %903 = vmatpush1.bf16.msra.mxu0 0
        %904 = vmatprep.subr.bf16.mxu0 0
        %905 = vmatpush1.bf16.msra.mxu0 0
        %906 = vmatprep.subr.bf16.mxu0 0
        %907 = vmatpush1.bf16.msra.mxu0 0
        %908 = vmatprep.subr.bf16.mxu0 0
        %909 = vmatpush1.bf16.msra.mxu0 0
        %910 = vmatprep.subr.bf16.mxu0 0
        %911 = vmatpush1.bf16.msra.mxu0 0
        %912 = vmatprep.subr.bf16.mxu0 0
        %913 = vmatpush1.bf16.msra.mxu0 0
        %914 = vmatprep.subr.bf16.mxu0 0
        %915 = vmatpush1.bf16.msra.mxu0 0
        %916 = vmatprep.subr.bf16.mxu0 0
        %917 = vmatpush1.bf16.msra.mxu0 0
        %918 = vmatprep.subr.bf16.mxu0 0
        %919 = vmatpush1.bf16.msra.mxu0 0
        %920 = vmatprep.subr.bf16.mxu0 0
        %921 = vmatpush1.bf16.msra.mxu0 0
        %922 = vmatprep.subr.bf16.mxu0 0
        %923 = vmatpush1.bf16.msra.mxu0 0
        %924 = vmatprep.subr.bf16.mxu0 0
        %925 = vmatpush1.bf16.msra.mxu0 0
        %926 = vmatprep.subr.bf16.mxu0 0
        %927 = vmatpush1.bf16.msra.mxu0 0
        %928 = vmatprep.mubr.bf16.mxu0 0
        %929 = vmatmul.mubr.bf16.gmra.mrb[0].mxu0 %v849
        %v930 = vpop.f32.mrb[0].mxu0
        %v931 = vadd.f32 0.0, %v930
        %v932 = vpop.f32.mrb[0].mxu0
        %v933 = vadd.f32 0.0, %v932
        %v934 = vpop.f32.mrb[0].mxu0
        %v935 = vadd.f32 0.0, %v934
        %v936 = vpop.f32.mrb[0].mxu0
        %v937 = vadd.f32 0.0, %v936
        %938 = vmatprep.mubr.bf16.mxu0 0
        %939 = vmatmul.mubr.bf16.gmra.mrb[0].mxu0 %v852
        %v940 = vpop.f32.mrb[0].mxu0
        %v941 = vadd.f32 0.0, %v940
        %v942 = vpop.f32.mrb[0].mxu0
        %v943 = vadd.f32 0.0, %v942
        %v944 = vpop.f32.mrb[0].mxu0
        %v945 = vadd.f32 0.0, %v944
        %v946 = vpop.f32.mrb[0].mxu0
        %v947 = vadd.f32 0.0, %v946
        %948 = vmatprep.mubr.bf16.mxu0 0
        %949 = vmatmul.mubr.bf16.gmra.mrb[0].mxu0 %v855
        %v950 = vpop.f32.mrb[0].mxu0
        %v951 = vadd.f32 0.0, %v950
        %v952 = vpop.f32.mrb[0].mxu0
        %v953 = vadd.f32 0.0, %v952
        %v954 = vpop.f32.mrb[0].mxu0
        %v955 = vadd.f32 0.0, %v954
        %v956 = vpop.f32.mrb[0].mxu0
        %v957 = vadd.f32 0.0, %v956
        %958 = vmatprep.mubr.bf16.mxu0 0
        %959 = vmatmul.mubr.bf16.gmra.mrb[0].mxu0 %v858
        %v960 = vpop.f32.mrb[0].mxu0
        %v961 = vadd.f32 0.0, %v960
        %v962 = vpop.f32.mrb[0].mxu0
        %v963 = vadd.f32 0.0, %v962
        %v964 = vpop.f32.mrb[0].mxu0
        %v965 = vadd.f32 0.0, %v964
        %v966 = vpop.f32.mrb[0].mxu0
        %v967 = vadd.f32 0.0, %v966
        %968 = vmatprep.mubr.bf16.mxu0 0
        %969 = vmatmul.mubr.bf16.gmra.mrb[0].mxu0 %v861
        %v970 = vpop.f32.mrb[0].mxu0
        %v971 = vadd.f32 0.0, %v970
        %v972 = vpop.f32.mrb[0].mxu0
        %v973 = vadd.f32 0.0, %v972
        %v974 = vpop.f32.mrb[0].mxu0
        %v975 = vadd.f32 0.0, %v974
        %v976 = vpop.f32.mrb[0].mxu0
        %v977 = vadd.f32 0.0, %v976
        %978 = vmatprep.mubr.bf16.mxu0 0
        %979 = vmatmul.mubr.bf16.gmra.mrb[0].mxu0 %v864
        %v980 = vpop.f32.mrb[0].mxu0
        %v981 = vadd.f32 0.0, %v980
        %v982 = vpop.f32.mrb[0].mxu0
        %v983 = vadd.f32 0.0, %v982
        %v984 = vpop.f32.mrb[0].mxu0
        %v985 = vadd.f32 0.0, %v984
        %v986 = vpop.f32.mrb[0].mxu0
        %v987 = vadd.f32 0.0, %v986
        %988 = vmatprep.mubr.bf16.mxu0 0
        %989 = vmatmul.mubr.bf16.gmra.mrb[0].mxu0 %v867
        %v990 = vpop.f32.mrb[0].mxu0
        %v991 = vadd.f32 0.0, %v990
        %v992 = vpop.f32.mrb[0].mxu0
        %v993 = vadd.f32 0.0, %v992
        %v994 = vpop.f32.mrb[0].mxu0
        %v995 = vadd.f32 0.0, %v994
        %v996 = vpop.f32.mrb[0].mxu0
        %v997 = vadd.f32 0.0, %v996
        %998 = vmatprep.mubr.bf16.mxu0 0
        %999 = vmatmul.mubr.bf16.gmra.mrb[0].mxu0 %v870
        %v1000 = vpop.f32.mrb[0].mxu0
        %v1001 = vadd.f32 0.0, %v1000
        %v1002 = vpop.f32.mrb[0].mxu0
        %v1003 = vadd.f32 0.0, %v1002
        %v1004 = vpop.f32.mrb[0].mxu0
        %v1005 = vadd.f32 0.0, %v1004
        %v1006 = vpop.f32.mrb[0].mxu0
        %v1007 = vadd.f32 0.0, %v1006
        %1008 = vmatprep.mubr.bf16.mxu0 0
        %1009 = vmatmul.mubr.bf16.gmra.mrb[0].mxu0 %v873
        %v1010 = vpop.f32.mrb[0].mxu0
        %v1011 = vadd.f32 0.0, %v1010
        %v1012 = vpop.f32.mrb[0].mxu0
        %v1013 = vadd.f32 0.0, %v1012
        %v1014 = vpop.f32.mrb[0].mxu0
        %v1015 = vadd.f32 0.0, %v1014
        %v1016 = vpop.f32.mrb[0].mxu0
        %v1017 = vadd.f32 0.0, %v1016
        %1018 = vmatprep.mubr.bf16.mxu0 0
        %1019 = vmatmul.mubr.bf16.gmra.mrb[0].mxu0 %v876
        %v1020 = vpop.f32.mrb[0].mxu0
        %v1021 = vadd.f32 0.0, %v1020
        %v1022 = vpop.f32.mrb[0].mxu0
        %v1023 = vadd.f32 0.0, %v1022
        %v1024 = vpop.f32.mrb[0].mxu0
        %v1025 = vadd.f32 0.0, %v1024
        %v1026 = vpop.f32.mrb[0].mxu0
        %v1027 = vadd.f32 0.0, %v1026
        %1028 = vmatprep.mubr.bf16.mxu0 0
        %1029 = vmatmul.mubr.bf16.gmra.mrb[0].mxu0 %v879
        %v1030 = vpop.f32.mrb[0].mxu0
        %v1031 = vadd.f32 0.0, %v1030
        %v1032 = vpop.f32.mrb[0].mxu0
        %v1033 = vadd.f32 0.0, %v1032
        %v1034 = vpop.f32.mrb[0].mxu0
        %v1035 = vadd.f32 0.0, %v1034
        %v1036 = vpop.f32.mrb[0].mxu0
        %v1037 = vadd.f32 0.0, %v1036
        %1038 = vmatprep.mubr.bf16.mxu0 0
        %1039 = vmatmul.mubr.bf16.gmra.mrb[0].mxu0 %v882
        %v1040 = vpop.f32.mrb[0].mxu0
        %v1041 = vadd.f32 0.0, %v1040
        %v1042 = vpop.f32.mrb[0].mxu0
        %v1043 = vadd.f32 0.0, %v1042
        %v1044 = vpop.f32.mrb[0].mxu0
        %v1045 = vadd.f32 0.0, %v1044
        %v1046 = vpop.f32.mrb[0].mxu0
        %v1047 = vadd.f32 0.0, %v1046
        %1048 = vmatprep.mubr.bf16.mxu0 0
        %1049 = vmatmul.mubr.bf16.gmra.mrb[0].mxu0 %v885
        %v1050 = vpop.f32.mrb[0].mxu0
        %v1051 = vadd.f32 0.0, %v1050
        %v1052 = vpop.f32.mrb[0].mxu0
        %v1053 = vadd.f32 0.0, %v1052
        %v1054 = vpop.f32.mrb[0].mxu0
        %v1055 = vadd.f32 0.0, %v1054
        %v1056 = vpop.f32.mrb[0].mxu0
        %v1057 = vadd.f32 0.0, %v1056
        %1058 = vmatprep.mubr.bf16.mxu0 0
        %1059 = vmatmul.mubr.bf16.gmra.mrb[0].mxu0 %v888
        %v1060 = vpop.f32.mrb[0].mxu0
        %v1061 = vadd.f32 0.0, %v1060
        %v1062 = vpop.f32.mrb[0].mxu0
        %v1063 = vadd.f32 0.0, %v1062
        %v1064 = vpop.f32.mrb[0].mxu0
        %v1065 = vadd.f32 0.0, %v1064
        %v1066 = vpop.f32.mrb[0].mxu0
        %v1067 = vadd.f32 0.0, %v1066
        %1068 = vmatprep.mubr.bf16.mxu0 0
        %1069 = vmatmul.mubr.bf16.gmra.mrb[0].mxu0 %v891
        %v1070 = vpop.f32.mrb[0].mxu0
        %v1071 = vadd.f32 0.0, %v1070
        %v1072 = vpop.f32.mrb[0].mxu0
        %v1073 = vadd.f32 0.0, %v1072
        %v1074 = vpop.f32.mrb[0].mxu0
        %v1075 = vadd.f32 0.0, %v1074
        %v1076 = vpop.f32.mrb[0].mxu0
        %v1077 = vadd.f32 0.0, %v1076
        %1078 = vmatprep.mubr.bf16.mxu0 0
        %1079 = vmatmul.mubr.bf16.gmra.mrb[0].mxu0 %v894
        %v1080 = vpop.f32.mrb[0].mxu0
        %v1081 = vpop.f32.mrb[0].mxu0
        %v1082 = vpop.f32.mrb[0].mxu0
        %v1083 = vpop.f32.mrb[0].mxu0
        %1084 = vdwg.mxu0
        %1085 = vmatprep.subr.bf16.mxu0 %v814
        %1086 = vmatpush1.bf16.msra.mxu0 %v813
        %1087 = vmatprep.subr.bf16.mxu0 %v823
        %1088 = vmatpush1.bf16.msra.mxu0 %v822
        %1089 = vmatprep.subr.bf16.mxu0 0
        %1090 = vmatpush1.bf16.msra.mxu0 0
        %1091 = vmatprep.subr.bf16.mxu0 0
        %1092 = vmatpush1.bf16.msra.mxu0 0
        %1093 = vmatprep.subr.bf16.mxu0 0
        %1094 = vmatpush1.bf16.msra.mxu0 0
        %1095 = vmatprep.subr.bf16.mxu0 0
        %1096 = vmatpush1.bf16.msra.mxu0 0
        %1097 = vmatprep.subr.bf16.mxu0 0
        %1098 = vmatpush1.bf16.msra.mxu0 0
        %1099 = vmatprep.subr.bf16.mxu0 0
        %1100 = vmatpush1.bf16.msra.mxu0 0
        %1101 = vmatprep.subr.bf16.mxu0 0
        %1102 = vmatpush1.bf16.msra.mxu0 0
        %1103 = vmatprep.subr.bf16.mxu0 0
        %1104 = vmatpush1.bf16.msra.mxu0 0
        %1105 = vmatprep.subr.bf16.mxu0 0
        %1106 = vmatpush1.bf16.msra.mxu0 0
        %1107 = vmatprep.subr.bf16.mxu0 0
        %1108 = vmatpush1.bf16.msra.mxu0 0
        %1109 = vmatprep.subr.bf16.mxu0 0
        %1110 = vmatpush1.bf16.msra.mxu0 0
        %1111 = vmatprep.subr.bf16.mxu0 0
        %1112 = vmatpush1.bf16.msra.mxu0 0
        %1113 = vmatprep.subr.bf16.mxu0 0
        %1114 = vmatpush1.bf16.msra.mxu0 0
        %1115 = vmatprep.subr.bf16.mxu0 0
        %1116 = vmatpush1.bf16.msra.mxu0 0
        %1117 = vmatprep.mubr.bf16.mxu0 0
        %1118 = vmatmul.mubr.bf16.gmra.mrb[0].mxu0 %v849
        %v1119 = vpop.f32.mrb[0].mxu0
        %v1120 = vadd.f32 0.0, %v1119
        %v1121 = vpop.f32.mrb[0].mxu0
        %v1122 = vadd.f32 0.0, %v1121
        %v1123 = vpop.f32.mrb[0].mxu0
        %v1124 = vadd.f32 0.0, %v1123
        %v1125 = vpop.f32.mrb[0].mxu0
        %v1126 = vadd.f32 0.0, %v1125
        %1127 = vmatprep.mubr.bf16.mxu0 0
        %1128 = vmatmul.mubr.bf16.gmra.mrb[0].mxu0 %v852
        %v1129 = vpop.f32.mrb[0].mxu0
        %v1130 = vadd.f32 0.0, %v1129
        %v1131 = vpop.f32.mrb[0].mxu0
        %v1132 = vadd.f32 0.0, %v1131
        %v1133 = vpop.f32.mrb[0].mxu0
        %v1134 = vadd.f32 0.0, %v1133
        %v1135 = vpop.f32.mrb[0].mxu0
        %v1136 = vadd.f32 0.0, %v1135
        %1137 = vmatprep.mubr.bf16.mxu0 0
        %1138 = vmatmul.mubr.bf16.gmra.mrb[0].mxu0 %v855
        %v1139 = vpop.f32.mrb[0].mxu0
        %v1140 = vadd.f32 0.0, %v1139
        %v1141 = vpop.f32.mrb[0].mxu0
        %v1142 = vadd.f32 0.0, %v1141
        %v1143 = vpop.f32.mrb[0].mxu0
        %v1144 = vadd.f32 0.0, %v1143
        %v1145 = vpop.f32.mrb[0].mxu0
        %v1146 = vadd.f32 0.0, %v1145
        %1147 = vmatprep.mubr.bf16.mxu0 0
        %1148 = vmatmul.mubr.bf16.gmra.mrb[0].mxu0 %v858
        %v1149 = vpop.f32.mrb[0].mxu0
        %v1150 = vadd.f32 0.0, %v1149
        %v1151 = vpop.f32.mrb[0].mxu0
        %v1152 = vadd.f32 0.0, %v1151
        %v1153 = vpop.f32.mrb[0].mxu0
        %v1154 = vadd.f32 0.0, %v1153
        %v1155 = vpop.f32.mrb[0].mxu0
        %v1156 = vadd.f32 0.0, %v1155
        %1157 = vmatprep.mubr.bf16.mxu0 0
        %1158 = vmatmul.mubr.bf16.gmra.mrb[0].mxu0 %v861
        %v1159 = vpop.f32.mrb[0].mxu0
        %v1160 = vadd.f32 0.0, %v1159
        %v1161 = vpop.f32.mrb[0].mxu0
        %v1162 = vadd.f32 0.0, %v1161
        %v1163 = vpop.f32.mrb[0].mxu0
        %v1164 = vadd.f32 0.0, %v1163
        %v1165 = vpop.f32.mrb[0].mxu0
        %v1166 = vadd.f32 0.0, %v1165
        %1167 = vmatprep.mubr.bf16.mxu0 0
        %1168 = vmatmul.mubr.bf16.gmra.mrb[0].mxu0 %v864
        %v1169 = vpop.f32.mrb[0].mxu0
        %v1170 = vadd.f32 0.0, %v1169
        %v1171 = vpop.f32.mrb[0].mxu0
        %v1172 = vadd.f32 0.0, %v1171
        %v1173 = vpop.f32.mrb[0].mxu0
        %v1174 = vadd.f32 0.0, %v1173
        %v1175 = vpop.f32.mrb[0].mxu0
        %v1176 = vadd.f32 0.0, %v1175
        %1177 = vmatprep.mubr.bf16.mxu0 0
        %1178 = vmatmul.mubr.bf16.gmra.mrb[0].mxu0 %v867
        %v1179 = vpop.f32.mrb[0].mxu0
        %v1180 = vadd.f32 0.0, %v1179
        %v1181 = vpop.f32.mrb[0].mxu0
        %v1182 = vadd.f32 0.0, %v1181
        %v1183 = vpop.f32.mrb[0].mxu0
        %v1184 = vadd.f32 0.0, %v1183
        %v1185 = vpop.f32.mrb[0].mxu0
        %v1186 = vadd.f32 0.0, %v1185
        %1187 = vmatprep.mubr.bf16.mxu0 0
        %1188 = vmatmul.mubr.bf16.gmra.mrb[0].mxu0 %v870
        %v1189 = vpop.f32.mrb[0].mxu0
        %v1190 = vadd.f32 0.0, %v1189
        %v1191 = vpop.f32.mrb[0].mxu0
        %v1192 = vadd.f32 0.0, %v1191
        %v1193 = vpop.f32.mrb[0].mxu0
        %v1194 = vadd.f32 0.0, %v1193
        %v1195 = vpop.f32.mrb[0].mxu0
        %v1196 = vadd.f32 0.0, %v1195
        %1197 = vmatprep.mubr.bf16.mxu0 0
        %1198 = vmatmul.mubr.bf16.gmra.mrb[0].mxu0 %v873
        %v1199 = vpop.f32.mrb[0].mxu0
        %v1200 = vadd.f32 0.0, %v1199
        %v1201 = vpop.f32.mrb[0].mxu0
        %v1202 = vadd.f32 0.0, %v1201
        %v1203 = vpop.f32.mrb[0].mxu0
        %v1204 = vadd.f32 0.0, %v1203
        %v1205 = vpop.f32.mrb[0].mxu0
        %v1206 = vadd.f32 0.0, %v1205
        %1207 = vmatprep.mubr.bf16.mxu0 0
        %1208 = vmatmul.mubr.bf16.gmra.mrb[0].mxu0 %v876
        %v1209 = vpop.f32.mrb[0].mxu0
        %v1210 = vadd.f32 0.0, %v1209
        %v1211 = vpop.f32.mrb[0].mxu0
        %v1212 = vadd.f32 0.0, %v1211
        %v1213 = vpop.f32.mrb[0].mxu0
        %v1214 = vadd.f32 0.0, %v1213
        %v1215 = vpop.f32.mrb[0].mxu0
        %v1216 = vadd.f32 0.0, %v1215
        %1217 = vmatprep.mubr.bf16.mxu0 0
        %1218 = vmatmul.mubr.bf16.gmra.mrb[0].mxu0 %v879
        %v1219 = vpop.f32.mrb[0].mxu0
        %v1220 = vadd.f32 0.0, %v1219
        %v1221 = vpop.f32.mrb[0].mxu0
        %v1222 = vadd.f32 0.0, %v1221
        %v1223 = vpop.f32.mrb[0].mxu0
        %v1224 = vadd.f32 0.0, %v1223
        %v1225 = vpop.f32.mrb[0].mxu0
        %v1226 = vadd.f32 0.0, %v1225
        %1227 = vmatprep.mubr.bf16.mxu0 0
        %1228 = vmatmul.mubr.bf16.gmra.mrb[0].mxu0 %v882
        %v1229 = vpop.f32.mrb[0].mxu0
        %v1230 = vadd.f32 0.0, %v1229
        %v1231 = vpop.f32.mrb[0].mxu0
        %v1232 = vadd.f32 0.0, %v1231
        %v1233 = vpop.f32.mrb[0].mxu0
        %v1234 = vadd.f32 0.0, %v1233
        %v1235 = vpop.f32.mrb[0].mxu0
        %v1236 = vadd.f32 0.0, %v1235
        %1237 = vmatprep.mubr.bf16.mxu0 0
        %1238 = vmatmul.mubr.bf16.gmra.mrb[0].mxu0 %v885
        %v1239 = vpop.f32.mrb[0].mxu0
        %v1240 = vadd.f32 0.0, %v1239
        %v1241 = vpop.f32.mrb[0].mxu0
        %v1242 = vadd.f32 0.0, %v1241
        %v1243 = vpop.f32.mrb[0].mxu0
        %v1244 = vadd.f32 0.0, %v1243
        %v1245 = vpop.f32.mrb[0].mxu0
        %v1246 = vadd.f32 0.0, %v1245
        %1247 = vmatprep.mubr.bf16.mxu0 0
        %1248 = vmatmul.mubr.bf16.gmra.mrb[0].mxu0 %v888
        %v1249 = vpop.f32.mrb[0].mxu0
        %v1250 = vadd.f32 0.0, %v1249
        %v1251 = vpop.f32.mrb[0].mxu0
        %v1252 = vadd.f32 0.0, %v1251
        %v1253 = vpop.f32.mrb[0].mxu0
        %v1254 = vadd.f32 0.0, %v1253
        %v1255 = vpop.f32.mrb[0].mxu0
        %v1256 = vadd.f32 0.0, %v1255
        %1257 = vmatprep.mubr.bf16.mxu0 0
        %1258 = vmatmul.mubr.bf16.gmra.mrb[0].mxu0 %v891
        %v1259 = vpop.f32.mrb[0].mxu0
        %v1260 = vadd.f32 0.0, %v1259
        %v1261 = vpop.f32.mrb[0].mxu0
        %v1262 = vadd.f32 0.0, %v1261
        %v1263 = vpop.f32.mrb[0].mxu0
        %v1264 = vadd.f32 0.0, %v1263
        %v1265 = vpop.f32.mrb[0].mxu0
        %v1266 = vadd.f32 0.0, %v1265
        %1267 = vmatprep.mubr.bf16.mxu0 0
        %1268 = vmatmul.mubr.bf16.gmra.mrb[0].mxu0 %v894
        %v1269 = vpop.f32.mrb[0].mxu0
        %v1270 = vpop.f32.mrb[0].mxu0
        %v1271 = vadd.f32 0.0, %v1270
        %v1272 = vpop.f32.mrb[0].mxu0
        %v1273 = vpop.f32.mrb[0].mxu0
        %v1274 = vadd.f32 0.0, %v1273
        %1275 = vdwg.mxu0
        %1276 = vmatprep.subr.bf16.mxu0 %v816
        %1277 = vmatpush1.bf16.msra.mxu0 %v815
        %1278 = vmatprep.subr.bf16.mxu0 %v825
        %1279 = vmatpush1.bf16.msra.mxu0 %v824
        %1280 = vmatprep.subr.bf16.mxu0 0
        %1281 = vmatpush1.bf16.msra.mxu0 0
        %1282 = vmatprep.subr.bf16.mxu0 0
        %1283 = vmatpush1.bf16.msra.mxu0 0
        %1284 = vmatprep.subr.bf16.mxu0 0
        %1285 = vmatpush1.bf16.msra.mxu0 0
        %1286 = vmatprep.subr.bf16.mxu0 0
        %1287 = vmatpush1.bf16.msra.mxu0 0
        %1288 = vmatprep.subr.bf16.mxu0 0
        %1289 = vmatpush1.bf16.msra.mxu0 0
        %1290 = vmatprep.subr.bf16.mxu0 0
        %1291 = vmatpush1.bf16.msra.mxu0 0
        %1292 = vmatprep.subr.bf16.mxu0 0
        %1293 = vmatpush1.bf16.msra.mxu0 0
        %1294 = vmatprep.subr.bf16.mxu0 0
        %1295 = vmatpush1.bf16.msra.mxu0 0
        %1296 = vmatprep.subr.bf16.mxu0 0
        %1297 = vmatpush1.bf16.msra.mxu0 0
        %1298 = vmatprep.subr.bf16.mxu0 0
        %1299 = vmatpush1.bf16.msra.mxu0 0
        %1300 = vmatprep.subr.bf16.mxu0 0
        %1301 = vmatpush1.bf16.msra.mxu0 0
        %1302 = vmatprep.subr.bf16.mxu0 0
        %1303 = vmatpush1.bf16.msra.mxu0 0
        %1304 = vmatprep.subr.bf16.mxu0 0
        %1305 = vmatpush1.bf16.msra.mxu0 0
        %1306 = vmatprep.subr.bf16.mxu0 0
        %1307 = vmatpush1.bf16.msra.mxu0 0
        %1308 = vmatprep.mubr.bf16.mxu0 0
        %1309 = vmatmul.mubr.bf16.gmra.mrb[0].mxu0 %v849
        %v1310 = vpop.f32.mrb[0].mxu0
        %v1311 = vadd.f32 0.0, %v1310
        %v1312 = vpop.f32.mrb[0].mxu0
        %v1313 = vadd.f32 0.0, %v1312
        %v1314 = vpop.f32.mrb[0].mxu0
        %v1315 = vadd.f32 0.0, %v1314
        %v1316 = vpop.f32.mrb[0].mxu0
        %v1317 = vadd.f32 0.0, %v1316
        %1318 = vmatprep.mubr.bf16.mxu0 0
        %1319 = vmatmul.mubr.bf16.gmra.mrb[0].mxu0 %v852
        %v1320 = vpop.f32.mrb[0].mxu0
        %v1321 = vadd.f32 0.0, %v1320
        %v1322 = vpop.f32.mrb[0].mxu0
        %v1323 = vadd.f32 0.0, %v1322
        %v1324 = vpop.f32.mrb[0].mxu0
        %v1325 = vadd.f32 0.0, %v1324
        %v1326 = vpop.f32.mrb[0].mxu0
        %v1327 = vadd.f32 0.0, %v1326
        %1328 = vmatprep.mubr.bf16.mxu0 0
        %1329 = vmatmul.mubr.bf16.gmra.mrb[0].mxu0 %v855
        %v1330 = vpop.f32.mrb[0].mxu0
        %v1331 = vadd.f32 0.0, %v1330
        %v1332 = vpop.f32.mrb[0].mxu0
        %v1333 = vadd.f32 0.0, %v1332
        %v1334 = vpop.f32.mrb[0].mxu0
        %v1335 = vadd.f32 0.0, %v1334
        %v1336 = vpop.f32.mrb[0].mxu0
        %v1337 = vadd.f32 0.0, %v1336
        %1338 = vmatprep.mubr.bf16.mxu0 0
        %1339 = vmatmul.mubr.bf16.gmra.mrb[0].mxu0 %v858
        %v1340 = vpop.f32.mrb[0].mxu0
        %v1341 = vadd.f32 0.0, %v1340
        %v1342 = vpop.f32.mrb[0].mxu0
        %v1343 = vadd.f32 0.0, %v1342
        %v1344 = vpop.f32.mrb[0].mxu0
        %v1345 = vadd.f32 0.0, %v1344
        %v1346 = vpop.f32.mrb[0].mxu0
        %v1347 = vadd.f32 0.0, %v1346
        %1348 = vmatprep.mubr.bf16.mxu0 0
        %1349 = vmatmul.mubr.bf16.gmra.mrb[0].mxu0 %v861
        %v1350 = vpop.f32.mrb[0].mxu0
        %v1351 = vadd.f32 0.0, %v1350
        %v1352 = vpop.f32.mrb[0].mxu0
        %v1353 = vadd.f32 0.0, %v1352
        %v1354 = vpop.f32.mrb[0].mxu0
        %v1355 = vadd.f32 0.0, %v1354
        %v1356 = vpop.f32.mrb[0].mxu0
        %v1357 = vadd.f32 0.0, %v1356
        %1358 = vmatprep.mubr.bf16.mxu0 0
        %1359 = vmatmul.mubr.bf16.gmra.mrb[0].mxu0 %v864
        %v1360 = vpop.f32.mrb[0].mxu0
        %v1361 = vadd.f32 0.0, %v1360
        %v1362 = vpop.f32.mrb[0].mxu0
        %v1363 = vadd.f32 0.0, %v1362
        %v1364 = vpop.f32.mrb[0].mxu0
        %v1365 = vadd.f32 0.0, %v1364
        %v1366 = vpop.f32.mrb[0].mxu0
        %v1367 = vadd.f32 0.0, %v1366
        %1368 = vmatprep.mubr.bf16.mxu0 0
        %1369 = vmatmul.mubr.bf16.gmra.mrb[0].mxu0 %v867
        %v1370 = vpop.f32.mrb[0].mxu0
        %v1371 = vadd.f32 0.0, %v1370
        %v1372 = vpop.f32.mrb[0].mxu0
        %v1373 = vadd.f32 0.0, %v1372
        %v1374 = vpop.f32.mrb[0].mxu0
        %v1375 = vadd.f32 0.0, %v1374
        %v1376 = vpop.f32.mrb[0].mxu0
        %v1377 = vadd.f32 0.0, %v1376
        %1378 = vmatprep.mubr.bf16.mxu0 0
        %1379 = vmatmul.mubr.bf16.gmra.mrb[0].mxu0 %v870
        %v1380 = vpop.f32.mrb[0].mxu0
        %v1381 = vadd.f32 0.0, %v1380
        %v1382 = vpop.f32.mrb[0].mxu0
        %v1383 = vadd.f32 0.0, %v1382
        %v1384 = vpop.f32.mrb[0].mxu0
        %v1385 = vadd.f32 0.0, %v1384
        %v1386 = vpop.f32.mrb[0].mxu0
        %v1387 = vadd.f32 0.0, %v1386
        %1388 = vmatprep.mubr.bf16.mxu0 0
        %1389 = vmatmul.mubr.bf16.gmra.mrb[0].mxu0 %v873
        %v1390 = vpop.f32.mrb[0].mxu0
        %v1391 = vadd.f32 0.0, %v1390
        %v1392 = vpop.f32.mrb[0].mxu0
        %v1393 = vadd.f32 0.0, %v1392
        %v1394 = vpop.f32.mrb[0].mxu0
        %v1395 = vadd.f32 0.0, %v1394
        %v1396 = vpop.f32.mrb[0].mxu0
        %v1397 = vadd.f32 0.0, %v1396
        %1398 = vmatprep.mubr.bf16.mxu0 0
        %1399 = vmatmul.mubr.bf16.gmra.mrb[0].mxu0 %v876
        %v1400 = vpop.f32.mrb[0].mxu0
        %v1401 = vadd.f32 0.0, %v1400
        %v1402 = vpop.f32.mrb[0].mxu0
        %v1403 = vadd.f32 0.0, %v1402
        %v1404 = vpop.f32.mrb[0].mxu0
        %v1405 = vadd.f32 0.0, %v1404
        %v1406 = vpop.f32.mrb[0].mxu0
        %v1407 = vadd.f32 0.0, %v1406
        %1408 = vmatprep.mubr.bf16.mxu0 0
        %1409 = vmatmul.mubr.bf16.gmra.mrb[0].mxu0 %v879
        %v1410 = vpop.f32.mrb[0].mxu0
        %v1411 = vadd.f32 0.0, %v1410
        %v1412 = vpop.f32.mrb[0].mxu0
        %v1413 = vadd.f32 0.0, %v1412
        %v1414 = vpop.f32.mrb[0].mxu0
        %v1415 = vadd.f32 0.0, %v1414
        %v1416 = vpop.f32.mrb[0].mxu0
        %v1417 = vadd.f32 0.0, %v1416
        %1418 = vmatprep.mubr.bf16.mxu0 0
        %1419 = vmatmul.mubr.bf16.gmra.mrb[0].mxu0 %v882
        %v1420 = vpop.f32.mrb[0].mxu0
        %v1421 = vadd.f32 0.0, %v1420
        %v1422 = vpop.f32.mrb[0].mxu0
        %v1423 = vadd.f32 0.0, %v1422
        %v1424 = vpop.f32.mrb[0].mxu0
        %v1425 = vadd.f32 0.0, %v1424
        %v1426 = vpop.f32.mrb[0].mxu0
        %v1427 = vadd.f32 0.0, %v1426
        %1428 = vmatprep.mubr.bf16.mxu0 0
        %1429 = vmatmul.mubr.bf16.gmra.mrb[0].mxu0 %v885
        %v1430 = vpop.f32.mrb[0].mxu0
        %v1431 = vadd.f32 0.0, %v1430
        %v1432 = vpop.f32.mrb[0].mxu0
        %v1433 = vadd.f32 0.0, %v1432
        %v1434 = vpop.f32.mrb[0].mxu0
        %v1435 = vadd.f32 0.0, %v1434
        %v1436 = vpop.f32.mrb[0].mxu0
        %v1437 = vadd.f32 0.0, %v1436
        %1438 = vmatprep.mubr.bf16.mxu0 0
        %1439 = vmatmul.mubr.bf16.gmra.mrb[0].mxu0 %v888
        %v1440 = vpop.f32.mrb[0].mxu0
        %v1441 = vadd.f32 0.0, %v1440
        %v1442 = vpop.f32.mrb[0].mxu0
        %v1443 = vadd.f32 0.0, %v1442
        %v1444 = vpop.f32.mrb[0].mxu0
        %v1445 = vadd.f32 0.0, %v1444
        %v1446 = vpop.f32.mrb[0].mxu0
        %v1447 = vadd.f32 0.0, %v1446
        %1448 = vmatprep.mubr.bf16.mxu0 0
        %1449 = vmatmul.mubr.bf16.gmra.mrb[0].mxu0 %v891
        %v1450 = vpop.f32.mrb[0].mxu0
        %v1451 = vadd.f32 0.0, %v1450
        %v1452 = vpop.f32.mrb[0].mxu0
        %v1453 = vadd.f32 0.0, %v1452
        %v1454 = vpop.f32.mrb[0].mxu0
        %v1455 = vadd.f32 0.0, %v1454
        %v1456 = vpop.f32.mrb[0].mxu0
        %v1457 = vadd.f32 0.0, %v1456
        %1458 = vmatprep.mubr.bf16.mxu0 0
        %1459 = vmatmul.mubr.bf16.gmra.mrb[0].mxu0 %v894
        %v1460 = vpop.f32.mrb[0].mxu0
        %v1461 = vadd.f32 0.0, %v1460
        %v1462 = vpop.f32.mrb[0].mxu0
        %v1463 = vadd.f32 0.0, %v1462
        %v1464 = vpop.f32.mrb[0].mxu0
        %v1465 = vadd.f32 0.0, %v1464
        %v1466 = vpop.f32.mrb[0].mxu0
        %v1467 = vadd.f32 0.0, %v1466
        %1468 = vdwg.mxu0
        %1469 = vmatprep.subr.bf16.mxu0 %v818
        %1470 = vmatpush1.bf16.msra.mxu0 %v817
        %1471 = vmatprep.subr.bf16.mxu0 %v827
        %1472 = vmatpush1.bf16.msra.mxu0 %v826
        %1473 = vmatprep.subr.bf16.mxu0 0
        %1474 = vmatpush1.bf16.msra.mxu0 0
        %1475 = vmatprep.subr.bf16.mxu0 0
        %1476 = vmatpush1.bf16.msra.mxu0 0
        %1477 = vmatprep.subr.bf16.mxu0 0
        %1478 = vmatpush1.bf16.msra.mxu0 0
        %1479 = vmatprep.subr.bf16.mxu0 0
        %1480 = vmatpush1.bf16.msra.mxu0 0
        %1481 = vmatprep.subr.bf16.mxu0 0
        %1482 = vmatpush1.bf16.msra.mxu0 0
        %1483 = vmatprep.subr.bf16.mxu0 0
        %1484 = vmatpush1.bf16.msra.mxu0 0
        %1485 = vmatprep.subr.bf16.mxu0 0
        %1486 = vmatpush1.bf16.msra.mxu0 0
        %1487 = vmatprep.subr.bf16.mxu0 0
        %1488 = vmatpush1.bf16.msra.mxu0 0
        %1489 = vmatprep.subr.bf16.mxu0 0
        %1490 = vmatpush1.bf16.msra.mxu0 0
        %1491 = vmatprep.subr.bf16.mxu0 0
        %1492 = vmatpush1.bf16.msra.mxu0 0
        %1493 = vmatprep.subr.bf16.mxu0 0
        %1494 = vmatpush1.bf16.msra.mxu0 0
        %1495 = vmatprep.subr.bf16.mxu0 0
        %1496 = vmatpush1.bf16.msra.mxu0 0
        %1497 = vmatprep.subr.bf16.mxu0 0
        %1498 = vmatpush1.bf16.msra.mxu0 0
        %1499 = vmatprep.subr.bf16.mxu0 0
        %1500 = vmatpush1.bf16.msra.mxu0 0
        %1501 = vmatprep.mubr.bf16.mxu0 0
        %1502 = vmatmul.mubr.bf16.gmra.mrb[0].mxu0 %v849
        %v1503 = vpop.f32.mrb[0].mxu0
        %v1504 = vpop.f32.mrb[0].mxu0
        %v1505 = vpop.f32.mrb[0].mxu0
        %v1506 = vpop.f32.mrb[0].mxu0
        %1507 = vmatprep.mubr.bf16.mxu0 0
        %1508 = vmatmul.mubr.bf16.gmra.mrb[0].mxu0 %v852
        %v1509 = vpop.f32.mrb[0].mxu0
        %v1510 = vadd.f32 0.0, %v1509
        %v1511 = vpop.f32.mrb[0].mxu0
        %v1512 = vadd.f32 0.0, %v1511
        %v1513 = vpop.f32.mrb[0].mxu0
        %v1514 = vadd.f32 0.0, %v1513
        %v1515 = vpop.f32.mrb[0].mxu0
        %v1516 = vadd.f32 0.0, %v1515
        %1517 = vmatprep.mubr.bf16.mxu0 0
        %1518 = vmatmul.mubr.bf16.gmra.mrb[0].mxu0 %v855
        %v1519 = vpop.f32.mrb[0].mxu0
        %v1520 = vadd.f32 0.0, %v1519
        %v1521 = vpop.f32.mrb[0].mxu0
        %v1522 = vadd.f32 0.0, %v1521
        %v1523 = vpop.f32.mrb[0].mxu0
        %v1524 = vadd.f32 0.0, %v1523
        %v1525 = vpop.f32.mrb[0].mxu0
        %v1526 = vadd.f32 0.0, %v1525
        %1527 = vmatprep.mubr.bf16.mxu0 0
        %1528 = vmatmul.mubr.bf16.gmra.mrb[0].mxu0 %v858
        %v1529 = vpop.f32.mrb[0].mxu0
        %v1530 = vadd.f32 0.0, %v1529
        %v1531 = vpop.f32.mrb[0].mxu0
        %v1532 = vadd.f32 0.0, %v1531
        %v1533 = vpop.f32.mrb[0].mxu0
        %v1534 = vadd.f32 0.0, %v1533
        %v1535 = vpop.f32.mrb[0].mxu0
        %v1536 = vadd.f32 0.0, %v1535
        %1537 = vmatprep.mubr.bf16.mxu0 0
        %1538 = vmatmul.mubr.bf16.gmra.mrb[0].mxu0 %v861
        %v1539 = vpop.f32.mrb[0].mxu0
        %v1540 = vadd.f32 0.0, %v1539
        %v1541 = vpop.f32.mrb[0].mxu0
        %v1542 = vadd.f32 0.0, %v1541
        %v1543 = vpop.f32.mrb[0].mxu0
        %v1544 = vadd.f32 0.0, %v1543
        %v1545 = vpop.f32.mrb[0].mxu0
        %v1546 = vadd.f32 0.0, %v1545
        %1547 = vmatprep.mubr.bf16.mxu0 0
        %1548 = vmatmul.mubr.bf16.gmra.mrb[0].mxu0 %v864
        %v1549 = vpop.f32.mrb[0].mxu0
        %v1550 = vadd.f32 0.0, %v1549
        %v1551 = vpop.f32.mrb[0].mxu0
        %v1552 = vadd.f32 0.0, %v1551
        %v1553 = vpop.f32.mrb[0].mxu0
        %v1554 = vadd.f32 0.0, %v1553
        %v1555 = vpop.f32.mrb[0].mxu0
        %v1556 = vadd.f32 0.0, %v1555
        %1557 = vmatprep.mubr.bf16.mxu0 0
        %1558 = vmatmul.mubr.bf16.gmra.mrb[0].mxu0 %v867
        %v1559 = vpop.f32.mrb[0].mxu0
        %v1560 = vadd.f32 0.0, %v1559
        %v1561 = vpop.f32.mrb[0].mxu0
        %v1562 = vadd.f32 0.0, %v1561
        %v1563 = vpop.f32.mrb[0].mxu0
        %v1564 = vadd.f32 0.0, %v1563
        %v1565 = vpop.f32.mrb[0].mxu0
        %v1566 = vadd.f32 0.0, %v1565
        %1567 = vmatprep.mubr.bf16.mxu0 0
        %1568 = vmatmul.mubr.bf16.gmra.mrb[0].mxu0 %v870
        %v1569 = vpop.f32.mrb[0].mxu0
        %v1570 = vadd.f32 0.0, %v1569
        %v1571 = vpop.f32.mrb[0].mxu0
        %v1572 = vadd.f32 0.0, %v1571
        %v1573 = vpop.f32.mrb[0].mxu0
        %v1574 = vadd.f32 0.0, %v1573
        %v1575 = vpop.f32.mrb[0].mxu0
        %v1576 = vadd.f32 0.0, %v1575
        %1577 = vmatprep.mubr.bf16.mxu0 0
        %1578 = vmatmul.mubr.bf16.gmra.mrb[0].mxu0 %v873
        %v1579 = vpop.f32.mrb[0].mxu0
        %v1580 = vadd.f32 0.0, %v1579
        %v1581 = vpop.f32.mrb[0].mxu0
        %v1582 = vadd.f32 0.0, %v1581
        %v1583 = vpop.f32.mrb[0].mxu0
        %v1584 = vadd.f32 0.0, %v1583
        %v1585 = vpop.f32.mrb[0].mxu0
        %v1586 = vadd.f32 0.0, %v1585
        %1587 = vmatprep.mubr.bf16.mxu0 0
        %1588 = vmatmul.mubr.bf16.gmra.mrb[0].mxu0 %v876
        %v1589 = vpop.f32.mrb[0].mxu0
        %v1590 = vadd.f32 0.0, %v1589
        %v1591 = vpop.f32.mrb[0].mxu0
        %v1592 = vadd.f32 0.0, %v1591
        %v1593 = vpop.f32.mrb[0].mxu0
        %v1594 = vadd.f32 0.0, %v1593
        %v1595 = vpop.f32.mrb[0].mxu0
        %v1596 = vadd.f32 0.0, %v1595
        %1597 = vmatprep.mubr.bf16.mxu0 0
        %1598 = vmatmul.mubr.bf16.gmra.mrb[0].mxu0 %v879
        %v1599 = vpop.f32.mrb[0].mxu0
        %v1600 = vadd.f32 0.0, %v1599
        %v1601 = vpop.f32.mrb[0].mxu0
        %v1602 = vadd.f32 0.0, %v1601
        %v1603 = vpop.f32.mrb[0].mxu0
        %v1604 = vadd.f32 0.0, %v1603
        %v1605 = vpop.f32.mrb[0].mxu0
        %v1606 = vadd.f32 0.0, %v1605
        %1607 = vmatprep.mubr.bf16.mxu0 0
        %1608 = vmatmul.mubr.bf16.gmra.mrb[0].mxu0 %v882
        %v1609 = vpop.f32.mrb[0].mxu0
        %v1610 = vadd.f32 0.0, %v1609
        %v1611 = vpop.f32.mrb[0].mxu0
        %v1612 = vadd.f32 0.0, %v1611
        %v1613 = vpop.f32.mrb[0].mxu0
        %v1614 = vadd.f32 0.0, %v1613
        %v1615 = vpop.f32.mrb[0].mxu0
        %v1616 = vadd.f32 0.0, %v1615
        %1617 = vmatprep.mubr.bf16.mxu0 0
        %1618 = vmatmul.mubr.bf16.gmra.mrb[0].mxu0 %v885
        %v1619 = vpop.f32.mrb[0].mxu0
        %v1620 = vadd.f32 0.0, %v1619
        %v1621 = vpop.f32.mrb[0].mxu0
        %v1622 = vadd.f32 0.0, %v1621
        %v1623 = vpop.f32.mrb[0].mxu0
        %v1624 = vadd.f32 0.0, %v1623
        %v1625 = vpop.f32.mrb[0].mxu0
        %v1626 = vadd.f32 0.0, %v1625
        %1627 = vmatprep.mubr.bf16.mxu0 0
        %1628 = vmatmul.mubr.bf16.gmra.mrb[0].mxu0 %v888
        %v1629 = vpop.f32.mrb[0].mxu0
        %v1630 = vadd.f32 0.0, %v1629
        %v1631 = vpop.f32.mrb[0].mxu0
        %v1632 = vadd.f32 0.0, %v1631
        %v1633 = vpop.f32.mrb[0].mxu0
        %v1634 = vadd.f32 0.0, %v1633
        %v1635 = vpop.f32.mrb[0].mxu0
        %v1636 = vadd.f32 0.0, %v1635
        %1637 = vmatprep.mubr.bf16.mxu0 0
        %1638 = vmatmul.mubr.bf16.gmra.mrb[0].mxu0 %v891
        %v1639 = vpop.f32.mrb[0].mxu0
        %v1640 = vadd.f32 0.0, %v1639
        %v1641 = vpop.f32.mrb[0].mxu0
        %v1642 = vadd.f32 0.0, %v1641
        %v1643 = vpop.f32.mrb[0].mxu0
        %v1644 = vadd.f32 0.0, %v1643
        %v1645 = vpop.f32.mrb[0].mxu0
        %v1646 = vadd.f32 0.0, %v1645
        %1647 = vmatprep.mubr.bf16.mxu0 0
        %1648 = vmatmul.mubr.bf16.gmra.mrb[0].mxu0 %v894
        %v1649 = vpop.f32.mrb[0].mxu0
        %v1650 = vadd.f32 0.0, %v1649
        %v1651 = vpop.f32.mrb[0].mxu0
        %v1652 = vadd.f32 0.0, %v1651
        %v1653 = vpop.f32.mrb[0].mxu0
        %v1654 = vadd.f32 0.0, %v1653
        %v1655 = vpop.f32.mrb[0].mxu0
        %v1656 = vadd.f32 0.0, %v1655
        %1657 = vdwg.mxu0
        %1658 = vmatprep.subr.bf16.mxu0 0
        %1659 = vmatpush1.bf16.msra.mxu0 %v819
        %1660 = vmatprep.subr.bf16.mxu0 0
        %1661 = vmatpush1.bf16.msra.mxu0 %v828
        %1662 = vmatprep.subr.bf16.mxu0 0
        %1663 = vmatpush1.bf16.msra.mxu0 0
        %1664 = vmatprep.subr.bf16.mxu0 0
        %1665 = vmatpush1.bf16.msra.mxu0 0
        %1666 = vmatprep.subr.bf16.mxu0 0
        %1667 = vmatpush1.bf16.msra.mxu0 0
        %1668 = vmatprep.subr.bf16.mxu0 0
        %1669 = vmatpush1.bf16.msra.mxu0 0
        %1670 = vmatprep.subr.bf16.mxu0 0
        %1671 = vmatpush1.bf16.msra.mxu0 0
        %1672 = vmatprep.subr.bf16.mxu0 0
        %1673 = vmatpush1.bf16.msra.mxu0 0
        %1674 = vmatprep.subr.bf16.mxu0 0
        %1675 = vmatpush1.bf16.msra.mxu0 0
        %1676 = vmatprep.subr.bf16.mxu0 0
        %1677 = vmatpush1.bf16.msra.mxu0 0
        %1678 = vmatprep.subr.bf16.mxu0 0
        %1679 = vmatpush1.bf16.msra.mxu0 0
        %1680 = vmatprep.subr.bf16.mxu0 0
        %1681 = vmatpush1.bf16.msra.mxu0 0
        %1682 = vmatprep.subr.bf16.mxu0 0
        %1683 = vmatpush1.bf16.msra.mxu0 0
        %1684 = vmatprep.subr.bf16.mxu0 0
        %1685 = vmatpush1.bf16.msra.mxu0 0
        %1686 = vmatprep.subr.bf16.mxu0 0
        %1687 = vmatpush1.bf16.msra.mxu0 0
        %1688 = vmatprep.subr.bf16.mxu0 0
        %1689 = vmatpush1.bf16.msra.mxu0 0
        %1690 = vmatprep.mubr.bf16.mxu0 0
        %1691 = vmatmul.mubr.bf16.gmra.mrb[0].mxu0 %v849
        %v1692 = vpop.f32.mrb[0].mxu0
        %v1693 = vpop.f32.mrb[0].mxu0
        %v1694 = vpop.f32.mrb[0].mxu0
        %v1695 = vpop.f32.mrb[0].mxu0
        %1696 = vmatprep.mubr.bf16.mxu0 0
        %1697 = vmatmul.mubr.bf16.gmra.mrb[0].mxu0 %v852
        %v1698 = vpop.f32.mrb[0].mxu0
        %v1699 = vadd.f32 0.0, %v1698
        %v1700 = vpop.f32.mrb[0].mxu0
        %v1701 = vpop.f32.mrb[0].mxu0
        %v1702 = vadd.f32 0.0, %v1701
        %v1703 = vpop.f32.mrb[0].mxu0
        %1704 = vmatprep.mubr.bf16.mxu0 0
        %1705 = vmatmul.mubr.bf16.gmra.mrb[0].mxu0 %v855
        %v1706 = vpop.f32.mrb[0].mxu0
        %v1707 = vadd.f32 0.0, %v1706
        %v1708 = vpop.f32.mrb[0].mxu0
        %v1709 = vpop.f32.mrb[0].mxu0
        %v1710 = vadd.f32 0.0, %v1709
        %v1711 = vpop.f32.mrb[0].mxu0
        %1712 = vmatprep.mubr.bf16.mxu0 0
        %1713 = vmatmul.mubr.bf16.gmra.mrb[0].mxu0 %v858
        %v1714 = vpop.f32.mrb[0].mxu0
        %v1715 = vadd.f32 0.0, %v1714
        %v1716 = vpop.f32.mrb[0].mxu0
        %v1717 = vpop.f32.mrb[0].mxu0
        %v1718 = vadd.f32 0.0, %v1717
        %v1719 = vpop.f32.mrb[0].mxu0
        %1720 = vmatprep.mubr.bf16.mxu0 0
        %1721 = vmatmul.mubr.bf16.gmra.mrb[0].mxu0 %v861
        %v1722 = vpop.f32.mrb[0].mxu0
        %v1723 = vadd.f32 0.0, %v1722
        %v1724 = vpop.f32.mrb[0].mxu0
        %v1725 = vpop.f32.mrb[0].mxu0
        %v1726 = vadd.f32 0.0, %v1725
        %v1727 = vpop.f32.mrb[0].mxu0
        %1728 = vmatprep.mubr.bf16.mxu0 0
        %1729 = vmatmul.mubr.bf16.gmra.mrb[0].mxu0 %v864
        %v1730 = vpop.f32.mrb[0].mxu0
        %v1731 = vadd.f32 0.0, %v1730
        %v1732 = vpop.f32.mrb[0].mxu0
        %v1733 = vpop.f32.mrb[0].mxu0
        %v1734 = vadd.f32 0.0, %v1733
        %v1735 = vpop.f32.mrb[0].mxu0
        %1736 = vmatprep.mubr.bf16.mxu0 0
        %1737 = vmatmul.mubr.bf16.gmra.mrb[0].mxu0 %v867
        %v1738 = vpop.f32.mrb[0].mxu0
        %v1739 = vadd.f32 0.0, %v1738
        %v1740 = vpop.f32.mrb[0].mxu0
        %v1741 = vpop.f32.mrb[0].mxu0
        %v1742 = vadd.f32 0.0, %v1741
        %v1743 = vpop.f32.mrb[0].mxu0
        %1744 = vmatprep.mubr.bf16.mxu0 0
        %1745 = vmatmul.mubr.bf16.gmra.mrb[0].mxu0 %v870
        %v1746 = vpop.f32.mrb[0].mxu0
        %v1747 = vadd.f32 0.0, %v1746
        %v1748 = vpop.f32.mrb[0].mxu0
        %v1749 = vpop.f32.mrb[0].mxu0
        %v1750 = vadd.f32 0.0, %v1749
        %v1751 = vpop.f32.mrb[0].mxu0
        %1752 = vmatprep.mubr.bf16.mxu0 0
        %1753 = vmatmul.mubr.bf16.gmra.mrb[0].mxu0 %v873
        %v1754 = vpop.f32.mrb[0].mxu0
        %v1755 = vadd.f32 0.0, %v1754
        %v1756 = vpop.f32.mrb[0].mxu0
        %v1757 = vpop.f32.mrb[0].mxu0
        %v1758 = vadd.f32 0.0, %v1757
        %v1759 = vpop.f32.mrb[0].mxu0
        %1760 = vmatprep.mubr.bf16.mxu0 0
        %1761 = vmatmul.mubr.bf16.gmra.mrb[0].mxu0 %v876
        %v1762 = vpop.f32.mrb[0].mxu0
        %v1763 = vadd.f32 0.0, %v1762
        %v1764 = vpop.f32.mrb[0].mxu0
        %v1765 = vpop.f32.mrb[0].mxu0
        %v1766 = vadd.f32 0.0, %v1765
        %v1767 = vpop.f32.mrb[0].mxu0
        %1768 = vmatprep.mubr.bf16.mxu0 0
        %1769 = vmatmul.mubr.bf16.gmra.mrb[0].mxu0 %v879
        %v1770 = vpop.f32.mrb[0].mxu0
        %v1771 = vadd.f32 0.0, %v1770
        %v1772 = vpop.f32.mrb[0].mxu0
        %v1773 = vpop.f32.mrb[0].mxu0
        %v1774 = vadd.f32 0.0, %v1773
        %v1775 = vpop.f32.mrb[0].mxu0
        %1776 = vmatprep.mubr.bf16.mxu0 0
        %1777 = vmatmul.mubr.bf16.gmra.mrb[0].mxu0 %v882
        %v1778 = vpop.f32.mrb[0].mxu0
        %v1779 = vadd.f32 0.0, %v1778
        %v1780 = vpop.f32.mrb[0].mxu0
        %v1781 = vpop.f32.mrb[0].mxu0
        %v1782 = vadd.f32 0.0, %v1781
        %v1783 = vpop.f32.mrb[0].mxu0
        %1784 = vmatprep.mubr.bf16.mxu0 0
        %1785 = vmatmul.mubr.bf16.gmra.mrb[0].mxu0 %v885
        %v1786 = vpop.f32.mrb[0].mxu0
        %v1787 = vadd.f32 0.0, %v1786
        %v1788 = vpop.f32.mrb[0].mxu0
        %v1789 = vpop.f32.mrb[0].mxu0
        %v1790 = vadd.f32 0.0, %v1789
        %v1791 = vpop.f32.mrb[0].mxu0
        %1792 = vmatprep.mubr.bf16.mxu0 0
        %1793 = vmatmul.mubr.bf16.gmra.mrb[0].mxu0 %v888
        %v1794 = vpop.f32.mrb[0].mxu0
        %v1795 = vadd.f32 0.0, %v1794
        %v1796 = vpop.f32.mrb[0].mxu0
        %v1797 = vpop.f32.mrb[0].mxu0
        %v1798 = vadd.f32 0.0, %v1797
        %v1799 = vpop.f32.mrb[0].mxu0
        %1800 = vmatprep.mubr.bf16.mxu0 0
        %1801 = vmatmul.mubr.bf16.gmra.mrb[0].mxu0 %v891
        %v1802 = vpop.f32.mrb[0].mxu0
        %v1803 = vadd.f32 0.0, %v1802
        %v1804 = vpop.f32.mrb[0].mxu0
        %v1805 = vpop.f32.mrb[0].mxu0
        %v1806 = vadd.f32 0.0, %v1805
        %v1807 = vpop.f32.mrb[0].mxu0
        %1808 = vmatprep.mubr.bf16.mxu0 0
        %1809 = vmatmul.mubr.bf16.gmra.mrb[0].mxu0 %v894
        %v1810 = vpop.f32.mrb[0].mxu0
        %v1811 = vadd.f32 0.0, %v1810
        %v1812 = vpop.f32.mrb[0].mxu0
        %v1813 = vpop.f32.mrb[0].mxu0
        %v1814 = vadd.f32 0.0, %v1813
        %v1815 = vpop.f32.mrb[0].mxu0
        %1816 = vdwg.mxu0
        %s1817 = scalar_lea.vmem [#allocation4], 16
        %v1818 = vld [vmem:[%s1817 + $0x1] sm:$0xff]
        %v1819 = vld [vmem:[%s1817 + $0x9] sm:$0x7f]
        %v1820 = vld [vmem:[%s1817 + $0x11] sm:$0xff]
        %v1821 = vld [vmem:[%s1817 + $0x19] sm:$0x7f]
        %v1822 = vld [vmem:[%s1817 + $0x21] sm:$0xff]
        %v1823 = vld [vmem:[%s1817 + $0x29] sm:$0x7f]
        %v1824 = vld [vmem:[%s1817 + $0x31] sm:$0xff]
        %v1825 = vld [vmem:[%s1817 + $0x39] sm:$0x7f]
        %v1826 = vld [vmem:[%s1817 + $0x41] sm:$0xff]
        %v1827 = vld [vmem:[%s1817 + $0x49] sm:$0x7f]
        %v1828 = vld [vmem:[%s1817 + $0x51] sm:$0xff]
        %v1829 = vld [vmem:[%s1817 + $0x59] sm:$0x7f]
        %v1830 = vld [vmem:[%s1817 + $0x61] sm:$0xff]
        %v1831 = vld [vmem:[%s1817 + $0x69] sm:$0x7f]
        %v1832 = vld [vmem:[%s1817 + $0x71] sm:$0xff]
        %v1833 = vld [vmem:[%s1817 + $0x79] sm:$0x7f]
        %v1834 = vld [vmem:[%s1817 + $0x81] sm:$0xff]
        %v1835 = vld [vmem:[%s1817 + $0x89] sm:$0x7f]
        %v1836 = vld [vmem:[%s1817 + $0x91] sm:$0xff]
        %v1837 = vld [vmem:[%s1817 + $0x99] sm:$0x7f]
        %v1838 = vld [vmem:[%s1817 + $0xa1] sm:$0xff]
        %v1839 = vld [vmem:[%s1817 + $0xa9] sm:$0x7f]
        %v1840 = vld [vmem:[%s1817 + $0xb1] sm:$0xff]
        %v1841 = vld [vmem:[%s1817 + $0xb9] sm:$0x7f]
        %v1842 = vld [vmem:[%s1817 + $0xc1] sm:$0xff]
        %v1843 = vld [vmem:[%s1817 + $0xc9] sm:$0x7f]
        %v1844 = vld [vmem:[%s1817 + $0xd1] sm:$0xff]
        %v1845 = vld [vmem:[%s1817 + $0xd9] sm:$0x7f]
        %v1846 = vld [vmem:[%s1817 + $0xe1] sm:$0xff]
        %v1847 = vld [vmem:[%s1817 + $0xe9] sm:$0x7f]
        %v1848 = vadd.f32 %v1818, %v931
        %v1849 = vadd.f32 %v1819, %v935
        %v1850 = vadd.f32 %v1820, %v941
        %v1851 = vadd.f32 %v1821, %v945
        %v1852 = vadd.f32 %v1822, %v951
        %v1853 = vadd.f32 %v1823, %v955
        %v1854 = vadd.f32 %v1824, %v961
        %v1855 = vadd.f32 %v1825, %v965
        %v1856 = vadd.f32 %v1826, %v971
        %v1857 = vadd.f32 %v1827, %v975
        %v1858 = vadd.f32 %v1828, %v981
        %v1859 = vadd.f32 %v1829, %v985
        %v1860 = vadd.f32 %v1830, %v991
        %v1861 = vadd.f32 %v1831, %v995
        %v1862 = vadd.f32 %v1832, %v1001
        %v1863 = vadd.f32 %v1833, %v1005
        %v1864 = vadd.f32 %v1834, %v1011
        %v1865 = vadd.f32 %v1835, %v1015
        %v1866 = vadd.f32 %v1836, %v1021
        %v1867 = vadd.f32 %v1837, %v1025
        %v1868 = vadd.f32 %v1838, %v1031
        %v1869 = vadd.f32 %v1839, %v1035
        %v1870 = vadd.f32 %v1840, %v1041
        %v1871 = vadd.f32 %v1841, %v1045
        %v1872 = vadd.f32 %v1842, %v1051
        %v1873 = vadd.f32 %v1843, %v1055
        %v1874 = vadd.f32 %v1844, %v1061
        %v1875 = vadd.f32 %v1845, %v1065
        %v1876 = vadd.f32 %v1846, %v1071
        %v1877 = vadd.f32 %v1847, %v1075
        %1878 = vst [vmem:[%s1817 + $0x1] sm:$0xff] %v1848
        %1879 = vst [vmem:[%s1817 + $0x9] sm:$0x7f] %v1849
        %1880 = vst [vmem:[%s1817 + $0x11] sm:$0xff] %v1850
        %1881 = vst [vmem:[%s1817 + $0x19] sm:$0x7f] %v1851
        %1882 = vst [vmem:[%s1817 + $0x21] sm:$0xff] %v1852
        %1883 = vst [vmem:[%s1817 + $0x29] sm:$0x7f] %v1853
        %1884 = vst [vmem:[%s1817 + $0x31] sm:$0xff] %v1854
        %1885 = vst [vmem:[%s1817 + $0x39] sm:$0x7f] %v1855
        %1886 = vst [vmem:[%s1817 + $0x41] sm:$0xff] %v1856
        %1887 = vst [vmem:[%s1817 + $0x49] sm:$0x7f] %v1857
        %1888 = vst [vmem:[%s1817 + $0x51] sm:$0xff] %v1858
        %1889 = vst [vmem:[%s1817 + $0x59] sm:$0x7f] %v1859
        %1890 = vst [vmem:[%s1817 + $0x61] sm:$0xff] %v1860
        %1891 = vst [vmem:[%s1817 + $0x69] sm:$0x7f] %v1861
        %1892 = vst [vmem:[%s1817 + $0x71] sm:$0xff] %v1862
        %1893 = vst [vmem:[%s1817 + $0x79] sm:$0x7f] %v1863
        %1894 = vst [vmem:[%s1817 + $0x81] sm:$0xff] %v1864
        %1895 = vst [vmem:[%s1817 + $0x89] sm:$0x7f] %v1865
        %1896 = vst [vmem:[%s1817 + $0x91] sm:$0xff] %v1866
        %1897 = vst [vmem:[%s1817 + $0x99] sm:$0x7f] %v1867
        %1898 = vst [vmem:[%s1817 + $0xa1] sm:$0xff] %v1868
        %1899 = vst [vmem:[%s1817 + $0xa9] sm:$0x7f] %v1869
        %1900 = vst [vmem:[%s1817 + $0xb1] sm:$0xff] %v1870
        %1901 = vst [vmem:[%s1817 + $0xb9] sm:$0x7f] %v1871
        %1902 = vst [vmem:[%s1817 + $0xc1] sm:$0xff] %v1872
        %1903 = vst [vmem:[%s1817 + $0xc9] sm:$0x7f] %v1873
        %1904 = vst [vmem:[%s1817 + $0xd1] sm:$0xff] %v1874
        %1905 = vst [vmem:[%s1817 + $0xd9] sm:$0x7f] %v1875
        %1906 = vst [vmem:[%s1817 + $0xe1] sm:$0xff] %v1876
        %1907 = vst [vmem:[%s1817 + $0xe9] sm:$0x7f] %v1877
        %v1908 = vld [vmem:[%s1817] sm:$0xff]
        %v1909 = vld [vmem:[%s1817 + $0x8] sm:$0xff]
        %v1910 = vld [vmem:[%s1817 + $0x10] sm:$0xff]
        %v1911 = vld [vmem:[%s1817 + $0x18] sm:$0xff]
        %v1912 = vld [vmem:[%s1817 + $0x20] sm:$0xff]
        %v1913 = vld [vmem:[%s1817 + $0x28] sm:$0xff]
        %v1914 = vld [vmem:[%s1817 + $0x30] sm:$0xff]
        %v1915 = vld [vmem:[%s1817 + $0x38] sm:$0xff]
        %v1916 = vld [vmem:[%s1817 + $0x40] sm:$0xff]
        %v1917 = vld [vmem:[%s1817 + $0x48] sm:$0xff]
        %v1918 = vld [vmem:[%s1817 + $0x50] sm:$0xff]
        %v1919 = vld [vmem:[%s1817 + $0x58] sm:$0xff]
        %v1920 = vld [vmem:[%s1817 + $0x60] sm:$0xff]
        %v1921 = vld [vmem:[%s1817 + $0x68] sm:$0xff]
        %v1922 = vld [vmem:[%s1817 + $0x70] sm:$0xff]
        %v1923 = vld [vmem:[%s1817 + $0x78] sm:$0xff]
        %v1924 = vld [vmem:[%s1817 + $0x80] sm:$0xff]
        %v1925 = vld [vmem:[%s1817 + $0x88] sm:$0xff]
        %v1926 = vld [vmem:[%s1817 + $0x90] sm:$0xff]
        %v1927 = vld [vmem:[%s1817 + $0x98] sm:$0xff]
        %v1928 = vld [vmem:[%s1817 + $0xa0] sm:$0xff]
        %v1929 = vld [vmem:[%s1817 + $0xa8] sm:$0xff]
        %v1930 = vld [vmem:[%s1817 + $0xb0] sm:$0xff]
        %v1931 = vld [vmem:[%s1817 + $0xb8] sm:$0xff]
        %v1932 = vld [vmem:[%s1817 + $0xc0] sm:$0xff]
        %v1933 = vld [vmem:[%s1817 + $0xc8] sm:$0xff]
        %v1934 = vld [vmem:[%s1817 + $0xd0] sm:$0xff]
        %v1935 = vld [vmem:[%s1817 + $0xd8] sm:$0xff]
        %v1936 = vld [vmem:[%s1817 + $0xe0] sm:$0xff]
        %v1937 = vld [vmem:[%s1817 + $0xe8] sm:$0xff]
        %v1938 = vadd.f32 %v1908, %v933
        %v1939 = vadd.f32 %v1909, %v937
        %v1940 = vadd.f32 %v1910, %v943
        %v1941 = vadd.f32 %v1911, %v947
        %v1942 = vadd.f32 %v1912, %v953
        %v1943 = vadd.f32 %v1913, %v957
        %v1944 = vadd.f32 %v1914, %v963
        %v1945 = vadd.f32 %v1915, %v967
        %v1946 = vadd.f32 %v1916, %v973
        %v1947 = vadd.f32 %v1917, %v977
        %v1948 = vadd.f32 %v1918, %v983
        %v1949 = vadd.f32 %v1919, %v987
        %v1950 = vadd.f32 %v1920, %v993
        %v1951 = vadd.f32 %v1921, %v997
        %v1952 = vadd.f32 %v1922, %v1003
        %v1953 = vadd.f32 %v1923, %v1007
        %v1954 = vadd.f32 %v1924, %v1013
        %v1955 = vadd.f32 %v1925, %v1017
        %v1956 = vadd.f32 %v1926, %v1023
        %v1957 = vadd.f32 %v1927, %v1027
        %v1958 = vadd.f32 %v1928, %v1033
        %v1959 = vadd.f32 %v1929, %v1037
        %v1960 = vadd.f32 %v1930, %v1043
        %v1961 = vadd.f32 %v1931, %v1047
        %v1962 = vadd.f32 %v1932, %v1053
        %v1963 = vadd.f32 %v1933, %v1057
        %v1964 = vadd.f32 %v1934, %v1063
        %v1965 = vadd.f32 %v1935, %v1067
        %v1966 = vadd.f32 %v1936, %v1073
        %v1967 = vadd.f32 %v1937, %v1077
        %1968 = vst [vmem:[%s1817] sm:$0xff] %v1938
        %1969 = vst [vmem:[%s1817 + $0x8] sm:$0xff] %v1939
        %1970 = vst [vmem:[%s1817 + $0x10] sm:$0xff] %v1940
        %1971 = vst [vmem:[%s1817 + $0x18] sm:$0xff] %v1941
        %1972 = vst [vmem:[%s1817 + $0x20] sm:$0xff] %v1942
        %1973 = vst [vmem:[%s1817 + $0x28] sm:$0xff] %v1943
        %1974 = vst [vmem:[%s1817 + $0x30] sm:$0xff] %v1944
        %1975 = vst [vmem:[%s1817 + $0x38] sm:$0xff] %v1945
        %1976 = vst [vmem:[%s1817 + $0x40] sm:$0xff] %v1946
        %1977 = vst [vmem:[%s1817 + $0x48] sm:$0xff] %v1947
        %1978 = vst [vmem:[%s1817 + $0x50] sm:$0xff] %v1948
        %1979 = vst [vmem:[%s1817 + $0x58] sm:$0xff] %v1949
        %1980 = vst [vmem:[%s1817 + $0x60] sm:$0xff] %v1950
        %1981 = vst [vmem:[%s1817 + $0x68] sm:$0xff] %v1951
        %1982 = vst [vmem:[%s1817 + $0x70] sm:$0xff] %v1952
        %1983 = vst [vmem:[%s1817 + $0x78] sm:$0xff] %v1953
        %1984 = vst [vmem:[%s1817 + $0x80] sm:$0xff] %v1954
        %1985 = vst [vmem:[%s1817 + $0x88] sm:$0xff] %v1955
        %1986 = vst [vmem:[%s1817 + $0x90] sm:$0xff] %v1956
        %1987 = vst [vmem:[%s1817 + $0x98] sm:$0xff] %v1957
        %1988 = vst [vmem:[%s1817 + $0xa0] sm:$0xff] %v1958
        %1989 = vst [vmem:[%s1817 + $0xa8] sm:$0xff] %v1959
        %1990 = vst [vmem:[%s1817 + $0xb0] sm:$0xff] %v1960
        %1991 = vst [vmem:[%s1817 + $0xb8] sm:$0xff] %v1961
        %1992 = vst [vmem:[%s1817 + $0xc0] sm:$0xff] %v1962
        %1993 = vst [vmem:[%s1817 + $0xc8] sm:$0xff] %v1963
        %1994 = vst [vmem:[%s1817 + $0xd0] sm:$0xff] %v1964
        %1995 = vst [vmem:[%s1817 + $0xd8] sm:$0xff] %v1965
        %1996 = vst [vmem:[%s1817 + $0xe0] sm:$0xff] %v1966
        %1997 = vst [vmem:[%s1817 + $0xe8] sm:$0xff] %v1967
        %v1998 = vld [vmem:[%s1817] sm:$0xff]
        %v1999 = vld [vmem:[%s1817 + $0x8] sm:$0x7f]
        %v2000 = vld [vmem:[%s1817 + $0x10] sm:$0xff]
        %v2001 = vld [vmem:[%s1817 + $0x18] sm:$0x7f]
        %v2002 = vld [vmem:[%s1817 + $0x20] sm:$0xff]
        %v2003 = vld [vmem:[%s1817 + $0x28] sm:$0x7f]
        %v2004 = vld [vmem:[%s1817 + $0x30] sm:$0xff]
        %v2005 = vld [vmem:[%s1817 + $0x38] sm:$0x7f]
        %v2006 = vld [vmem:[%s1817 + $0x40] sm:$0xff]
        %v2007 = vld [vmem:[%s1817 + $0x48] sm:$0x7f]
        %v2008 = vld [vmem:[%s1817 + $0x50] sm:$0xff]
        %v2009 = vld [vmem:[%s1817 + $0x58] sm:$0x7f]
        %v2010 = vld [vmem:[%s1817 + $0x60] sm:$0xff]
        %v2011 = vld [vmem:[%s1817 + $0x68] sm:$0x7f]
        %v2012 = vld [vmem:[%s1817 + $0x70] sm:$0xff]
        %v2013 = vld [vmem:[%s1817 + $0x78] sm:$0x7f]
        %v2014 = vld [vmem:[%s1817 + $0x80] sm:$0xff]
        %v2015 = vld [vmem:[%s1817 + $0x88] sm:$0x7f]
        %v2016 = vld [vmem:[%s1817 + $0x90] sm:$0xff]
        %v2017 = vld [vmem:[%s1817 + $0x98] sm:$0x7f]
        %v2018 = vld [vmem:[%s1817 + $0xa0] sm:$0xff]
        %v2019 = vld [vmem:[%s1817 + $0xa8] sm:$0x7f]
        %v2020 = vld [vmem:[%s1817 + $0xb0] sm:$0xff]
        %v2021 = vld [vmem:[%s1817 + $0xb8] sm:$0x7f]
        %v2022 = vld [vmem:[%s1817 + $0xc0] sm:$0xff]
        %v2023 = vld [vmem:[%s1817 + $0xc8] sm:$0x7f]
        %v2024 = vld [vmem:[%s1817 + $0xd0] sm:$0xff]
        %v2025 = vld [vmem:[%s1817 + $0xd8] sm:$0x7f]
        %v2026 = vld [vmem:[%s1817 + $0xe0] sm:$0xff]
        %v2027 = vld [vmem:[%s1817 + $0xe8] sm:$0x7f]
        %vm2058 = vcmask 1046528
        %v2059 = vrot.slane %v1120, 1
        %v2060 = vrot.slane %v1124, 1
        %v2061 = vsel %vm2058, %v2059, %v2060
        %v2062 = vrot.slane %v1130, 1
        %v2063 = vrot.slane %v1134, 1
        %v2064 = vsel %vm2058, %v2062, %v2063
        %v2065 = vrot.slane %v1140, 1
        %v2066 = vrot.slane %v1144, 1
        %v2067 = vsel %vm2058, %v2065, %v2066
        %v2068 = vrot.slane %v1150, 1
        %v2069 = vrot.slane %v1154, 1
        %v2070 = vsel %vm2058, %v2068, %v2069
        %v2071 = vrot.slane %v1160, 1
        %v2072 = vrot.slane %v1164, 1
        %v2073 = vsel %vm2058, %v2071, %v2072
        %v2074 = vrot.slane %v1170, 1
        %v2075 = vrot.slane %v1174, 1
        %v2076 = vsel %vm2058, %v2074, %v2075
        %v2077 = vrot.slane %v1180, 1
        %v2078 = vrot.slane %v1184, 1
        %v2079 = vsel %vm2058, %v2077, %v2078
        %v2080 = vrot.slane %v1190, 1
        %v2081 = vrot.slane %v1194, 1
        %v2082 = vsel %vm2058, %v2080, %v2081
        %v2083 = vrot.slane %v1200, 1
        %v2084 = vrot.slane %v1204, 1
        %v2085 = vsel %vm2058, %v2083, %v2084
        %v2086 = vrot.slane %v1210, 1
        %v2087 = vrot.slane %v1214, 1
        %v2088 = vsel %vm2058, %v2086, %v2087
        %v2089 = vrot.slane %v1220, 1
        %v2090 = vrot.slane %v1224, 1
        %v2091 = vsel %vm2058, %v2089, %v2090
        %v2092 = vrot.slane %v1230, 1
        %v2093 = vrot.slane %v1234, 1
        %v2094 = vsel %vm2058, %v2092, %v2093
        %v2095 = vrot.slane %v1240, 1
        %v2096 = vrot.slane %v1244, 1
        %v2097 = vsel %vm2058, %v2095, %v2096
        %v2098 = vrot.slane %v1250, 1
        %v2099 = vrot.slane %v1254, 1
        %v2100 = vsel %vm2058, %v2098, %v2099
        %v2101 = vrot.slane %v1260, 1
        %v2102 = vrot.slane %v1264, 1
        %v2103 = vsel %vm2058, %v2101, %v2102
        %v2134 = vadd.f32 %v1998, %v2061
        %v2135 = vadd.f32 %v1999, %v2060
        %v2136 = vadd.f32 %v2000, %v2064
        %v2137 = vadd.f32 %v2001, %v2063
        %v2138 = vadd.f32 %v2002, %v2067
        %v2139 = vadd.f32 %v2003, %v2066
        %v2140 = vadd.f32 %v2004, %v2070
        %v2141 = vadd.f32 %v2005, %v2069
        %v2142 = vadd.f32 %v2006, %v2073
        %v2143 = vadd.f32 %v2007, %v2072
        %v2144 = vadd.f32 %v2008, %v2076
        %v2145 = vadd.f32 %v2009, %v2075
        %v2146 = vadd.f32 %v2010, %v2079
        %v2147 = vadd.f32 %v2011, %v2078
        %v2148 = vadd.f32 %v2012, %v2082
        %v2149 = vadd.f32 %v2013, %v2081
        %v2150 = vadd.f32 %v2014, %v2085
        %v2151 = vadd.f32 %v2015, %v2084
        %v2152 = vadd.f32 %v2016, %v2088
        %v2153 = vadd.f32 %v2017, %v2087
        %v2154 = vadd.f32 %v2018, %v2091
        %v2155 = vadd.f32 %v2019, %v2090
        %v2156 = vadd.f32 %v2020, %v2094
        %v2157 = vadd.f32 %v2021, %v2093
        %v2158 = vadd.f32 %v2022, %v2097
        %v2159 = vadd.f32 %v2023, %v2096
        %v2160 = vadd.f32 %v2024, %v2100
        %v2161 = vadd.f32 %v2025, %v2099
        %v2162 = vadd.f32 %v2026, %v2103
        %v2163 = vadd.f32 %v2027, %v2102
        %2164 = vst [vmem:[%s1817] sm:$0xff] %v2134
        %2165 = vst [vmem:[%s1817 + $0x8] sm:$0x7f] %v2135
        %2166 = vst [vmem:[%s1817 + $0x10] sm:$0xff] %v2136
        %2167 = vst [vmem:[%s1817 + $0x18] sm:$0x7f] %v2137
        %2168 = vst [vmem:[%s1817 + $0x20] sm:$0xff] %v2138
        %2169 = vst [vmem:[%s1817 + $0x28] sm:$0x7f] %v2139
        %2170 = vst [vmem:[%s1817 + $0x30] sm:$0xff] %v2140
        %2171 = vst [vmem:[%s1817 + $0x38] sm:$0x7f] %v2141
        %2172 = vst [vmem:[%s1817 + $0x40] sm:$0xff] %v2142
        %2173 = vst [vmem:[%s1817 + $0x48] sm:$0x7f] %v2143
        %2174 = vst [vmem:[%s1817 + $0x50] sm:$0xff] %v2144
        %2175 = vst [vmem:[%s1817 + $0x58] sm:$0x7f] %v2145
        %2176 = vst [vmem:[%s1817 + $0x60] sm:$0xff] %v2146
        %2177 = vst [vmem:[%s1817 + $0x68] sm:$0x7f] %v2147
        %2178 = vst [vmem:[%s1817 + $0x70] sm:$0xff] %v2148
        %2179 = vst [vmem:[%s1817 + $0x78] sm:$0x7f] %v2149
        %2180 = vst [vmem:[%s1817 + $0x80] sm:$0xff] %v2150
        %2181 = vst [vmem:[%s1817 + $0x88] sm:$0x7f] %v2151
        %2182 = vst [vmem:[%s1817 + $0x90] sm:$0xff] %v2152
        %2183 = vst [vmem:[%s1817 + $0x98] sm:$0x7f] %v2153
        %2184 = vst [vmem:[%s1817 + $0xa0] sm:$0xff] %v2154
        %2185 = vst [vmem:[%s1817 + $0xa8] sm:$0x7f] %v2155
        %2186 = vst [vmem:[%s1817 + $0xb0] sm:$0xff] %v2156
        %2187 = vst [vmem:[%s1817 + $0xb8] sm:$0x7f] %v2157
        %2188 = vst [vmem:[%s1817 + $0xc0] sm:$0xff] %v2158
        %2189 = vst [vmem:[%s1817 + $0xc8] sm:$0x7f] %v2159
        %2190 = vst [vmem:[%s1817 + $0xd0] sm:$0xff] %v2160
        %2191 = vst [vmem:[%s1817 + $0xd8] sm:$0x7f] %v2161
        %2192 = vst [vmem:[%s1817 + $0xe0] sm:$0xff] %v2162
        %2193 = vst [vmem:[%s1817 + $0xe8] sm:$0x7f] %v2163
        %v2194 = vld [vmem:[#allocation4 + $0x1] sm:$0xff]
        %v2195 = vld [vmem:[#allocation4 + $0x9] sm:$0x7f]
        %v2196 = vld [vmem:[#allocation4 + $0x11] sm:$0xff]
        %v2197 = vld [vmem:[#allocation4 + $0x19] sm:$0x7f]
        %v2198 = vld [vmem:[#allocation4 + $0x21] sm:$0xff]
        %v2199 = vld [vmem:[#allocation4 + $0x29] sm:$0x7f]
        %v2200 = vld [vmem:[#allocation4 + $0x31] sm:$0xff]
        %v2201 = vld [vmem:[#allocation4 + $0x39] sm:$0x7f]
        %v2202 = vld [vmem:[#allocation4 + $0x41] sm:$0xff]
        %v2203 = vld [vmem:[#allocation4 + $0x49] sm:$0x7f]
        %v2204 = vld [vmem:[#allocation4 + $0x51] sm:$0xff]
        %v2205 = vld [vmem:[#allocation4 + $0x59] sm:$0x7f]
        %v2206 = vld [vmem:[#allocation4 + $0x61] sm:$0xff]
        %v2207 = vld [vmem:[#allocation4 + $0x69] sm:$0x7f]
        %v2208 = vld [vmem:[#allocation4 + $0x71] sm:$0xff]
        %v2209 = vld [vmem:[#allocation4 + $0x79] sm:$0x7f]
        %v2210 = vld [vmem:[#allocation4 + $0x81] sm:$0xff]
        %v2211 = vld [vmem:[#allocation4 + $0x89] sm:$0x7f]
        %v2212 = vld [vmem:[#allocation4 + $0x91] sm:$0xff]
        %v2213 = vld [vmem:[#allocation4 + $0x99] sm:$0x7f]
        %v2214 = vld [vmem:[#allocation4 + $0xa1] sm:$0xff]
        %v2215 = vld [vmem:[#allocation4 + $0xa9] sm:$0x7f]
        %v2216 = vld [vmem:[#allocation4 + $0xb1] sm:$0xff]
        %v2217 = vld [vmem:[#allocation4 + $0xb9] sm:$0x7f]
        %v2218 = vld [vmem:[#allocation4 + $0xc1] sm:$0xff]
        %v2219 = vld [vmem:[#allocation4 + $0xc9] sm:$0x7f]
        %v2220 = vld [vmem:[#allocation4 + $0xd1] sm:$0xff]
        %v2221 = vld [vmem:[#allocation4 + $0xd9] sm:$0x7f]
        %v2222 = vld [vmem:[#allocation4 + $0xe1] sm:$0xff]
        %v2223 = vld [vmem:[#allocation4 + $0xe9] sm:$0x7f]
        %v2224 = vld [vmem:[#allocation4 + $0xf1] sm:$0xff]
        %v2225 = vld [vmem:[#allocation4 + $0xf9] sm:$0x7f]
        %v2226 = vadd.f32 %v2194, %v1122
        %v2227 = vadd.f32 %v2195, %v1126
        %v2228 = vadd.f32 %v2196, %v1132
        %v2229 = vadd.f32 %v2197, %v1136
        %v2230 = vadd.f32 %v2198, %v1142
        %v2231 = vadd.f32 %v2199, %v1146
        %v2232 = vadd.f32 %v2200, %v1152
        %v2233 = vadd.f32 %v2201, %v1156
        %v2234 = vadd.f32 %v2202, %v1162
        %v2235 = vadd.f32 %v2203, %v1166
        %v2236 = vadd.f32 %v2204, %v1172
        %v2237 = vadd.f32 %v2205, %v1176
        %v2238 = vadd.f32 %v2206, %v1182
        %v2239 = vadd.f32 %v2207, %v1186
        %v2240 = vadd.f32 %v2208, %v1192
        %v2241 = vadd.f32 %v2209, %v1196
        %v2242 = vadd.f32 %v2210, %v1202
        %v2243 = vadd.f32 %v2211, %v1206
        %v2244 = vadd.f32 %v2212, %v1212
        %v2245 = vadd.f32 %v2213, %v1216
        %v2246 = vadd.f32 %v2214, %v1222
        %v2247 = vadd.f32 %v2215, %v1226
        %v2248 = vadd.f32 %v2216, %v1232
        %v2249 = vadd.f32 %v2217, %v1236
        %v2250 = vadd.f32 %v2218, %v1242
        %v2251 = vadd.f32 %v2219, %v1246
        %v2252 = vadd.f32 %v2220, %v1252
        %v2253 = vadd.f32 %v2221, %v1256
        %v2254 = vadd.f32 %v2222, %v1262
        %v2255 = vadd.f32 %v2223, %v1266
        %v2256 = vadd.f32 %v2224, %v1271
        %v2257 = vadd.f32 %v2225, %v1274
        %2258 = vst [vmem:[#allocation4 + $0x1] sm:$0xff] %v2226
        %2259 = vst [vmem:[#allocation4 + $0x9] sm:$0x7f] %v2227
        %2260 = vst [vmem:[#allocation4 + $0x11] sm:$0xff] %v2228
        %2261 = vst [vmem:[#allocation4 + $0x19] sm:$0x7f] %v2229
        %2262 = vst [vmem:[#allocation4 + $0x21] sm:$0xff] %v2230
        %2263 = vst [vmem:[#allocation4 + $0x29] sm:$0x7f] %v2231
        %2264 = vst [vmem:[#allocation4 + $0x31] sm:$0xff] %v2232
        %2265 = vst [vmem:[#allocation4 + $0x39] sm:$0x7f] %v2233
        %2266 = vst [vmem:[#allocation4 + $0x41] sm:$0xff] %v2234
        %2267 = vst [vmem:[#allocation4 + $0x49] sm:$0x7f] %v2235
        %2268 = vst [vmem:[#allocation4 + $0x51] sm:$0xff] %v2236
        %2269 = vst [vmem:[#allocation4 + $0x59] sm:$0x7f] %v2237
        %2270 = vst [vmem:[#allocation4 + $0x61] sm:$0xff] %v2238
        %2271 = vst [vmem:[#allocation4 + $0x69] sm:$0x7f] %v2239
        %2272 = vst [vmem:[#allocation4 + $0x71] sm:$0xff] %v2240
        %2273 = vst [vmem:[#allocation4 + $0x79] sm:$0x7f] %v2241
        %2274 = vst [vmem:[#allocation4 + $0x81] sm:$0xff] %v2242
        %2275 = vst [vmem:[#allocation4 + $0x89] sm:$0x7f] %v2243
        %2276 = vst [vmem:[#allocation4 + $0x91] sm:$0xff] %v2244
        %2277 = vst [vmem:[#allocation4 + $0x99] sm:$0x7f] %v2245
        %2278 = vst [vmem:[#allocation4 + $0xa1] sm:$0xff] %v2246
        %2279 = vst [vmem:[#allocation4 + $0xa9] sm:$0x7f] %v2247
        %2280 = vst [vmem:[#allocation4 + $0xb1] sm:$0xff] %v2248
        %2281 = vst [vmem:[#allocation4 + $0xb9] sm:$0x7f] %v2249
        %2282 = vst [vmem:[#allocation4 + $0xc1] sm:$0xff] %v2250
        %2283 = vst [vmem:[#allocation4 + $0xc9] sm:$0x7f] %v2251
        %2284 = vst [vmem:[#allocation4 + $0xd1] sm:$0xff] %v2252
        %2285 = vst [vmem:[#allocation4 + $0xd9] sm:$0x7f] %v2253
        %2286 = vst [vmem:[#allocation4 + $0xe1] sm:$0xff] %v2254
        %2287 = vst [vmem:[#allocation4 + $0xe9] sm:$0x7f] %v2255
        %2288 = vst [vmem:[#allocation4 + $0xf1] sm:$0xff] %v2256
        %2289 = vst [vmem:[#allocation4 + $0xf9] sm:$0x7f] %v2257
        %v2290 = vld [vmem:[#allocation4] sm:$0xff]
        %v2291 = vld [vmem:[#allocation4 + $0x8] sm:$0xff]
        %v2292 = vld [vmem:[#allocation4 + $0x10] sm:$0xff]
        %v2293 = vld [vmem:[#allocation4 + $0x18] sm:$0xff]
        %v2294 = vld [vmem:[#allocation4 + $0x20] sm:$0xff]
        %v2295 = vld [vmem:[#allocation4 + $0x28] sm:$0xff]
        %v2296 = vld [vmem:[#allocation4 + $0x30] sm:$0xff]
        %v2297 = vld [vmem:[#allocation4 + $0x38] sm:$0xff]
        %v2298 = vld [vmem:[#allocation4 + $0x40] sm:$0xff]
        %v2299 = vld [vmem:[#allocation4 + $0x48] sm:$0xff]
        %v2300 = vld [vmem:[#allocation4 + $0x50] sm:$0xff]
        %v2301 = vld [vmem:[#allocation4 + $0x58] sm:$0xff]
        %v2302 = vld [vmem:[#allocation4 + $0x60] sm:$0xff]
        %v2303 = vld [vmem:[#allocation4 + $0x68] sm:$0xff]
        %v2304 = vld [vmem:[#allocation4 + $0x70] sm:$0xff]
        %v2305 = vld [vmem:[#allocation4 + $0x78] sm:$0xff]
        %v2306 = vld [vmem:[#allocation4 + $0x80] sm:$0xff]
        %v2307 = vld [vmem:[#allocation4 + $0x88] sm:$0xff]
        %v2308 = vld [vmem:[#allocation4 + $0x90] sm:$0xff]
        %v2309 = vld [vmem:[#allocation4 + $0x98] sm:$0xff]
        %v2310 = vld [vmem:[#allocation4 + $0xa0] sm:$0xff]
        %v2311 = vld [vmem:[#allocation4 + $0xa8] sm:$0xff]
        %v2312 = vld [vmem:[#allocation4 + $0xb0] sm:$0xff]
        %v2313 = vld [vmem:[#allocation4 + $0xb8] sm:$0xff]
        %v2314 = vld [vmem:[#allocation4 + $0xc0] sm:$0xff]
        %v2315 = vld [vmem:[#allocation4 + $0xc8] sm:$0xff]
        %v2316 = vld [vmem:[#allocation4 + $0xd0] sm:$0xff]
        %v2317 = vld [vmem:[#allocation4 + $0xd8] sm:$0xff]
        %v2318 = vld [vmem:[#allocation4 + $0xe0] sm:$0xff]
        %v2319 = vld [vmem:[#allocation4 + $0xe8] sm:$0xff]
        %v2320 = vld [vmem:[#allocation4 + $0xf0] sm:$0xff]
        %v2321 = vld [vmem:[#allocation4 + $0xf8] sm:$0xff]
        %v2322 = vadd.f32 %v2290, %v1311
        %v2323 = vadd.f32 %v2291, %v1315
        %v2324 = vadd.f32 %v2292, %v1321
        %v2325 = vadd.f32 %v2293, %v1325
        %v2326 = vadd.f32 %v2294, %v1331
        %v2327 = vadd.f32 %v2295, %v1335
        %v2328 = vadd.f32 %v2296, %v1341
        %v2329 = vadd.f32 %v2297, %v1345
        %v2330 = vadd.f32 %v2298, %v1351
        %v2331 = vadd.f32 %v2299, %v1355
        %v2332 = vadd.f32 %v2300, %v1361
        %v2333 = vadd.f32 %v2301, %v1365
        %v2334 = vadd.f32 %v2302, %v1371
        %v2335 = vadd.f32 %v2303, %v1375
        %v2336 = vadd.f32 %v2304, %v1381
        %v2337 = vadd.f32 %v2305, %v1385
        %v2338 = vadd.f32 %v2306, %v1391
        %v2339 = vadd.f32 %v2307, %v1395
        %v2340 = vadd.f32 %v2308, %v1401
        %v2341 = vadd.f32 %v2309, %v1405
        %v2342 = vadd.f32 %v2310, %v1411
        %v2343 = vadd.f32 %v2311, %v1415
        %v2344 = vadd.f32 %v2312, %v1421
        %v2345 = vadd.f32 %v2313, %v1425
        %v2346 = vadd.f32 %v2314, %v1431
        %v2347 = vadd.f32 %v2315, %v1435
        %v2348 = vadd.f32 %v2316, %v1441
        %v2349 = vadd.f32 %v2317, %v1445
        %v2350 = vadd.f32 %v2318, %v1451
        %v2351 = vadd.f32 %v2319, %v1455
        %v2352 = vadd.f32 %v2320, %v1461
        %v2353 = vadd.f32 %v2321, %v1465
        %2354 = vst [vmem:[#allocation4] sm:$0xff] %v2322
        %2355 = vst [vmem:[#allocation4 + $0x8] sm:$0xff] %v2323
        %2356 = vst [vmem:[#allocation4 + $0x10] sm:$0xff] %v2324
        %2357 = vst [vmem:[#allocation4 + $0x18] sm:$0xff] %v2325
        %2358 = vst [vmem:[#allocation4 + $0x20] sm:$0xff] %v2326
        %2359 = vst [vmem:[#allocation4 + $0x28] sm:$0xff] %v2327
        %2360 = vst [vmem:[#allocation4 + $0x30] sm:$0xff] %v2328
        %2361 = vst [vmem:[#allocation4 + $0x38] sm:$0xff] %v2329
        %2362 = vst [vmem:[#allocation4 + $0x40] sm:$0xff] %v2330
        %2363 = vst [vmem:[#allocation4 + $0x48] sm:$0xff] %v2331
        %2364 = vst [vmem:[#allocation4 + $0x50] sm:$0xff] %v2332
        %2365 = vst [vmem:[#allocation4 + $0x58] sm:$0xff] %v2333
        %2366 = vst [vmem:[#allocation4 + $0x60] sm:$0xff] %v2334
        %2367 = vst [vmem:[#allocation4 + $0x68] sm:$0xff] %v2335
        %2368 = vst [vmem:[#allocation4 + $0x70] sm:$0xff] %v2336
        %2369 = vst [vmem:[#allocation4 + $0x78] sm:$0xff] %v2337
        %2370 = vst [vmem:[#allocation4 + $0x80] sm:$0xff] %v2338
        %2371 = vst [vmem:[#allocation4 + $0x88] sm:$0xff] %v2339
        %2372 = vst [vmem:[#allocation4 + $0x90] sm:$0xff] %v2340
        %2373 = vst [vmem:[#allocation4 + $0x98] sm:$0xff] %v2341
        %2374 = vst [vmem:[#allocation4 + $0xa0] sm:$0xff] %v2342
        %2375 = vst [vmem:[#allocation4 + $0xa8] sm:$0xff] %v2343
        %2376 = vst [vmem:[#allocation4 + $0xb0] sm:$0xff] %v2344
        %2377 = vst [vmem:[#allocation4 + $0xb8] sm:$0xff] %v2345
        %2378 = vst [vmem:[#allocation4 + $0xc0] sm:$0xff] %v2346
        %2379 = vst [vmem:[#allocation4 + $0xc8] sm:$0xff] %v2347
        %2380 = vst [vmem:[#allocation4 + $0xd0] sm:$0xff] %v2348
        %2381 = vst [vmem:[#allocation4 + $0xd8] sm:$0xff] %v2349
        %2382 = vst [vmem:[#allocation4 + $0xe0] sm:$0xff] %v2350
        %2383 = vst [vmem:[#allocation4 + $0xe8] sm:$0xff] %v2351
        %2384 = vst [vmem:[#allocation4 + $0xf0] sm:$0xff] %v2352
        %2385 = vst [vmem:[#allocation4 + $0xf8] sm:$0xff] %v2353
        %v2386 = vld [vmem:[#allocation4] sm:$0xff]
        %v2387 = vld [vmem:[#allocation4 + $0x8] sm:$0x7f]
        %v2388 = vld [vmem:[#allocation4 + $0x10] sm:$0xff]
        %v2389 = vld [vmem:[#allocation4 + $0x18] sm:$0x7f]
        %v2390 = vld [vmem:[#allocation4 + $0x20] sm:$0xff]
        %v2391 = vld [vmem:[#allocation4 + $0x28] sm:$0x7f]
        %v2392 = vld [vmem:[#allocation4 + $0x30] sm:$0xff]
        %v2393 = vld [vmem:[#allocation4 + $0x38] sm:$0x7f]
        %v2394 = vld [vmem:[#allocation4 + $0x40] sm:$0xff]
        %v2395 = vld [vmem:[#allocation4 + $0x48] sm:$0x7f]
        %v2396 = vld [vmem:[#allocation4 + $0x50] sm:$0xff]
        %v2397 = vld [vmem:[#allocation4 + $0x58] sm:$0x7f]
        %v2398 = vld [vmem:[#allocation4 + $0x60] sm:$0xff]
        %v2399 = vld [vmem:[#allocation4 + $0x68] sm:$0x7f]
        %v2400 = vld [vmem:[#allocation4 + $0x70] sm:$0xff]
        %v2401 = vld [vmem:[#allocation4 + $0x78] sm:$0x7f]
        %v2402 = vld [vmem:[#allocation4 + $0x80] sm:$0xff]
        %v2403 = vld [vmem:[#allocation4 + $0x88] sm:$0x7f]
        %v2404 = vld [vmem:[#allocation4 + $0x90] sm:$0xff]
        %v2405 = vld [vmem:[#allocation4 + $0x98] sm:$0x7f]
        %v2406 = vld [vmem:[#allocation4 + $0xa0] sm:$0xff]
        %v2407 = vld [vmem:[#allocation4 + $0xa8] sm:$0x7f]
        %v2408 = vld [vmem:[#allocation4 + $0xb0] sm:$0xff]
        %v2409 = vld [vmem:[#allocation4 + $0xb8] sm:$0x7f]
        %v2410 = vld [vmem:[#allocation4 + $0xc0] sm:$0xff]
        %v2411 = vld [vmem:[#allocation4 + $0xc8] sm:$0x7f]
        %v2412 = vld [vmem:[#allocation4 + $0xd0] sm:$0xff]
        %v2413 = vld [vmem:[#allocation4 + $0xd8] sm:$0x7f]
        %v2414 = vld [vmem:[#allocation4 + $0xe0] sm:$0xff]
        %v2415 = vld [vmem:[#allocation4 + $0xe8] sm:$0x7f]
        %v2416 = vld [vmem:[#allocation4 + $0xf0] sm:$0xff]
        %v2417 = vld [vmem:[#allocation4 + $0xf8] sm:$0x7f]
        %v2450 = vrot.slane %v1313, 1
        %v2451 = vrot.slane %v1317, 1
        %v2452 = vsel %vm2058, %v2450, %v2451
        %v2453 = vrot.slane %v1323, 1
        %v2454 = vrot.slane %v1327, 1
        %v2455 = vsel %vm2058, %v2453, %v2454
        %v2456 = vrot.slane %v1333, 1
        %v2457 = vrot.slane %v1337, 1
        %v2458 = vsel %vm2058, %v2456, %v2457
        %v2459 = vrot.slane %v1343, 1
        %v2460 = vrot.slane %v1347, 1
        %v2461 = vsel %vm2058, %v2459, %v2460
        %v2462 = vrot.slane %v1353, 1
        %v2463 = vrot.slane %v1357, 1
        %v2464 = vsel %vm2058, %v2462, %v2463
        %v2465 = vrot.slane %v1363, 1
        %v2466 = vrot.slane %v1367, 1
        %v2467 = vsel %vm2058, %v2465, %v2466
        %v2468 = vrot.slane %v1373, 1
        %v2469 = vrot.slane %v1377, 1
        %v2470 = vsel %vm2058, %v2468, %v2469
        %v2471 = vrot.slane %v1383, 1
        %v2472 = vrot.slane %v1387, 1
        %v2473 = vsel %vm2058, %v2471, %v2472
        %v2474 = vrot.slane %v1393, 1
        %v2475 = vrot.slane %v1397, 1
        %v2476 = vsel %vm2058, %v2474, %v2475
        %v2477 = vrot.slane %v1403, 1
        %v2478 = vrot.slane %v1407, 1
        %v2479 = vsel %vm2058, %v2477, %v2478
        %v2480 = vrot.slane %v1413, 1
        %v2481 = vrot.slane %v1417, 1
        %v2482 = vsel %vm2058, %v2480, %v2481
        %v2483 = vrot.slane %v1423, 1
        %v2484 = vrot.slane %v1427, 1
        %v2485 = vsel %vm2058, %v2483, %v2484
        %v2486 = vrot.slane %v1433, 1
        %v2487 = vrot.slane %v1437, 1
        %v2488 = vsel %vm2058, %v2486, %v2487
        %v2489 = vrot.slane %v1443, 1
        %v2490 = vrot.slane %v1447, 1
        %v2491 = vsel %vm2058, %v2489, %v2490
        %v2492 = vrot.slane %v1453, 1
        %v2493 = vrot.slane %v1457, 1
        %v2494 = vsel %vm2058, %v2492, %v2493
        %v2495 = vrot.slane %v1463, 1
        %v2496 = vrot.slane %v1467, 1
        %v2497 = vsel %vm2058, %v2495, %v2496
        %v2530 = vadd.f32 %v2386, %v2452
        %v2531 = vadd.f32 %v2387, %v2451
        %v2532 = vadd.f32 %v2388, %v2455
        %v2533 = vadd.f32 %v2389, %v2454
        %v2534 = vadd.f32 %v2390, %v2458
        %v2535 = vadd.f32 %v2391, %v2457
        %v2536 = vadd.f32 %v2392, %v2461
        %v2537 = vadd.f32 %v2393, %v2460
        %v2538 = vadd.f32 %v2394, %v2464
        %v2539 = vadd.f32 %v2395, %v2463
        %v2540 = vadd.f32 %v2396, %v2467
        %v2541 = vadd.f32 %v2397, %v2466
        %v2542 = vadd.f32 %v2398, %v2470
        %v2543 = vadd.f32 %v2399, %v2469
        %v2544 = vadd.f32 %v2400, %v2473
        %v2545 = vadd.f32 %v2401, %v2472
        %v2546 = vadd.f32 %v2402, %v2476
        %v2547 = vadd.f32 %v2403, %v2475
        %v2548 = vadd.f32 %v2404, %v2479
        %v2549 = vadd.f32 %v2405, %v2478
        %v2550 = vadd.f32 %v2406, %v2482
        %v2551 = vadd.f32 %v2407, %v2481
        %v2552 = vadd.f32 %v2408, %v2485
        %v2553 = vadd.f32 %v2409, %v2484
        %v2554 = vadd.f32 %v2410, %v2488
        %v2555 = vadd.f32 %v2411, %v2487
        %v2556 = vadd.f32 %v2412, %v2491
        %v2557 = vadd.f32 %v2413, %v2490
        %v2558 = vadd.f32 %v2414, %v2494
        %v2559 = vadd.f32 %v2415, %v2493
        %v2560 = vadd.f32 %v2416, %v2497
        %v2561 = vadd.f32 %v2417, %v2496
        %2562 = vst [vmem:[#allocation4] sm:$0xff] %v2530
        %2563 = vst [vmem:[#allocation4 + $0x8] sm:$0x7f] %v2531
        %2564 = vst [vmem:[#allocation4 + $0x10] sm:$0xff] %v2532
        %2565 = vst [vmem:[#allocation4 + $0x18] sm:$0x7f] %v2533
        %2566 = vst [vmem:[#allocation4 + $0x20] sm:$0xff] %v2534
        %2567 = vst [vmem:[#allocation4 + $0x28] sm:$0x7f] %v2535
        %2568 = vst [vmem:[#allocation4 + $0x30] sm:$0xff] %v2536
        %2569 = vst [vmem:[#allocation4 + $0x38] sm:$0x7f] %v2537
        %2570 = vst [vmem:[#allocation4 + $0x40] sm:$0xff] %v2538
        %2571 = vst [vmem:[#allocation4 + $0x48] sm:$0x7f] %v2539
        %2572 = vst [vmem:[#allocation4 + $0x50] sm:$0xff] %v2540
        %2573 = vst [vmem:[#allocation4 + $0x58] sm:$0x7f] %v2541
        %2574 = vst [vmem:[#allocation4 + $0x60] sm:$0xff] %v2542
        %2575 = vst [vmem:[#allocation4 + $0x68] sm:$0x7f] %v2543
        %2576 = vst [vmem:[#allocation4 + $0x70] sm:$0xff] %v2544
        %2577 = vst [vmem:[#allocation4 + $0x78] sm:$0x7f] %v2545
        %2578 = vst [vmem:[#allocation4 + $0x80] sm:$0xff] %v2546
        %2579 = vst [vmem:[#allocation4 + $0x88] sm:$0x7f] %v2547
        %2580 = vst [vmem:[#allocation4 + $0x90] sm:$0xff] %v2548
        %2581 = vst [vmem:[#allocation4 + $0x98] sm:$0x7f] %v2549
        %2582 = vst [vmem:[#allocation4 + $0xa0] sm:$0xff] %v2550
        %2583 = vst [vmem:[#allocation4 + $0xa8] sm:$0x7f] %v2551
        %2584 = vst [vmem:[#allocation4 + $0xb0] sm:$0xff] %v2552
        %2585 = vst [vmem:[#allocation4 + $0xb8] sm:$0x7f] %v2553
        %2586 = vst [vmem:[#allocation4 + $0xc0] sm:$0xff] %v2554
        %2587 = vst [vmem:[#allocation4 + $0xc8] sm:$0x7f] %v2555
        %2588 = vst [vmem:[#allocation4 + $0xd0] sm:$0xff] %v2556
        %2589 = vst [vmem:[#allocation4 + $0xd8] sm:$0x7f] %v2557
        %2590 = vst [vmem:[#allocation4 + $0xe0] sm:$0xff] %v2558
        %2591 = vst [vmem:[#allocation4 + $0xe8] sm:$0x7f] %v2559
        %2592 = vst [vmem:[#allocation4 + $0xf0] sm:$0xff] %v2560
        %2593 = vst [vmem:[#allocation4 + $0xf8] sm:$0x7f] %v2561
        %v2594 = vld [vmem:[#allocation4 + $0x1] sm:$0xff]
        %v2595 = vld [vmem:[#allocation4 + $0x9] sm:$0x7f]
        %v2596 = vld [vmem:[#allocation4 + $0x11] sm:$0xff]
        %v2597 = vld [vmem:[#allocation4 + $0x19] sm:$0x7f]
        %v2598 = vld [vmem:[#allocation4 + $0x21] sm:$0xff]
        %v2599 = vld [vmem:[#allocation4 + $0x29] sm:$0x7f]
        %v2600 = vld [vmem:[#allocation4 + $0x31] sm:$0xff]
        %v2601 = vld [vmem:[#allocation4 + $0x39] sm:$0x7f]
        %v2602 = vld [vmem:[#allocation4 + $0x41] sm:$0xff]
        %v2603 = vld [vmem:[#allocation4 + $0x49] sm:$0x7f]
        %v2604 = vld [vmem:[#allocation4 + $0x51] sm:$0xff]
        %v2605 = vld [vmem:[#allocation4 + $0x59] sm:$0x7f]
        %v2606 = vld [vmem:[#allocation4 + $0x61] sm:$0xff]
        %v2607 = vld [vmem:[#allocation4 + $0x69] sm:$0x7f]
        %v2608 = vld [vmem:[#allocation4 + $0x71] sm:$0xff]
        %v2609 = vld [vmem:[#allocation4 + $0x79] sm:$0x7f]
        %v2610 = vld [vmem:[#allocation4 + $0x81] sm:$0xff]
        %v2611 = vld [vmem:[#allocation4 + $0x89] sm:$0x7f]
        %v2612 = vld [vmem:[#allocation4 + $0x91] sm:$0xff]
        %v2613 = vld [vmem:[#allocation4 + $0x99] sm:$0x7f]
        %v2614 = vld [vmem:[#allocation4 + $0xa1] sm:$0xff]
        %v2615 = vld [vmem:[#allocation4 + $0xa9] sm:$0x7f]
        %v2616 = vld [vmem:[#allocation4 + $0xb1] sm:$0xff]
        %v2617 = vld [vmem:[#allocation4 + $0xb9] sm:$0x7f]
        %v2618 = vld [vmem:[#allocation4 + $0xc1] sm:$0xff]
        %v2619 = vld [vmem:[#allocation4 + $0xc9] sm:$0x7f]
        %v2620 = vld [vmem:[#allocation4 + $0xd1] sm:$0xff]
        %v2621 = vld [vmem:[#allocation4 + $0xd9] sm:$0x7f]
        %v2622 = vld [vmem:[#allocation4 + $0xe1] sm:$0xff]
        %v2623 = vld [vmem:[#allocation4 + $0xe9] sm:$0x7f]
        %v2624 = vadd.f32 %v2594, %v1510
        %v2625 = vadd.f32 %v2595, %v1514
        %v2626 = vadd.f32 %v2596, %v1520
        %v2627 = vadd.f32 %v2597, %v1524
        %v2628 = vadd.f32 %v2598, %v1530
        %v2629 = vadd.f32 %v2599, %v1534
        %v2630 = vadd.f32 %v2600, %v1540
        %v2631 = vadd.f32 %v2601, %v1544
        %v2632 = vadd.f32 %v2602, %v1550
        %v2633 = vadd.f32 %v2603, %v1554
        %v2634 = vadd.f32 %v2604, %v1560
        %v2635 = vadd.f32 %v2605, %v1564
        %v2636 = vadd.f32 %v2606, %v1570
        %v2637 = vadd.f32 %v2607, %v1574
        %v2638 = vadd.f32 %v2608, %v1580
        %v2639 = vadd.f32 %v2609, %v1584
        %v2640 = vadd.f32 %v2610, %v1590
        %v2641 = vadd.f32 %v2611, %v1594
        %v2642 = vadd.f32 %v2612, %v1600
        %v2643 = vadd.f32 %v2613, %v1604
        %v2644 = vadd.f32 %v2614, %v1610
        %v2645 = vadd.f32 %v2615, %v1614
        %v2646 = vadd.f32 %v2616, %v1620
        %v2647 = vadd.f32 %v2617, %v1624
        %v2648 = vadd.f32 %v2618, %v1630
        %v2649 = vadd.f32 %v2619, %v1634
        %v2650 = vadd.f32 %v2620, %v1640
        %v2651 = vadd.f32 %v2621, %v1644
        %v2652 = vadd.f32 %v2622, %v1650
        %v2653 = vadd.f32 %v2623, %v1654
        %2654 = vst [vmem:[#allocation4 + $0x1] sm:$0xff] %v2624
        %2655 = vst [vmem:[#allocation4 + $0x9] sm:$0x7f] %v2625
        %2656 = vst [vmem:[#allocation4 + $0x11] sm:$0xff] %v2626
        %2657 = vst [vmem:[#allocation4 + $0x19] sm:$0x7f] %v2627
        %2658 = vst [vmem:[#allocation4 + $0x21] sm:$0xff] %v2628
        %2659 = vst [vmem:[#allocation4 + $0x29] sm:$0x7f] %v2629
        %2660 = vst [vmem:[#allocation4 + $0x31] sm:$0xff] %v2630
        %2661 = vst [vmem:[#allocation4 + $0x39] sm:$0x7f] %v2631
        %2662 = vst [vmem:[#allocation4 + $0x41] sm:$0xff] %v2632
        %2663 = vst [vmem:[#allocation4 + $0x49] sm:$0x7f] %v2633
        %2664 = vst [vmem:[#allocation4 + $0x51] sm:$0xff] %v2634
        %2665 = vst [vmem:[#allocation4 + $0x59] sm:$0x7f] %v2635
        %2666 = vst [vmem:[#allocation4 + $0x61] sm:$0xff] %v2636
        %2667 = vst [vmem:[#allocation4 + $0x69] sm:$0x7f] %v2637
        %2668 = vst [vmem:[#allocation4 + $0x71] sm:$0xff] %v2638
        %2669 = vst [vmem:[#allocation4 + $0x79] sm:$0x7f] %v2639
        %2670 = vst [vmem:[#allocation4 + $0x81] sm:$0xff] %v2640
        %2671 = vst [vmem:[#allocation4 + $0x89] sm:$0x7f] %v2641
        %2672 = vst [vmem:[#allocation4 + $0x91] sm:$0xff] %v2642
        %2673 = vst [vmem:[#allocation4 + $0x99] sm:$0x7f] %v2643
        %2674 = vst [vmem:[#allocation4 + $0xa1] sm:$0xff] %v2644
        %2675 = vst [vmem:[#allocation4 + $0xa9] sm:$0x7f] %v2645
        %2676 = vst [vmem:[#allocation4 + $0xb1] sm:$0xff] %v2646
        %2677 = vst [vmem:[#allocation4 + $0xb9] sm:$0x7f] %v2647
        %2678 = vst [vmem:[#allocation4 + $0xc1] sm:$0xff] %v2648
        %2679 = vst [vmem:[#allocation4 + $0xc9] sm:$0x7f] %v2649
        %2680 = vst [vmem:[#allocation4 + $0xd1] sm:$0xff] %v2650
        %2681 = vst [vmem:[#allocation4 + $0xd9] sm:$0x7f] %v2651
        %2682 = vst [vmem:[#allocation4 + $0xe1] sm:$0xff] %v2652
        %2683 = vst [vmem:[#allocation4 + $0xe9] sm:$0x7f] %v2653
        %v2684 = vld [vmem:[#allocation4] sm:$0xff]
        %v2685 = vld [vmem:[#allocation4 + $0x8] sm:$0xff]
        %v2686 = vld [vmem:[#allocation4 + $0x10] sm:$0xff]
        %v2687 = vld [vmem:[#allocation4 + $0x18] sm:$0xff]
        %v2688 = vld [vmem:[#allocation4 + $0x20] sm:$0xff]
        %v2689 = vld [vmem:[#allocation4 + $0x28] sm:$0xff]
        %v2690 = vld [vmem:[#allocation4 + $0x30] sm:$0xff]
        %v2691 = vld [vmem:[#allocation4 + $0x38] sm:$0xff]
        %v2692 = vld [vmem:[#allocation4 + $0x40] sm:$0xff]
        %v2693 = vld [vmem:[#allocation4 + $0x48] sm:$0xff]
        %v2694 = vld [vmem:[#allocation4 + $0x50] sm:$0xff]
        %v2695 = vld [vmem:[#allocation4 + $0x58] sm:$0xff]
        %v2696 = vld [vmem:[#allocation4 + $0x60] sm:$0xff]
        %v2697 = vld [vmem:[#allocation4 + $0x68] sm:$0xff]
        %v2698 = vld [vmem:[#allocation4 + $0x70] sm:$0xff]
        %v2699 = vld [vmem:[#allocation4 + $0x78] sm:$0xff]
        %v2700 = vld [vmem:[#allocation4 + $0x80] sm:$0xff]
        %v2701 = vld [vmem:[#allocation4 + $0x88] sm:$0xff]
        %v2702 = vld [vmem:[#allocation4 + $0x90] sm:$0xff]
        %v2703 = vld [vmem:[#allocation4 + $0x98] sm:$0xff]
        %v2704 = vld [vmem:[#allocation4 + $0xa0] sm:$0xff]
        %v2705 = vld [vmem:[#allocation4 + $0xa8] sm:$0xff]
        %v2706 = vld [vmem:[#allocation4 + $0xb0] sm:$0xff]
        %v2707 = vld [vmem:[#allocation4 + $0xb8] sm:$0xff]
        %v2708 = vld [vmem:[#allocation4 + $0xc0] sm:$0xff]
        %v2709 = vld [vmem:[#allocation4 + $0xc8] sm:$0xff]
        %v2710 = vld [vmem:[#allocation4 + $0xd0] sm:$0xff]
        %v2711 = vld [vmem:[#allocation4 + $0xd8] sm:$0xff]
        %v2712 = vld [vmem:[#allocation4 + $0xe0] sm:$0xff]
        %v2713 = vld [vmem:[#allocation4 + $0xe8] sm:$0xff]
        %v2714 = vadd.f32 %v2684, %v1512
        %v2715 = vadd.f32 %v2685, %v1516
        %v2716 = vadd.f32 %v2686, %v1522
        %v2717 = vadd.f32 %v2687, %v1526
        %v2718 = vadd.f32 %v2688, %v1532
        %v2719 = vadd.f32 %v2689, %v1536
        %v2720 = vadd.f32 %v2690, %v1542
        %v2721 = vadd.f32 %v2691, %v1546
        %v2722 = vadd.f32 %v2692, %v1552
        %v2723 = vadd.f32 %v2693, %v1556
        %v2724 = vadd.f32 %v2694, %v1562
        %v2725 = vadd.f32 %v2695, %v1566
        %v2726 = vadd.f32 %v2696, %v1572
        %v2727 = vadd.f32 %v2697, %v1576
        %v2728 = vadd.f32 %v2698, %v1582
        %v2729 = vadd.f32 %v2699, %v1586
        %v2730 = vadd.f32 %v2700, %v1592
        %v2731 = vadd.f32 %v2701, %v1596
        %v2732 = vadd.f32 %v2702, %v1602
        %v2733 = vadd.f32 %v2703, %v1606
        %v2734 = vadd.f32 %v2704, %v1612
        %v2735 = vadd.f32 %v2705, %v1616
        %v2736 = vadd.f32 %v2706, %v1622
        %v2737 = vadd.f32 %v2707, %v1626
        %v2738 = vadd.f32 %v2708, %v1632
        %v2739 = vadd.f32 %v2709, %v1636
        %v2740 = vadd.f32 %v2710, %v1642
        %v2741 = vadd.f32 %v2711, %v1646
        %v2742 = vadd.f32 %v2712, %v1652
        %v2743 = vadd.f32 %v2713, %v1656
        %2744 = vst [vmem:[#allocation4] sm:$0xff] %v2714
        %2745 = vst [vmem:[#allocation4 + $0x8] sm:$0xff] %v2715
        %2746 = vst [vmem:[#allocation4 + $0x10] sm:$0xff] %v2716
        %2747 = vst [vmem:[#allocation4 + $0x18] sm:$0xff] %v2717
        %2748 = vst [vmem:[#allocation4 + $0x20] sm:$0xff] %v2718
        %2749 = vst [vmem:[#allocation4 + $0x28] sm:$0xff] %v2719
        %2750 = vst [vmem:[#allocation4 + $0x30] sm:$0xff] %v2720
        %2751 = vst [vmem:[#allocation4 + $0x38] sm:$0xff] %v2721
        %2752 = vst [vmem:[#allocation4 + $0x40] sm:$0xff] %v2722
        %2753 = vst [vmem:[#allocation4 + $0x48] sm:$0xff] %v2723
        %2754 = vst [vmem:[#allocation4 + $0x50] sm:$0xff] %v2724
        %2755 = vst [vmem:[#allocation4 + $0x58] sm:$0xff] %v2725
        %2756 = vst [vmem:[#allocation4 + $0x60] sm:$0xff] %v2726
        %2757 = vst [vmem:[#allocation4 + $0x68] sm:$0xff] %v2727
        %2758 = vst [vmem:[#allocation4 + $0x70] sm:$0xff] %v2728
        %2759 = vst [vmem:[#allocation4 + $0x78] sm:$0xff] %v2729
        %2760 = vst [vmem:[#allocation4 + $0x80] sm:$0xff] %v2730
        %2761 = vst [vmem:[#allocation4 + $0x88] sm:$0xff] %v2731
        %2762 = vst [vmem:[#allocation4 + $0x90] sm:$0xff] %v2732
        %2763 = vst [vmem:[#allocation4 + $0x98] sm:$0xff] %v2733
        %2764 = vst [vmem:[#allocation4 + $0xa0] sm:$0xff] %v2734
        %2765 = vst [vmem:[#allocation4 + $0xa8] sm:$0xff] %v2735
        %2766 = vst [vmem:[#allocation4 + $0xb0] sm:$0xff] %v2736
        %2767 = vst [vmem:[#allocation4 + $0xb8] sm:$0xff] %v2737
        %2768 = vst [vmem:[#allocation4 + $0xc0] sm:$0xff] %v2738
        %2769 = vst [vmem:[#allocation4 + $0xc8] sm:$0xff] %v2739
        %2770 = vst [vmem:[#allocation4 + $0xd0] sm:$0xff] %v2740
        %2771 = vst [vmem:[#allocation4 + $0xd8] sm:$0xff] %v2741
        %2772 = vst [vmem:[#allocation4 + $0xe0] sm:$0xff] %v2742
        %2773 = vst [vmem:[#allocation4 + $0xe8] sm:$0xff] %v2743
        %v2774 = vld [vmem:[#allocation4] sm:$0xff]
        %v2775 = vld [vmem:[#allocation4 + $0x8] sm:$0x7f]
        %v2776 = vld [vmem:[#allocation4 + $0x10] sm:$0xff]
        %v2777 = vld [vmem:[#allocation4 + $0x18] sm:$0x7f]
        %v2778 = vld [vmem:[#allocation4 + $0x20] sm:$0xff]
        %v2779 = vld [vmem:[#allocation4 + $0x28] sm:$0x7f]
        %v2780 = vld [vmem:[#allocation4 + $0x30] sm:$0xff]
        %v2781 = vld [vmem:[#allocation4 + $0x38] sm:$0x7f]
        %v2782 = vld [vmem:[#allocation4 + $0x40] sm:$0xff]
        %v2783 = vld [vmem:[#allocation4 + $0x48] sm:$0x7f]
        %v2784 = vld [vmem:[#allocation4 + $0x50] sm:$0xff]
        %v2785 = vld [vmem:[#allocation4 + $0x58] sm:$0x7f]
        %v2786 = vld [vmem:[#allocation4 + $0x60] sm:$0xff]
        %v2787 = vld [vmem:[#allocation4 + $0x68] sm:$0x7f]
        %v2788 = vld [vmem:[#allocation4 + $0x70] sm:$0xff]
        %v2789 = vld [vmem:[#allocation4 + $0x78] sm:$0x7f]
        %v2790 = vld [vmem:[#allocation4 + $0x80] sm:$0xff]
        %v2791 = vld [vmem:[#allocation4 + $0x88] sm:$0x7f]
        %v2792 = vld [vmem:[#allocation4 + $0x90] sm:$0xff]
        %v2793 = vld [vmem:[#allocation4 + $0x98] sm:$0x7f]
        %v2794 = vld [vmem:[#allocation4 + $0xa0] sm:$0xff]
        %v2795 = vld [vmem:[#allocation4 + $0xa8] sm:$0x7f]
        %v2796 = vld [vmem:[#allocation4 + $0xb0] sm:$0xff]
        %v2797 = vld [vmem:[#allocation4 + $0xb8] sm:$0x7f]
        %v2798 = vld [vmem:[#allocation4 + $0xc0] sm:$0xff]
        %v2799 = vld [vmem:[#allocation4 + $0xc8] sm:$0x7f]
        %v2800 = vld [vmem:[#allocation4 + $0xd0] sm:$0xff]
        %v2801 = vld [vmem:[#allocation4 + $0xd8] sm:$0x7f]
        %v2802 = vld [vmem:[#allocation4 + $0xe0] sm:$0xff]
        %v2803 = vld [vmem:[#allocation4 + $0xe8] sm:$0x7f]
        %v2834 = vrot.slane %v1699, 1
        %v2835 = vrot.slane %v1702, 1
        %v2836 = vsel %vm2058, %v2834, %v2835
        %v2837 = vrot.slane %v1707, 1
        %v2838 = vrot.slane %v1710, 1
        %v2839 = vsel %vm2058, %v2837, %v2838
        %v2840 = vrot.slane %v1715, 1
        %v2841 = vrot.slane %v1718, 1
        %v2842 = vsel %vm2058, %v2840, %v2841
        %v2843 = vrot.slane %v1723, 1
        %v2844 = vrot.slane %v1726, 1
        %v2845 = vsel %vm2058, %v2843, %v2844
        %v2846 = vrot.slane %v1731, 1
        %v2847 = vrot.slane %v1734, 1
        %v2848 = vsel %vm2058, %v2846, %v2847
        %v2849 = vrot.slane %v1739, 1
        %v2850 = vrot.slane %v1742, 1
        %v2851 = vsel %vm2058, %v2849, %v2850
        %v2852 = vrot.slane %v1747, 1
        %v2853 = vrot.slane %v1750, 1
        %v2854 = vsel %vm2058, %v2852, %v2853
        %v2855 = vrot.slane %v1755, 1
        %v2856 = vrot.slane %v1758, 1
        %v2857 = vsel %vm2058, %v2855, %v2856
        %v2858 = vrot.slane %v1763, 1
        %v2859 = vrot.slane %v1766, 1
        %v2860 = vsel %vm2058, %v2858, %v2859
        %v2861 = vrot.slane %v1771, 1
        %v2862 = vrot.slane %v1774, 1
        %v2863 = vsel %vm2058, %v2861, %v2862
        %v2864 = vrot.slane %v1779, 1
        %v2865 = vrot.slane %v1782, 1
        %v2866 = vsel %vm2058, %v2864, %v2865
        %v2867 = vrot.slane %v1787, 1
        %v2868 = vrot.slane %v1790, 1
        %v2869 = vsel %vm2058, %v2867, %v2868
        %v2870 = vrot.slane %v1795, 1
        %v2871 = vrot.slane %v1798, 1
        %v2872 = vsel %vm2058, %v2870, %v2871
        %v2873 = vrot.slane %v1803, 1
        %v2874 = vrot.slane %v1806, 1
        %v2875 = vsel %vm2058, %v2873, %v2874
        %v2876 = vrot.slane %v1811, 1
        %v2877 = vrot.slane %v1814, 1
        %v2878 = vsel %vm2058, %v2876, %v2877
        %v2909 = vadd.f32 %v2774, %v2836
        %v2910 = vadd.f32 %v2775, %v2835
        %v2911 = vadd.f32 %v2776, %v2839
        %v2912 = vadd.f32 %v2777, %v2838
        %v2913 = vadd.f32 %v2778, %v2842
        %v2914 = vadd.f32 %v2779, %v2841
        %v2915 = vadd.f32 %v2780, %v2845
        %v2916 = vadd.f32 %v2781, %v2844
        %v2917 = vadd.f32 %v2782, %v2848
        %v2918 = vadd.f32 %v2783, %v2847
        %v2919 = vadd.f32 %v2784, %v2851
        %v2920 = vadd.f32 %v2785, %v2850
        %v2921 = vadd.f32 %v2786, %v2854
        %v2922 = vadd.f32 %v2787, %v2853
        %v2923 = vadd.f32 %v2788, %v2857
        %v2924 = vadd.f32 %v2789, %v2856
        %v2925 = vadd.f32 %v2790, %v2860
        %v2926 = vadd.f32 %v2791, %v2859
        %v2927 = vadd.f32 %v2792, %v2863
        %v2928 = vadd.f32 %v2793, %v2862
        %v2929 = vadd.f32 %v2794, %v2866
        %v2930 = vadd.f32 %v2795, %v2865
        %v2931 = vadd.f32 %v2796, %v2869
        %v2932 = vadd.f32 %v2797, %v2868
        %v2933 = vadd.f32 %v2798, %v2872
        %v2934 = vadd.f32 %v2799, %v2871
        %v2935 = vadd.f32 %v2800, %v2875
        %v2936 = vadd.f32 %v2801, %v2874
        %v2937 = vadd.f32 %v2802, %v2878
        %v2938 = vadd.f32 %v2803, %v2877
        %2939 = vst [vmem:[#allocation4] sm:$0xff] %v2909
        %2940 = vst [vmem:[#allocation4 + $0x8] sm:$0x7f] %v2910
        %2941 = vst [vmem:[#allocation4 + $0x10] sm:$0xff] %v2911
        %2942 = vst [vmem:[#allocation4 + $0x18] sm:$0x7f] %v2912
        %2943 = vst [vmem:[#allocation4 + $0x20] sm:$0xff] %v2913
        %2944 = vst [vmem:[#allocation4 + $0x28] sm:$0x7f] %v2914
        %2945 = vst [vmem:[#allocation4 + $0x30] sm:$0xff] %v2915
        %2946 = vst [vmem:[#allocation4 + $0x38] sm:$0x7f] %v2916
        %2947 = vst [vmem:[#allocation4 + $0x40] sm:$0xff] %v2917
        %2948 = vst [vmem:[#allocation4 + $0x48] sm:$0x7f] %v2918
        %2949 = vst [vmem:[#allocation4 + $0x50] sm:$0xff] %v2919
        %2950 = vst [vmem:[#allocation4 + $0x58] sm:$0x7f] %v2920
        %2951 = vst [vmem:[#allocation4 + $0x60] sm:$0xff] %v2921
        %2952 = vst [vmem:[#allocation4 + $0x68] sm:$0x7f] %v2922
        %2953 = vst [vmem:[#allocation4 + $0x70] sm:$0xff] %v2923
        %2954 = vst [vmem:[#allocation4 + $0x78] sm:$0x7f] %v2924
        %2955 = vst [vmem:[#allocation4 + $0x80] sm:$0xff] %v2925
        %2956 = vst [vmem:[#allocation4 + $0x88] sm:$0x7f] %v2926
        %2957 = vst [vmem:[#allocation4 + $0x90] sm:$0xff] %v2927
        %2958 = vst [vmem:[#allocation4 + $0x98] sm:$0x7f] %v2928
        %2959 = vst [vmem:[#allocation4 + $0xa0] sm:$0xff] %v2929
        %2960 = vst [vmem:[#allocation4 + $0xa8] sm:$0x7f] %v2930
        %2961 = vst [vmem:[#allocation4 + $0xb0] sm:$0xff] %v2931
        %2962 = vst [vmem:[#allocation4 + $0xb8] sm:$0x7f] %v2932
        %2963 = vst [vmem:[#allocation4 + $0xc0] sm:$0xff] %v2933
        %2964 = vst [vmem:[#allocation4 + $0xc8] sm:$0x7f] %v2934
        %2965 = vst [vmem:[#allocation4 + $0xd0] sm:$0xff] %v2935
        %2966 = vst [vmem:[#allocation4 + $0xd8] sm:$0x7f] %v2936
        %2967 = vst [vmem:[#allocation4 + $0xe0] sm:$0xff] %v2937
        %2968 = vst [vmem:[#allocation4 + $0xe8] sm:$0x7f] %v2938
        %v2969 = vld [vmem:[#allocation4] sm:$0xff]
        %v2970 = vld [vmem:[#allocation4 + $0x8] sm:$0xff]
        %v2971 = vld [vmem:[#allocation4 + $0x10] sm:$0xff]
        %v2972 = vld [vmem:[#allocation4 + $0x18] sm:$0xff]
        %v2973 = vld [vmem:[#allocation4 + $0x20] sm:$0xff]
        %v2974 = vld [vmem:[#allocation4 + $0x28] sm:$0xff]
        %v2975 = vld [vmem:[#allocation4 + $0x30] sm:$0xff]
        %v2976 = vld [vmem:[#allocation4 + $0x38] sm:$0xff]
        %v2977 = vld [vmem:[#allocation4 + $0x40] sm:$0xff]
        %v2978 = vld [vmem:[#allocation4 + $0x48] sm:$0xff]
        %v2979 = vld [vmem:[#allocation4 + $0x50] sm:$0xff]
        %v2980 = vld [vmem:[#allocation4 + $0x58] sm:$0xff]
        %v2981 = vld [vmem:[#allocation4 + $0x60] sm:$0xff]
        %v2982 = vld [vmem:[#allocation4 + $0x68] sm:$0xff]
        %v2983 = vld [vmem:[#allocation4 + $0x70] sm:$0xff]
        %v2984 = vld [vmem:[#allocation4 + $0x78] sm:$0xff]
        %v2985 = vld [vmem:[#allocation4 + $0x80] sm:$0xff]
        %v2986 = vld [vmem:[#allocation4 + $0x88] sm:$0xff]
        %v2987 = vld [vmem:[#allocation4 + $0x90] sm:$0xff]
        %v2988 = vld [vmem:[#allocation4 + $0x98] sm:$0xff]
        %v2989 = vld [vmem:[#allocation4 + $0xa0] sm:$0xff]
        %v2990 = vld [vmem:[#allocation4 + $0xa8] sm:$0xff]
        %v2991 = vld [vmem:[#allocation4 + $0xb0] sm:$0xff]
        %v2992 = vld [vmem:[#allocation4 + $0xb8] sm:$0xff]
        %v2993 = vld [vmem:[#allocation4 + $0xc0] sm:$0xff]
        %v2994 = vld [vmem:[#allocation4 + $0xc8] sm:$0xff]
        %v2995 = vld [vmem:[#allocation4 + $0xd0] sm:$0xff]
        %v2996 = vld [vmem:[#allocation4 + $0xd8] sm:$0xff]
        %v2997 = vld [vmem:[#allocation4 + $0xe0] sm:$0xff]
        %v2998 = vld [vmem:[#allocation4 + $0xe8] sm:$0xff]
        %v2999 = vld [vmem:[#allocation4 + $0xf0] sm:$0xff]
        %v3000 = vld [vmem:[#allocation4 + $0xf8] sm:$0xff]
        %v3001 = vadd.f32 %v2969, %v2970
        %v3002 = vadd.f32 %v3001, %v2971
        %v3003 = vadd.f32 %v3002, %v2972
        %v3004 = vadd.f32 %v3003, %v2973
        %v3005 = vadd.f32 %v3004, %v2974
        %v3006 = vadd.f32 %v3005, %v2975
        %v3007 = vadd.f32 %v3006, %v2976
        %v3008 = vadd.f32 %v3007, %v2977
        %v3009 = vadd.f32 %v3008, %v2978
        %v3010 = vadd.f32 %v3009, %v2979
        %v3011 = vadd.f32 %v3010, %v2980
        %v3012 = vadd.f32 %v3011, %v2981
        %v3013 = vadd.f32 %v3012, %v2982
        %v3014 = vadd.f32 %v3013, %v2983
        %v3015 = vadd.f32 %v3014, %v2984
        %v3016 = vadd.f32 %v3015, %v2985
        %v3017 = vadd.f32 %v3016, %v2986
        %v3018 = vadd.f32 %v3017, %v2987
        %v3019 = vadd.f32 %v3018, %v2988
        %v3020 = vadd.f32 %v3019, %v2989
        %v3021 = vadd.f32 %v3020, %v2990
        %v3022 = vadd.f32 %v3021, %v2991
        %v3023 = vadd.f32 %v3022, %v2992
        %v3024 = vadd.f32 %v3023, %v2993
        %v3025 = vadd.f32 %v3024, %v2994
        %v3026 = vadd.f32 %v3025, %v2995
        %v3027 = vadd.f32 %v3026, %v2996
        %v3028 = vadd.f32 %v3027, %v2997
        %v3029 = vadd.f32 %v3028, %v2998
        %v3030 = vadd.f32 %v3029, %v2999
        %v3031 = vadd.f32 %v3030, %v3000
        %v3032 = vld [vmem:[#allocation10] sm:$0xff]
        %v3033 = vld [vmem:[#allocation10 + $0x8] sm:$0xff]
        %v3034 = vld [vmem:[#allocation10 + $0x10] sm:$0xff]
        %v3035 = vld [vmem:[#allocation10 + $0x18] sm:$0xff]
        %v3036 = vld [vmem:[#allocation10 + $0x20] sm:$0xff]
        %v3037 = vld [vmem:[#allocation10 + $0x28] sm:$0xff]
        %v3038 = vld [vmem:[#allocation10 + $0x30] sm:$0xff]
        %v3039 = vld [vmem:[#allocation10 + $0x38] sm:$0xff]
        %v3040 = vld [vmem:[#allocation10 + $0x40] sm:$0xff]
        %v3041 = vld [vmem:[#allocation10 + $0x48] sm:$0xff]
        %v3042 = vld [vmem:[#allocation10 + $0x50] sm:$0xff]
        %v3043 = vld [vmem:[#allocation10 + $0x58] sm:$0xff]
        %v3044 = vld [vmem:[#allocation10 + $0x60] sm:$0xff]
        %v3045 = vld [vmem:[#allocation10 + $0x68] sm:$0xff]
        %v3046 = vld [vmem:[#allocation10 + $0x70] sm:$0xff]
        %v3047 = vld [vmem:[#allocation10 + $0x78] sm:$0xff]
        %3048 = vmatprep.subr.mxu0 0.0
        %3049 = vmatpush1.msra.mxu0 %v3032
        %3050 = vmatprep.subr.mxu0 0.0
        %3051 = vmatpush1.msra.mxu0 %v3033
        %3052 = vmatprep.subr.mxu0 0.0
        %3053 = vmatpush1.msra.mxu0 %v3034
        %3054 = vmatprep.subr.mxu0 0.0
        %3055 = vmatpush1.msra.mxu0 %v3035
        %3056 = vmatprep.subr.mxu0 0.0
        %3057 = vmatpush1.msra.mxu0 %v3036
        %3058 = vmatprep.subr.mxu0 0.0
        %3059 = vmatpush1.msra.mxu0 %v3037
        %3060 = vmatprep.subr.mxu0 0.0
        %3061 = vmatpush1.msra.mxu0 %v3038
        %3062 = vmatprep.subr.mxu0 0.0
        %3063 = vmatpush1.msra.mxu0 %v3039
        %3064 = vmatprep.subr.mxu0 0.0
        %3065 = vmatpush1.msra.mxu0 %v3040
        %3066 = vmatprep.subr.mxu0 0.0
        %3067 = vmatpush1.msra.mxu0 %v3041
        %3068 = vmatprep.subr.mxu0 0.0
        %3069 = vmatpush1.msra.mxu0 %v3042
        %3070 = vmatprep.subr.mxu0 0.0
        %3071 = vmatpush1.msra.mxu0 %v3043
        %3072 = vmatprep.subr.mxu0 0.0
        %3073 = vmatpush1.msra.mxu0 %v3044
        %3074 = vmatprep.subr.mxu0 0.0
        %3075 = vmatpush1.msra.mxu0 %v3045
        %3076 = vmatprep.subr.mxu0 0.0
        %3077 = vmatpush1.msra.mxu0 %v3046
        %3078 = vmatprep.subr.mxu0 0.0
        %3079 = vmatpush1.msra.mxu0 %v3047
        %3080 = vmatprep.subr.mxu0 0.0
        %3081 = vmatpush1.msra.mxu0 0.0
        %3082 = vmatprep.subr.mxu0 0.0
        %3083 = vmatpush1.msra.mxu0 0.0
        %3084 = vmatprep.subr.mxu0 0.0
        %3085 = vmatpush1.msra.mxu0 0.0
        %3086 = vmatprep.subr.mxu0 0.0
        %3087 = vmatpush1.msra.mxu0 0.0
        %3088 = vmatprep.subr.mxu0 0.0
        %3089 = vmatpush1.msra.mxu0 0.0
        %3090 = vmatprep.subr.mxu0 0.0
        %3091 = vmatpush1.msra.mxu0 0.0
        %3092 = vmatprep.subr.mxu0 0.0
        %3093 = vmatpush1.msra.mxu0 0.0
        %3094 = vmatprep.subr.mxu0 0.0
        %3095 = vmatpush1.msra.mxu0 0.0
        %3096 = vmatprep.subr.mxu0 0.0
        %3097 = vmatpush1.msra.mxu0 0.0
        %3098 = vmatprep.subr.mxu0 0.0
        %3099 = vmatpush1.msra.mxu0 0.0
        %3100 = vmatprep.subr.mxu0 0.0
        %3101 = vmatpush1.msra.mxu0 0.0
        %3102 = vmatprep.subr.mxu0 0.0
        %3103 = vmatpush1.msra.mxu0 0.0
        %3104 = vmatprep.subr.mxu0 0.0
        %3105 = vmatpush1.msra.mxu0 0.0
        %3106 = vmatprep.subr.mxu0 0.0
        %3107 = vmatpush1.msra.mxu0 0.0
        %3108 = vmatprep.subr.mxu0 0.0
        %3109 = vmatpush1.msra.mxu0 0.0
        %3110 = vmatprep.subr.mxu0 0.0
        %3111 = vmatpush1.msra.mxu0 0.0
        %3112 = vmatprep.mubr.f32.mxu0 0.0
        %3113 = vmatmul.mubr.f32.gmra.mrb[0].mxu0 %v3031
        %v3114 = vpop.f32.mrb[0].mxu0
        %v3115 = vadd.f32 0.0, %v3114
        %v3116 = vpop.f32.mrb[0].mxu0
        %3117 = vdwg.mxu0
        %v3118 = vrot.slane %v3115, 4
        %v3119 = vadd.f32 %v3115, %v3118
        %v3120 = vrot.slane %v3119, 2
        %v3121 = vadd.f32 %v3119, %v3120
        %v3122 = vrot.slane %v3121, 1
        %v3123 = vadd.f32 %v3121, %v3122
        %v3124 = vmul.f32 %v3123, 0.00012207031
        %v3125 = vsub.f32 %v2969, %v3124
        %v3126 = vsub.f32 %v2970, %v3124
        %v3127 = vsub.f32 %v2971, %v3124
        %v3128 = vsub.f32 %v2972, %v3124
        %v3129 = vsub.f32 %v2973, %v3124
        %v3130 = vsub.f32 %v2974, %v3124
        %v3131 = vsub.f32 %v2975, %v3124
        %v3132 = vsub.f32 %v2976, %v3124
        %v3133 = vsub.f32 %v2977, %v3124
        %v3134 = vsub.f32 %v2978, %v3124
        %v3135 = vsub.f32 %v2979, %v3124
        %v3136 = vsub.f32 %v2980, %v3124
        %v3137 = vsub.f32 %v2981, %v3124
        %v3138 = vsub.f32 %v2982, %v3124
        %v3139 = vsub.f32 %v2983, %v3124
        %v3140 = vsub.f32 %v2984, %v3124
        %v3141 = vsub.f32 %v2985, %v3124
        %v3142 = vsub.f32 %v2986, %v3124
        %v3143 = vsub.f32 %v2987, %v3124
        %v3144 = vsub.f32 %v2988, %v3124
        %v3145 = vsub.f32 %v2989, %v3124
        %v3146 = vsub.f32 %v2990, %v3124
        %v3147 = vsub.f32 %v2991, %v3124
        %v3148 = vsub.f32 %v2992, %v3124
        %v3149 = vsub.f32 %v2993, %v3124
        %v3150 = vsub.f32 %v2994, %v3124
        %v3151 = vsub.f32 %v2995, %v3124
        %v3152 = vsub.f32 %v2996, %v3124
        %v3153 = vsub.f32 %v2997, %v3124
        %v3154 = vsub.f32 %v2998, %v3124
        %v3155 = vsub.f32 %v2999, %v3124
        %v3156 = vsub.f32 %v3000, %v3124
        %v3157 = vmul.f32 %v3125, %v3125
        %v3158 = vmul.f32 %v3126, %v3126
        %v3159 = vmul.f32 %v3127, %v3127
        %v3160 = vmul.f32 %v3128, %v3128
        %v3161 = vmul.f32 %v3129, %v3129
        %v3162 = vmul.f32 %v3130, %v3130
        %v3163 = vmul.f32 %v3131, %v3131
        %v3164 = vmul.f32 %v3132, %v3132
        %v3165 = vmul.f32 %v3133, %v3133
        %v3166 = vmul.f32 %v3134, %v3134
        %v3167 = vmul.f32 %v3135, %v3135
        %v3168 = vmul.f32 %v3136, %v3136
        %v3169 = vmul.f32 %v3137, %v3137
        %v3170 = vmul.f32 %v3138, %v3138
        %v3171 = vmul.f32 %v3139, %v3139
        %v3172 = vmul.f32 %v3140, %v3140
        %v3173 = vmul.f32 %v3141, %v3141
        %v3174 = vmul.f32 %v3142, %v3142
        %v3175 = vmul.f32 %v3143, %v3143
        %v3176 = vmul.f32 %v3144, %v3144
        %v3177 = vmul.f32 %v3145, %v3145
        %v3178 = vmul.f32 %v3146, %v3146
        %v3179 = vmul.f32 %v3147, %v3147
        %v3180 = vmul.f32 %v3148, %v3148
        %v3181 = vmul.f32 %v3149, %v3149
        %v3182 = vmul.f32 %v3150, %v3150
        %v3183 = vmul.f32 %v3151, %v3151
        %v3184 = vmul.f32 %v3152, %v3152
        %v3185 = vmul.f32 %v3153, %v3153
        %v3186 = vmul.f32 %v3154, %v3154
        %v3187 = vmul.f32 %v3155, %v3155
        %v3188 = vmul.f32 %v3156, %v3156
        %v3189 = vadd.f32 %v3157, %v3158
        %v3190 = vadd.f32 %v3189, %v3159
        %v3191 = vadd.f32 %v3190, %v3160
        %v3192 = vadd.f32 %v3191, %v3161
        %v3193 = vadd.f32 %v3192, %v3162
        %v3194 = vadd.f32 %v3193, %v3163
        %v3195 = vadd.f32 %v3194, %v3164
        %v3196 = vadd.f32 %v3195, %v3165
        %v3197 = vadd.f32 %v3196, %v3166
        %v3198 = vadd.f32 %v3197, %v3167
        %v3199 = vadd.f32 %v3198, %v3168
        %v3200 = vadd.f32 %v3199, %v3169
        %v3201 = vadd.f32 %v3200, %v3170
        %v3202 = vadd.f32 %v3201, %v3171
        %v3203 = vadd.f32 %v3202, %v3172
        %v3204 = vadd.f32 %v3203, %v3173
        %v3205 = vadd.f32 %v3204, %v3174
        %v3206 = vadd.f32 %v3205, %v3175
        %v3207 = vadd.f32 %v3206, %v3176
        %v3208 = vadd.f32 %v3207, %v3177
        %v3209 = vadd.f32 %v3208, %v3178
        %v3210 = vadd.f32 %v3209, %v3179
        %v3211 = vadd.f32 %v3210, %v3180
        %v3212 = vadd.f32 %v3211, %v3181
        %v3213 = vadd.f32 %v3212, %v3182
        %v3214 = vadd.f32 %v3213, %v3183
        %v3215 = vadd.f32 %v3214, %v3184
        %v3216 = vadd.f32 %v3215, %v3185
        %v3217 = vadd.f32 %v3216, %v3186
        %v3218 = vadd.f32 %v3217, %v3187
        %v3219 = vadd.f32 %v3218, %v3188
        %3220 = vmatprep.subr.mxu0 0.0
        %3221 = vmatpush1.msra.mxu0 %v3032
        %3222 = vmatprep.subr.mxu0 0.0
        %3223 = vmatpush1.msra.mxu0 %v3033
        %3224 = vmatprep.subr.mxu0 0.0
        %3225 = vmatpush1.msra.mxu0 %v3034
        %3226 = vmatprep.subr.mxu0 0.0
        %3227 = vmatpush1.msra.mxu0 %v3035
        %3228 = vmatprep.subr.mxu0 0.0
        %3229 = vmatpush1.msra.mxu0 %v3036
        %3230 = vmatprep.subr.mxu0 0.0
        %3231 = vmatpush1.msra.mxu0 %v3037
        %3232 = vmatprep.subr.mxu0 0.0
        %3233 = vmatpush1.msra.mxu0 %v3038
        %3234 = vmatprep.subr.mxu0 0.0
        %3235 = vmatpush1.msra.mxu0 %v3039
        %3236 = vmatprep.subr.mxu0 0.0
        %3237 = vmatpush1.msra.mxu0 %v3040
        %3238 = vmatprep.subr.mxu0 0.0
        %3239 = vmatpush1.msra.mxu0 %v3041
        %3240 = vmatprep.subr.mxu0 0.0
        %3241 = vmatpush1.msra.mxu0 %v3042
        %3242 = vmatprep.subr.mxu0 0.0
        %3243 = vmatpush1.msra.mxu0 %v3043
        %3244 = vmatprep.subr.mxu0 0.0
        %3245 = vmatpush1.msra.mxu0 %v3044
        %3246 = vmatprep.subr.mxu0 0.0
        %3247 = vmatpush1.msra.mxu0 %v3045
        %3248 = vmatprep.subr.mxu0 0.0
        %3249 = vmatpush1.msra.mxu0 %v3046
        %3250 = vmatprep.subr.mxu0 0.0
        %3251 = vmatpush1.msra.mxu0 %v3047
        %3252 = vmatprep.subr.mxu0 0.0
        %3253 = vmatpush1.msra.mxu0 0.0
        %3254 = vmatprep.subr.mxu0 0.0
        %3255 = vmatpush1.msra.mxu0 0.0
        %3256 = vmatprep.subr.mxu0 0.0
        %3257 = vmatpush1.msra.mxu0 0.0
        %3258 = vmatprep.subr.mxu0 0.0
        %3259 = vmatpush1.msra.mxu0 0.0
        %3260 = vmatprep.subr.mxu0 0.0
        %3261 = vmatpush1.msra.mxu0 0.0
        %3262 = vmatprep.subr.mxu0 0.0
        %3263 = vmatpush1.msra.mxu0 0.0
        %3264 = vmatprep.subr.mxu0 0.0
        %3265 = vmatpush1.msra.mxu0 0.0
        %3266 = vmatprep.subr.mxu0 0.0
        %3267 = vmatpush1.msra.mxu0 0.0
        %3268 = vmatprep.subr.mxu0 0.0
        %3269 = vmatpush1.msra.mxu0 0.0
        %3270 = vmatprep.subr.mxu0 0.0
        %3271 = vmatpush1.msra.mxu0 0.0
        %3272 = vmatprep.subr.mxu0 0.0
        %3273 = vmatpush1.msra.mxu0 0.0
        %3274 = vmatprep.subr.mxu0 0.0
        %3275 = vmatpush1.msra.mxu0 0.0
        %3276 = vmatprep.subr.mxu0 0.0
        %3277 = vmatpush1.msra.mxu0 0.0
        %3278 = vmatprep.subr.mxu0 0.0
        %3279 = vmatpush1.msra.mxu0 0.0
        %3280 = vmatprep.subr.mxu0 0.0
        %3281 = vmatpush1.msra.mxu0 0.0
        %3282 = vmatprep.subr.mxu0 0.0
        %3283 = vmatpush1.msra.mxu0 0.0
        %3284 = vmatprep.mubr.f32.mxu0 0.0
        %3285 = vmatmul.mubr.f32.gmra.mrb[0].mxu0 %v3219
        %v3286 = vpop.f32.mrb[0].mxu0
        %v3287 = vadd.f32 0.0, %v3286
        %v3288 = vpop.f32.mrb[0].mxu0
        %3289 = vdwg.mxu0
        %v3290 = vrot.slane %v3287, 4
        %v3291 = vadd.f32 %v3287, %v3290
        %v3292 = vrot.slane %v3291, 2
        %v3293 = vadd.f32 %v3291, %v3292
        %v3294 = vrot.slane %v3293, 1
        %v3295 = vadd.f32 %v3293, %v3294
        %v3296 = vmul.f32 %v3295, 0.00012207031
        %v3297 = vadd.f32 %v3296, 1e-05
        %v3298 = vrsqrt.pop %v3297
        %v3299 = vmul.f32 %v3125, %v3298
        %v3300 = vmul.f32 %v3126, %v3298
        %v3301 = vmul.f32 %v3127, %v3298
        %v3302 = vmul.f32 %v3128, %v3298
        %v3303 = vmul.f32 %v3129, %v3298
        %v3304 = vmul.f32 %v3130, %v3298
        %v3305 = vmul.f32 %v3131, %v3298
        %v3306 = vmul.f32 %v3132, %v3298
        %v3307 = vmul.f32 %v3133, %v3298
        %v3308 = vmul.f32 %v3134, %v3298
        %v3309 = vmul.f32 %v3135, %v3298
        %v3310 = vmul.f32 %v3136, %v3298
        %v3311 = vmul.f32 %v3137, %v3298
        %v3312 = vmul.f32 %v3138, %v3298
        %v3313 = vmul.f32 %v3139, %v3298
        %v3314 = vmul.f32 %v3140, %v3298
        %v3315 = vmul.f32 %v3141, %v3298
        %v3316 = vmul.f32 %v3142, %v3298
        %v3317 = vmul.f32 %v3143, %v3298
        %v3318 = vmul.f32 %v3144, %v3298
        %v3319 = vmul.f32 %v3145, %v3298
        %v3320 = vmul.f32 %v3146, %v3298
        %v3321 = vmul.f32 %v3147, %v3298
        %v3322 = vmul.f32 %v3148, %v3298
        %v3323 = vmul.f32 %v3149, %v3298
        %v3324 = vmul.f32 %v3150, %v3298
        %v3325 = vmul.f32 %v3151, %v3298
        %v3326 = vmul.f32 %v3152, %v3298
        %v3327 = vmul.f32 %v3153, %v3298
        %v3328 = vmul.f32 %v3154, %v3298
        %v3329 = vmul.f32 %v3155, %v3298
        %v3330 = vmul.f32 %v3156, %v3298
        %v3331 = vld [vmem:[#allocation13] sm:$0x1]
        %v3333 = vlaneseq
        %v3334 = vshrl.u32 %v3333, 7
        %v3335 = vsub.s32 0, %v3334
        %v3336 = vrot.slane %v3331, %v3335
        %v3338 = vmul.f32 %v3299, %v3336
        %v3339 = vmul.f32 %v3300, %v3336
        %v3340 = vmul.f32 %v3301, %v3336
        %v3341 = vmul.f32 %v3302, %v3336
        %v3342 = vmul.f32 %v3303, %v3336
        %v3343 = vmul.f32 %v3304, %v3336
        %v3344 = vmul.f32 %v3305, %v3336
        %v3345 = vmul.f32 %v3306, %v3336
        %v3346 = vmul.f32 %v3307, %v3336
        %v3347 = vmul.f32 %v3308, %v3336
        %v3348 = vmul.f32 %v3309, %v3336
        %v3349 = vmul.f32 %v3310, %v3336
        %v3350 = vmul.f32 %v3311, %v3336
        %v3351 = vmul.f32 %v3312, %v3336
        %v3352 = vmul.f32 %v3313, %v3336
        %v3353 = vmul.f32 %v3314, %v3336
        %v3354 = vmul.f32 %v3315, %v3336
        %v3355 = vmul.f32 %v3316, %v3336
        %v3356 = vmul.f32 %v3317, %v3336
        %v3357 = vmul.f32 %v3318, %v3336
        %v3358 = vmul.f32 %v3319, %v3336
        %v3359 = vmul.f32 %v3320, %v3336
        %v3360 = vmul.f32 %v3321, %v3336
        %v3361 = vmul.f32 %v3322, %v3336
        %v3362 = vmul.f32 %v3323, %v3336
        %v3363 = vmul.f32 %v3324, %v3336
        %v3364 = vmul.f32 %v3325, %v3336
        %v3365 = vmul.f32 %v3326, %v3336
        %v3366 = vmul.f32 %v3327, %v3336
        %v3367 = vmul.f32 %v3328, %v3336
        %v3368 = vmul.f32 %v3329, %v3336
        %v3369 = vmul.f32 %v3330, %v3336
        %v3370 = vld [vmem:[#allocation14] sm:$0x1]
        %v3372 = vlaneseq
        %v3373 = vshrl.u32 %v3372, 7
        %v3374 = vsub.s32 0, %v3373
        %v3375 = vrot.slane %v3370, %v3374
        %v3377 = vadd.f32 %v3338, %v3375
        %v3378 = vadd.f32 %v3339, %v3375
        %v3379 = vadd.f32 %v3340, %v3375
        %v3380 = vadd.f32 %v3341, %v3375
        %v3381 = vadd.f32 %v3342, %v3375
        %v3382 = vadd.f32 %v3343, %v3375
        %v3383 = vadd.f32 %v3344, %v3375
        %v3384 = vadd.f32 %v3345, %v3375
        %v3385 = vadd.f32 %v3346, %v3375
        %v3386 = vadd.f32 %v3347, %v3375
        %v3387 = vadd.f32 %v3348, %v3375
        %v3388 = vadd.f32 %v3349, %v3375
        %v3389 = vadd.f32 %v3350, %v3375
        %v3390 = vadd.f32 %v3351, %v3375
        %v3391 = vadd.f32 %v3352, %v3375
        %v3392 = vadd.f32 %v3353, %v3375
        %v3393 = vadd.f32 %v3354, %v3375
        %v3394 = vadd.f32 %v3355, %v3375
        %v3395 = vadd.f32 %v3356, %v3375
        %v3396 = vadd.f32 %v3357, %v3375
        %v3397 = vadd.f32 %v3358, %v3375
        %v3398 = vadd.f32 %v3359, %v3375
        %v3399 = vadd.f32 %v3360, %v3375
        %v3400 = vadd.f32 %v3361, %v3375
        %v3401 = vadd.f32 %v3362, %v3375
        %v3402 = vadd.f32 %v3363, %v3375
        %v3403 = vadd.f32 %v3364, %v3375
        %v3404 = vadd.f32 %v3365, %v3375
        %v3405 = vadd.f32 %v3366, %v3375
        %v3406 = vadd.f32 %v3367, %v3375
        %v3407 = vadd.f32 %v3368, %v3375
        %v3408 = vadd.f32 %v3369, %v3375
        %v3409 = vxor.u32 %v3377, 2147483648
        %v3410 = vxor.u32 %v3378, 2147483648
        %v3411 = vxor.u32 %v3379, 2147483648
        %v3412 = vxor.u32 %v3380, 2147483648
        %v3413 = vxor.u32 %v3381, 2147483648
        %v3414 = vxor.u32 %v3382, 2147483648
        %v3415 = vxor.u32 %v3383, 2147483648
        %v3416 = vxor.u32 %v3384, 2147483648
        %v3417 = vxor.u32 %v3385, 2147483648
        %v3418 = vxor.u32 %v3386, 2147483648
        %v3419 = vxor.u32 %v3387, 2147483648
        %v3420 = vxor.u32 %v3388, 2147483648
        %v3421 = vxor.u32 %v3389, 2147483648
        %v3422 = vxor.u32 %v3390, 2147483648
        %v3423 = vxor.u32 %v3391, 2147483648
        %v3424 = vxor.u32 %v3392, 2147483648
        %v3425 = vxor.u32 %v3393, 2147483648
        %v3426 = vxor.u32 %v3394, 2147483648
        %v3427 = vxor.u32 %v3395, 2147483648
        %v3428 = vxor.u32 %v3396, 2147483648
        %v3429 = vxor.u32 %v3397, 2147483648
        %v3430 = vxor.u32 %v3398, 2147483648
        %v3431 = vxor.u32 %v3399, 2147483648
        %v3432 = vxor.u32 %v3400, 2147483648
        %v3433 = vxor.u32 %v3401, 2147483648
        %v3434 = vxor.u32 %v3402, 2147483648
        %v3435 = vxor.u32 %v3403, 2147483648
        %v3436 = vxor.u32 %v3404, 2147483648
        %v3437 = vxor.u32 %v3405, 2147483648
        %v3438 = vxor.u32 %v3406, 2147483648
        %v3439 = vxor.u32 %v3407, 2147483648
        %v3440 = vxor.u32 %v3408, 2147483648
        %v3441 = vmul.f32 %v3409, 1.442695
        %v3442 = vpow.pop %v3441
        %v3443 = vmul.f32 %v3410, 1.442695
        %v3444 = vpow.pop %v3443
        %v3445 = vmul.f32 %v3411, 1.442695
        %v3446 = vpow.pop %v3445
        %v3447 = vmul.f32 %v3412, 1.442695
        %v3448 = vpow.pop %v3447
        %v3449 = vmul.f32 %v3413, 1.442695
        %v3450 = vpow.pop %v3449
        %v3451 = vmul.f32 %v3414, 1.442695
        %v3452 = vpow.pop %v3451
        %v3453 = vmul.f32 %v3415, 1.442695
        %v3454 = vpow.pop %v3453
        %v3455 = vmul.f32 %v3416, 1.442695
        %v3456 = vpow.pop %v3455
        %v3457 = vmul.f32 %v3417, 1.442695
        %v3458 = vpow.pop %v3457
        %v3459 = vmul.f32 %v3418, 1.442695
        %v3460 = vpow.pop %v3459
        %v3461 = vmul.f32 %v3419, 1.442695
        %v3462 = vpow.pop %v3461
        %v3463 = vmul.f32 %v3420, 1.442695
        %v3464 = vpow.pop %v3463
        %v3465 = vmul.f32 %v3421, 1.442695
        %v3466 = vpow.pop %v3465
        %v3467 = vmul.f32 %v3422, 1.442695
        %v3468 = vpow.pop %v3467
        %v3469 = vmul.f32 %v3423, 1.442695
        %v3470 = vpow.pop %v3469
        %v3471 = vmul.f32 %v3424, 1.442695
        %v3472 = vpow.pop %v3471
        %v3473 = vmul.f32 %v3425, 1.442695
        %v3474 = vpow.pop %v3473
        %v3475 = vmul.f32 %v3426, 1.442695
        %v3476 = vpow.pop %v3475
        %v3477 = vmul.f32 %v3427, 1.442695
        %v3478 = vpow.pop %v3477
        %v3479 = vmul.f32 %v3428, 1.442695
        %v3480 = vpow.pop %v3479
        %v3481 = vmul.f32 %v3429, 1.442695
        %v3482 = vpow.pop %v3481
        %v3483 = vmul.f32 %v3430, 1.442695
        %v3484 = vpow.pop %v3483
        %v3485 = vmul.f32 %v3431, 1.442695
        %v3486 = vpow.pop %v3485
        %v3487 = vmul.f32 %v3432, 1.442695
        %v3488 = vpow.pop %v3487
        %v3489 = vmul.f32 %v3433, 1.442695
        %v3490 = vpow.pop %v3489
        %v3491 = vmul.f32 %v3434, 1.442695
        %v3492 = vpow.pop %v3491
        %v3493 = vmul.f32 %v3435, 1.442695
        %v3494 = vpow.pop %v3493
        %v3495 = vmul.f32 %v3436, 1.442695
        %v3496 = vpow.pop %v3495
        %v3497 = vmul.f32 %v3437, 1.442695
        %v3498 = vpow.pop %v3497
        %v3499 = vmul.f32 %v3438, 1.442695
        %v3500 = vpow.pop %v3499
        %v3501 = vmul.f32 %v3439, 1.442695
        %v3502 = vpow.pop %v3501
        %v3503 = vmul.f32 %v3440, 1.442695
        %v3504 = vpow.pop %v3503
        %v3505 = vadd.f32 %v3442, 1.0
        %v3506 = vadd.f32 %v3444, 1.0
        %v3507 = vadd.f32 %v3446, 1.0
        %v3508 = vadd.f32 %v3448, 1.0
        %v3509 = vadd.f32 %v3450, 1.0
        %v3510 = vadd.f32 %v3452, 1.0
        %v3511 = vadd.f32 %v3454, 1.0
        %v3512 = vadd.f32 %v3456, 1.0
        %v3513 = vadd.f32 %v3458, 1.0
        %v3514 = vadd.f32 %v3460, 1.0
        %v3515 = vadd.f32 %v3462, 1.0
        %v3516 = vadd.f32 %v3464, 1.0
        %v3517 = vadd.f32 %v3466, 1.0
        %v3518 = vadd.f32 %v3468, 1.0
        %v3519 = vadd.f32 %v3470, 1.0
        %v3520 = vadd.f32 %v3472, 1.0
        %v3521 = vadd.f32 %v3474, 1.0
        %v3522 = vadd.f32 %v3476, 1.0
        %v3523 = vadd.f32 %v3478, 1.0
        %v3524 = vadd.f32 %v3480, 1.0
        %v3525 = vadd.f32 %v3482, 1.0
        %v3526 = vadd.f32 %v3484, 1.0
        %v3527 = vadd.f32 %v3486, 1.0
        %v3528 = vadd.f32 %v3488, 1.0
        %v3529 = vadd.f32 %v3490, 1.0
        %v3530 = vadd.f32 %v3492, 1.0
        %v3531 = vadd.f32 %v3494, 1.0
        %v3532 = vadd.f32 %v3496, 1.0
        %v3533 = vadd.f32 %v3498, 1.0
        %v3534 = vadd.f32 %v3500, 1.0
        %v3535 = vadd.f32 %v3502, 1.0
        %v3536 = vadd.f32 %v3504, 1.0
        %v3537 = vrcp.pop %v3505
        %v3538 = vmul.f32 1.0, %v3537
        %v3539 = vrcp.pop %v3506
        %v3540 = vmul.f32 1.0, %v3539
        %v3541 = vrcp.pop %v3507
        %v3542 = vmul.f32 1.0, %v3541
        %v3543 = vrcp.pop %v3508
        %v3544 = vmul.f32 1.0, %v3543
        %v3545 = vrcp.pop %v3509
        %v3546 = vmul.f32 1.0, %v3545
        %v3547 = vrcp.pop %v3510
        %v3548 = vmul.f32 1.0, %v3547
        %v3549 = vrcp.pop %v3511
        %v3550 = vmul.f32 1.0, %v3549
        %v3551 = vrcp.pop %v3512
        %v3552 = vmul.f32 1.0, %v3551
        %v3553 = vrcp.pop %v3513
        %v3554 = vmul.f32 1.0, %v3553
        %v3555 = vrcp.pop %v3514
        %v3556 = vmul.f32 1.0, %v3555
        %v3557 = vrcp.pop %v3515
        %v3558 = vmul.f32 1.0, %v3557
        %v3559 = vrcp.pop %v3516
        %v3560 = vmul.f32 1.0, %v3559
        %v3561 = vrcp.pop %v3517
        %v3562 = vmul.f32 1.0, %v3561
        %v3563 = vrcp.pop %v3518
        %v3564 = vmul.f32 1.0, %v3563
        %v3565 = vrcp.pop %v3519
        %v3566 = vmul.f32 1.0, %v3565
        %v3567 = vrcp.pop %v3520
        %v3568 = vmul.f32 1.0, %v3567
        %v3569 = vrcp.pop %v3521
        %v3570 = vmul.f32 1.0, %v3569
        %v3571 = vrcp.pop %v3522
        %v3572 = vmul.f32 1.0, %v3571
        %v3573 = vrcp.pop %v3523
        %v3574 = vmul.f32 1.0, %v3573
        %v3575 = vrcp.pop %v3524
        %v3576 = vmul.f32 1.0, %v3575
        %v3577 = vrcp.pop %v3525
        %v3578 = vmul.f32 1.0, %v3577
        %v3579 = vrcp.pop %v3526
        %v3580 = vmul.f32 1.0, %v3579
        %v3581 = vrcp.pop %v3527
        %v3582 = vmul.f32 1.0, %v3581
        %v3583 = vrcp.pop %v3528
        %v3584 = vmul.f32 1.0, %v3583
        %v3585 = vrcp.pop %v3529
        %v3586 = vmul.f32 1.0, %v3585
        %v3587 = vrcp.pop %v3530
        %v3588 = vmul.f32 1.0, %v3587
        %v3589 = vrcp.pop %v3531
        %v3590 = vmul.f32 1.0, %v3589
        %v3591 = vrcp.pop %v3532
        %v3592 = vmul.f32 1.0, %v3591
        %v3593 = vrcp.pop %v3533
        %v3594 = vmul.f32 1.0, %v3593
        %v3595 = vrcp.pop %v3534
        %v3596 = vmul.f32 1.0, %v3595
        %v3597 = vrcp.pop %v3535
        %v3598 = vmul.f32 1.0, %v3597
        %v3599 = vrcp.pop %v3536
        %v3600 = vmul.f32 1.0, %v3599
        %v3601 = vtanh.pop %v3377
        %v3602 = vtanh.pop %v3378
        %v3603 = vtanh.pop %v3379
        %v3604 = vtanh.pop %v3380
        %v3605 = vtanh.pop %v3381
        %v3606 = vtanh.pop %v3382
        %v3607 = vtanh.pop %v3383
        %v3608 = vtanh.pop %v3384
        %v3609 = vtanh.pop %v3385
        %v3610 = vtanh.pop %v3386
        %v3611 = vtanh.pop %v3387
        %v3612 = vtanh.pop %v3388
        %v3613 = vtanh.pop %v3389
        %v3614 = vtanh.pop %v3390
        %v3615 = vtanh.pop %v3391
        %v3616 = vtanh.pop %v3392
        %v3617 = vtanh.pop %v3393
        %v3618 = vtanh.pop %v3394
        %v3619 = vtanh.pop %v3395
        %v3620 = vtanh.pop %v3396
        %v3621 = vtanh.pop %v3397
        %v3622 = vtanh.pop %v3398
        %v3623 = vtanh.pop %v3399
        %v3624 = vtanh.pop %v3400
        %v3625 = vtanh.pop %v3401
        %v3626 = vtanh.pop %v3402
        %v3627 = vtanh.pop %v3403
        %v3628 = vtanh.pop %v3404
        %v3629 = vtanh.pop %v3405
        %v3630 = vtanh.pop %v3406
        %v3631 = vtanh.pop %v3407
        %v3632 = vtanh.pop %v3408
        %v3633 = vld [vmem:[#allocation3] sm:$0xff]
        %v3634 = vld [vmem:[#allocation3 + $0x8] sm:$0xff]
        %v3635 = vld [vmem:[#allocation3 + $0x10] sm:$0xff]
        %v3636 = vld [vmem:[#allocation3 + $0x18] sm:$0xff]
        %v3637 = vld [vmem:[#allocation3 + $0x20] sm:$0xff]
        %v3638 = vld [vmem:[#allocation3 + $0x28] sm:$0xff]
        %v3639 = vld [vmem:[#allocation3 + $0x30] sm:$0xff]
        %v3640 = vld [vmem:[#allocation3 + $0x38] sm:$0xff]
        %v3641 = vld [vmem:[#allocation3 + $0x40] sm:$0xff]
        %v3642 = vld [vmem:[#allocation3 + $0x48] sm:$0xff]
        %v3643 = vld [vmem:[#allocation3 + $0x50] sm:$0xff]
        %v3644 = vld [vmem:[#allocation3 + $0x58] sm:$0xff]
        %v3645 = vld [vmem:[#allocation3 + $0x60] sm:$0xff]
        %v3646 = vld [vmem:[#allocation3 + $0x68] sm:$0xff]
        %v3647 = vld [vmem:[#allocation3 + $0x70] sm:$0xff]
        %v3648 = vld [vmem:[#allocation3 + $0x78] sm:$0xff]
        %v3649 = vld [vmem:[#allocation3 + $0x80] sm:$0xff]
        %v3650 = vld [vmem:[#allocation3 + $0x88] sm:$0xff]
        %v3651 = vld [vmem:[#allocation3 + $0x90] sm:$0xff]
        %v3652 = vld [vmem:[#allocation3 + $0x98] sm:$0xff]
        %v3653 = vld [vmem:[#allocation3 + $0xa0] sm:$0xff]
        %v3654 = vld [vmem:[#allocation3 + $0xa8] sm:$0xff]
        %v3655 = vld [vmem:[#allocation3 + $0xb0] sm:$0xff]
        %v3656 = vld [vmem:[#allocation3 + $0xb8] sm:$0xff]
        %v3657 = vld [vmem:[#allocation3 + $0xc0] sm:$0xff]
        %v3658 = vld [vmem:[#allocation3 + $0xc8] sm:$0xff]
        %v3659 = vld [vmem:[#allocation3 + $0xd0] sm:$0xff]
        %v3660 = vld [vmem:[#allocation3 + $0xd8] sm:$0xff]
        %v3661 = vld [vmem:[#allocation3 + $0xe0] sm:$0xff]
        %v3662 = vld [vmem:[#allocation3 + $0xe8] sm:$0xff]
        %v3663 = vld [vmem:[#allocation3 + $0xf0] sm:$0xff]
        %v3664 = vld [vmem:[#allocation3 + $0xf8] sm:$0xff]
        %3697 = vrot.lane.b32.xlu0 %v3633, 32
        %v3698 = vpop.permute.xlu0 %3697
        %3699 = vrot.lane.b32.xlu0 %v3634, 32
        %v3700 = vpop.permute.xlu0 %3699
        %3701 = vrot.lane.b32.xlu0 %v3635, 32
        %v3702 = vpop.permute.xlu0 %3701
        %3703 = vrot.lane.b32.xlu0 %v3636, 32
        %v3704 = vpop.permute.xlu0 %3703
        %3705 = vrot.lane.b32.xlu0 %v3637, 32
        %v3706 = vpop.permute.xlu0 %3705
        %3707 = vrot.lane.b32.xlu0 %v3638, 32
        %v3708 = vpop.permute.xlu0 %3707
        %3709 = vrot.lane.b32.xlu0 %v3639, 32
        %v3710 = vpop.permute.xlu0 %3709
        %3711 = vrot.lane.b32.xlu0 %v3640, 32
        %v3712 = vpop.permute.xlu0 %3711
        %3713 = vrot.lane.b32.xlu0 %v3641, 32
        %v3714 = vpop.permute.xlu0 %3713
        %3715 = vrot.lane.b32.xlu0 %v3642, 32
        %v3716 = vpop.permute.xlu0 %3715
        %3717 = vrot.lane.b32.xlu0 %v3643, 32
        %v3718 = vpop.permute.xlu0 %3717
        %3719 = vrot.lane.b32.xlu0 %v3644, 32
        %v3720 = vpop.permute.xlu0 %3719
        %3721 = vrot.lane.b32.xlu0 %v3645, 32
        %v3722 = vpop.permute.xlu0 %3721
        %3723 = vrot.lane.b32.xlu0 %v3646, 32
        %v3724 = vpop.permute.xlu0 %3723
        %3725 = vrot.lane.b32.xlu0 %v3647, 32
        %v3726 = vpop.permute.xlu0 %3725
        %3727 = vrot.lane.b32.xlu0 %v3648, 32
        %v3728 = vpop.permute.xlu0 %3727
        %3729 = vrot.lane.b32.xlu0 %v3649, 32
        %v3730 = vpop.permute.xlu0 %3729
        %3731 = vrot.lane.b32.xlu0 %v3650, 32
        %v3732 = vpop.permute.xlu0 %3731
        %3733 = vrot.lane.b32.xlu0 %v3651, 32
        %v3734 = vpop.permute.xlu0 %3733
        %3735 = vrot.lane.b32.xlu0 %v3652, 32
        %v3736 = vpop.permute.xlu0 %3735
        %3737 = vrot.lane.b32.xlu0 %v3653, 32
        %v3738 = vpop.permute.xlu0 %3737
        %3739 = vrot.lane.b32.xlu0 %v3654, 32
        %v3740 = vpop.permute.xlu0 %3739
        %3741 = vrot.lane.b32.xlu0 %v3655, 32
        %v3742 = vpop.permute.xlu0 %3741
        %3743 = vrot.lane.b32.xlu0 %v3656, 32
        %v3744 = vpop.permute.xlu0 %3743
        %3745 = vrot.lane.b32.xlu0 %v3657, 32
        %v3746 = vpop.permute.xlu0 %3745
        %3747 = vrot.lane.b32.xlu0 %v3658, 32
        %v3748 = vpop.permute.xlu0 %3747
        %3749 = vrot.lane.b32.xlu0 %v3659, 32
        %v3750 = vpop.permute.xlu0 %3749
        %3751 = vrot.lane.b32.xlu0 %v3660, 32
        %v3752 = vpop.permute.xlu0 %3751
        %3753 = vrot.lane.b32.xlu0 %v3661, 32
        %v3754 = vpop.permute.xlu0 %3753
        %3755 = vrot.lane.b32.xlu0 %v3662, 32
        %v3756 = vpop.permute.xlu0 %3755
        %3757 = vrot.lane.b32.xlu0 %v3663, 32
        %v3758 = vpop.permute.xlu0 %3757
        %3759 = vrot.lane.b32.xlu0 %v3664, 32
        %v3760 = vpop.permute.xlu0 %3759
        %v3793 = vmul.f32 %v3538, %v3698
        %v3794 = vmul.f32 %v3540, %v3700
        %v3795 = vmul.f32 %v3542, %v3702
        %v3796 = vmul.f32 %v3544, %v3704
        %v3797 = vmul.f32 %v3546, %v3706
        %v3798 = vmul.f32 %v3548, %v3708
        %v3799 = vmul.f32 %v3550, %v3710
        %v3800 = vmul.f32 %v3552, %v3712
        %v3801 = vmul.f32 %v3554, %v3714
        %v3802 = vmul.f32 %v3556, %v3716
        %v3803 = vmul.f32 %v3558, %v3718
        %v3804 = vmul.f32 %v3560, %v3720
        %v3805 = vmul.f32 %v3562, %v3722
        %v3806 = vmul.f32 %v3564, %v3724
        %v3807 = vmul.f32 %v3566, %v3726
        %v3808 = vmul.f32 %v3568, %v3728
        %v3809 = vmul.f32 %v3570, %v3730
        %v3810 = vmul.f32 %v3572, %v3732
        %v3811 = vmul.f32 %v3574, %v3734
        %v3812 = vmul.f32 %v3576, %v3736
        %v3813 = vmul.f32 %v3578, %v3738
        %v3814 = vmul.f32 %v3580, %v3740
        %v3815 = vmul.f32 %v3582, %v3742
        %v3816 = vmul.f32 %v3584, %v3744
        %v3817 = vmul.f32 %v3586, %v3746
        %v3818 = vmul.f32 %v3588, %v3748
        %v3819 = vmul.f32 %v3590, %v3750
        %v3820 = vmul.f32 %v3592, %v3752
        %v3821 = vmul.f32 %v3594, %v3754
        %v3822 = vmul.f32 %v3596, %v3756
        %v3823 = vmul.f32 %v3598, %v3758
        %v3824 = vmul.f32 %v3600, %v3760
        %3857 = vrot.lane.b32.xlu0 %v3601, 64
        %v3858 = vpop.permute.xlu0 %3857
        %3859 = vrot.lane.b32.xlu0 %v3602, 64
        %v3860 = vpop.permute.xlu0 %3859
        %3861 = vrot.lane.b32.xlu0 %v3603, 64
        %v3862 = vpop.permute.xlu0 %3861
        %3863 = vrot.lane.b32.xlu0 %v3604, 64
        %v3864 = vpop.permute.xlu0 %3863
        %3865 = vrot.lane.b32.xlu0 %v3605, 64
        %v3866 = vpop.permute.xlu0 %3865
        %3867 = vrot.lane.b32.xlu0 %v3606, 64
        %v3868 = vpop.permute.xlu0 %3867
        %3869 = vrot.lane.b32.xlu0 %v3607, 64
        %v3870 = vpop.permute.xlu0 %3869
        %3871 = vrot.lane.b32.xlu0 %v3608, 64
        %v3872 = vpop.permute.xlu0 %3871
        %3873 = vrot.lane.b32.xlu0 %v3609, 64
        %v3874 = vpop.permute.xlu0 %3873
        %3875 = vrot.lane.b32.xlu0 %v3610, 64
        %v3876 = vpop.permute.xlu0 %3875
        %3877 = vrot.lane.b32.xlu0 %v3611, 64
        %v3878 = vpop.permute.xlu0 %3877
        %3879 = vrot.lane.b32.xlu0 %v3612, 64
        %v3880 = vpop.permute.xlu0 %3879
        %3881 = vrot.lane.b32.xlu0 %v3613, 64
        %v3882 = vpop.permute.xlu0 %3881
        %3883 = vrot.lane.b32.xlu0 %v3614, 64
        %v3884 = vpop.permute.xlu0 %3883
        %3885 = vrot.lane.b32.xlu0 %v3615, 64
        %v3886 = vpop.permute.xlu0 %3885
        %3887 = vrot.lane.b32.xlu0 %v3616, 64
        %v3888 = vpop.permute.xlu0 %3887
        %3889 = vrot.lane.b32.xlu0 %v3617, 64
        %v3890 = vpop.permute.xlu0 %3889
        %3891 = vrot.lane.b32.xlu0 %v3618, 64
        %v3892 = vpop.permute.xlu0 %3891
        %3893 = vrot.lane.b32.xlu0 %v3619, 64
        %v3894 = vpop.permute.xlu0 %3893
        %3895 = vrot.lane.b32.xlu0 %v3620, 64
        %v3896 = vpop.permute.xlu0 %3895
        %3897 = vrot.lane.b32.xlu0 %v3621, 64
        %v3898 = vpop.permute.xlu0 %3897
        %3899 = vrot.lane.b32.xlu0 %v3622, 64
        %v3900 = vpop.permute.xlu0 %3899
        %3901 = vrot.lane.b32.xlu0 %v3623, 64
        %v3902 = vpop.permute.xlu0 %3901
        %3903 = vrot.lane.b32.xlu0 %v3624, 64
        %v3904 = vpop.permute.xlu0 %3903
        %3905 = vrot.lane.b32.xlu0 %v3625, 64
        %v3906 = vpop.permute.xlu0 %3905
        %3907 = vrot.lane.b32.xlu0 %v3626, 64
        %v3908 = vpop.permute.xlu0 %3907
        %3909 = vrot.lane.b32.xlu0 %v3627, 64
        %v3910 = vpop.permute.xlu0 %3909
        %3911 = vrot.lane.b32.xlu0 %v3628, 64
        %v3912 = vpop.permute.xlu0 %3911
        %3913 = vrot.lane.b32.xlu0 %v3629, 64
        %v3914 = vpop.permute.xlu0 %3913
        %3915 = vrot.lane.b32.xlu0 %v3630, 64
        %v3916 = vpop.permute.xlu0 %3915
        %3917 = vrot.lane.b32.xlu0 %v3631, 64
        %v3918 = vpop.permute.xlu0 %3917
        %3919 = vrot.lane.b32.xlu0 %v3632, 64
        %v3920 = vpop.permute.xlu0 %3919
        %v3953 = vmul.f32 %v3538, %v3858
        %v3954 = vmul.f32 %v3540, %v3860
        %v3955 = vmul.f32 %v3542, %v3862
        %v3956 = vmul.f32 %v3544, %v3864
        %v3957 = vmul.f32 %v3546, %v3866
        %v3958 = vmul.f32 %v3548, %v3868
        %v3959 = vmul.f32 %v3550, %v3870
        %v3960 = vmul.f32 %v3552, %v3872
        %v3961 = vmul.f32 %v3554, %v3874
        %v3962 = vmul.f32 %v3556, %v3876
        %v3963 = vmul.f32 %v3558, %v3878
        %v3964 = vmul.f32 %v3560, %v3880
        %v3965 = vmul.f32 %v3562, %v3882
        %v3966 = vmul.f32 %v3564, %v3884
        %v3967 = vmul.f32 %v3566, %v3886
        %v3968 = vmul.f32 %v3568, %v3888
        %v3969 = vmul.f32 %v3570, %v3890
        %v3970 = vmul.f32 %v3572, %v3892
        %v3971 = vmul.f32 %v3574, %v3894
        %v3972 = vmul.f32 %v3576, %v3896
        %v3973 = vmul.f32 %v3578, %v3898
        %v3974 = vmul.f32 %v3580, %v3900
        %v3975 = vmul.f32 %v3582, %v3902
        %v3976 = vmul.f32 %v3584, %v3904
        %v3977 = vmul.f32 %v3586, %v3906
        %v3978 = vmul.f32 %v3588, %v3908
        %v3979 = vmul.f32 %v3590, %v3910
        %v3980 = vmul.f32 %v3592, %v3912
        %v3981 = vmul.f32 %v3594, %v3914
        %v3982 = vmul.f32 %v3596, %v3916
        %v3983 = vmul.f32 %v3598, %v3918
        %v3984 = vmul.f32 %v3600, %v3920
        %4017 = vrot.lane.b32.xlu0 %v3953, 32
        %v4018 = vpop.permute.xlu0 %4017
        %4019 = vrot.lane.b32.xlu0 %v3954, 32
        %v4020 = vpop.permute.xlu0 %4019
        %4021 = vrot.lane.b32.xlu0 %v3955, 32
        %v4022 = vpop.permute.xlu0 %4021
        %4023 = vrot.lane.b32.xlu0 %v3956, 32
        %v4024 = vpop.permute.xlu0 %4023
        %4025 = vrot.lane.b32.xlu0 %v3957, 32
        %v4026 = vpop.permute.xlu0 %4025
        %4027 = vrot.lane.b32.xlu0 %v3958, 32
        %v4028 = vpop.permute.xlu0 %4027
        %4029 = vrot.lane.b32.xlu0 %v3959, 32
        %v4030 = vpop.permute.xlu0 %4029
        %4031 = vrot.lane.b32.xlu0 %v3960, 32
        %v4032 = vpop.permute.xlu0 %4031
        %4033 = vrot.lane.b32.xlu0 %v3961, 32
        %v4034 = vpop.permute.xlu0 %4033
        %4035 = vrot.lane.b32.xlu0 %v3962, 32
        %v4036 = vpop.permute.xlu0 %4035
        %4037 = vrot.lane.b32.xlu0 %v3963, 32
        %v4038 = vpop.permute.xlu0 %4037
        %4039 = vrot.lane.b32.xlu0 %v3964, 32
        %v4040 = vpop.permute.xlu0 %4039
        %4041 = vrot.lane.b32.xlu0 %v3965, 32
        %v4042 = vpop.permute.xlu0 %4041
        %4043 = vrot.lane.b32.xlu0 %v3966, 32
        %v4044 = vpop.permute.xlu0 %4043
        %4045 = vrot.lane.b32.xlu0 %v3967, 32
        %v4046 = vpop.permute.xlu0 %4045
        %4047 = vrot.lane.b32.xlu0 %v3968, 32
        %v4048 = vpop.permute.xlu0 %4047
        %4049 = vrot.lane.b32.xlu0 %v3969, 32
        %v4050 = vpop.permute.xlu0 %4049
        %4051 = vrot.lane.b32.xlu0 %v3970, 32
        %v4052 = vpop.permute.xlu0 %4051
        %4053 = vrot.lane.b32.xlu0 %v3971, 32
        %v4054 = vpop.permute.xlu0 %4053
        %4055 = vrot.lane.b32.xlu0 %v3972, 32
        %v4056 = vpop.permute.xlu0 %4055
        %4057 = vrot.lane.b32.xlu0 %v3973, 32
        %v4058 = vpop.permute.xlu0 %4057
        %4059 = vrot.lane.b32.xlu0 %v3974, 32
        %v4060 = vpop.permute.xlu0 %4059
        %4061 = vrot.lane.b32.xlu0 %v3975, 32
        %v4062 = vpop.permute.xlu0 %4061
        %4063 = vrot.lane.b32.xlu0 %v3976, 32
        %v4064 = vpop.permute.xlu0 %4063
        %4065 = vrot.lane.b32.xlu0 %v3977, 32
        %v4066 = vpop.permute.xlu0 %4065
        %4067 = vrot.lane.b32.xlu0 %v3978, 32
        %v4068 = vpop.permute.xlu0 %4067
        %4069 = vrot.lane.b32.xlu0 %v3979, 32
        %v4070 = vpop.permute.xlu0 %4069
        %4071 = vrot.lane.b32.xlu0 %v3980, 32
        %v4072 = vpop.permute.xlu0 %4071
        %4073 = vrot.lane.b32.xlu0 %v3981, 32
        %v4074 = vpop.permute.xlu0 %4073
        %4075 = vrot.lane.b32.xlu0 %v3982, 32
        %v4076 = vpop.permute.xlu0 %4075
        %4077 = vrot.lane.b32.xlu0 %v3983, 32
        %v4078 = vpop.permute.xlu0 %4077
        %4079 = vrot.lane.b32.xlu0 %v3984, 32
        %v4080 = vpop.permute.xlu0 %4079
        %v4113 = vadd.f32 %v3793, %v4018
        %v4114 = vadd.f32 %v3794, %v4020
        %v4115 = vadd.f32 %v3795, %v4022
        %v4116 = vadd.f32 %v3796, %v4024
        %v4117 = vadd.f32 %v3797, %v4026
        %v4118 = vadd.f32 %v3798, %v4028
        %v4119 = vadd.f32 %v3799, %v4030
        %v4120 = vadd.f32 %v3800, %v4032
        %v4121 = vadd.f32 %v3801, %v4034
        %v4122 = vadd.f32 %v3802, %v4036
        %v4123 = vadd.f32 %v3803, %v4038
        %v4124 = vadd.f32 %v3804, %v4040
        %v4125 = vadd.f32 %v3805, %v4042
        %v4126 = vadd.f32 %v3806, %v4044
        %v4127 = vadd.f32 %v3807, %v4046
        %v4128 = vadd.f32 %v3808, %v4048
        %v4129 = vadd.f32 %v3809, %v4050
        %v4130 = vadd.f32 %v3810, %v4052
        %v4131 = vadd.f32 %v3811, %v4054
        %v4132 = vadd.f32 %v3812, %v4056
        %v4133 = vadd.f32 %v3813, %v4058
        %v4134 = vadd.f32 %v3814, %v4060
        %v4135 = vadd.f32 %v3815, %v4062
        %v4136 = vadd.f32 %v3816, %v4064
        %v4137 = vadd.f32 %v3817, %v4066
        %v4138 = vadd.f32 %v3818, %v4068
        %v4139 = vadd.f32 %v3819, %v4070
        %v4140 = vadd.f32 %v3820, %v4072
        %v4141 = vadd.f32 %v3821, %v4074
        %v4142 = vadd.f32 %v3822, %v4076
        %v4143 = vadd.f32 %v3823, %v4078
        %v4144 = vadd.f32 %v3824, %v4080
        %v4145 = vtanh.pop %v4113
        %v4146 = vtanh.pop %v4114
        %v4147 = vtanh.pop %v4115
        %v4148 = vtanh.pop %v4116
        %v4149 = vtanh.pop %v4117
        %v4150 = vtanh.pop %v4118
        %v4151 = vtanh.pop %v4119
        %v4152 = vtanh.pop %v4120
        %v4153 = vtanh.pop %v4121
        %v4154 = vtanh.pop %v4122
        %v4155 = vtanh.pop %v4123
        %v4156 = vtanh.pop %v4124
        %v4157 = vtanh.pop %v4125
        %v4158 = vtanh.pop %v4126
        %v4159 = vtanh.pop %v4127
        %v4160 = vtanh.pop %v4128
        %v4161 = vtanh.pop %v4129
        %v4162 = vtanh.pop %v4130
        %v4163 = vtanh.pop %v4131
        %v4164 = vtanh.pop %v4132
        %v4165 = vtanh.pop %v4133
        %v4166 = vtanh.pop %v4134
        %v4167 = vtanh.pop %v4135
        %v4168 = vtanh.pop %v4136
        %v4169 = vtanh.pop %v4137
        %v4170 = vtanh.pop %v4138
        %v4171 = vtanh.pop %v4139
        %v4172 = vtanh.pop %v4140
        %v4173 = vtanh.pop %v4141
        %v4174 = vtanh.pop %v4142
        %v4175 = vtanh.pop %v4143
        %v4176 = vtanh.pop %v4144
        %4209 = vrot.lane.b32.xlu0 %v4145, 64
        %v4210 = vpop.permute.xlu0 %4209
        %4211 = vrot.lane.b32.xlu0 %v4146, 64
        %v4212 = vpop.permute.xlu0 %4211
        %4213 = vrot.lane.b32.xlu0 %v4147, 64
        %v4214 = vpop.permute.xlu0 %4213
        %4215 = vrot.lane.b32.xlu0 %v4148, 64
        %v4216 = vpop.permute.xlu0 %4215
        %4217 = vrot.lane.b32.xlu0 %v4149, 64
        %v4218 = vpop.permute.xlu0 %4217
        %4219 = vrot.lane.b32.xlu0 %v4150, 64
        %v4220 = vpop.permute.xlu0 %4219
        %4221 = vrot.lane.b32.xlu0 %v4151, 64
        %v4222 = vpop.permute.xlu0 %4221
        %4223 = vrot.lane.b32.xlu0 %v4152, 64
        %v4224 = vpop.permute.xlu0 %4223
        %4225 = vrot.lane.b32.xlu0 %v4153, 64
        %v4226 = vpop.permute.xlu0 %4225
        %4227 = vrot.lane.b32.xlu0 %v4154, 64
        %v4228 = vpop.permute.xlu0 %4227
        %4229 = vrot.lane.b32.xlu0 %v4155, 64
        %v4230 = vpop.permute.xlu0 %4229
        %4231 = vrot.lane.b32.xlu0 %v4156, 64
        %v4232 = vpop.permute.xlu0 %4231
        %4233 = vrot.lane.b32.xlu0 %v4157, 64
        %v4234 = vpop.permute.xlu0 %4233
        %4235 = vrot.lane.b32.xlu0 %v4158, 64
        %v4236 = vpop.permute.xlu0 %4235
        %4237 = vrot.lane.b32.xlu0 %v4159, 64
        %v4238 = vpop.permute.xlu0 %4237
        %4239 = vrot.lane.b32.xlu0 %v4160, 64
        %v4240 = vpop.permute.xlu0 %4239
        %4241 = vrot.lane.b32.xlu0 %v4161, 64
        %v4242 = vpop.permute.xlu0 %4241
        %4243 = vrot.lane.b32.xlu0 %v4162, 64
        %v4244 = vpop.permute.xlu0 %4243
        %4245 = vrot.lane.b32.xlu0 %v4163, 64
        %v4246 = vpop.permute.xlu0 %4245
        %4247 = vrot.lane.b32.xlu0 %v4164, 64
        %v4248 = vpop.permute.xlu0 %4247
        %4249 = vrot.lane.b32.xlu0 %v4165, 64
        %v4250 = vpop.permute.xlu0 %4249
        %4251 = vrot.lane.b32.xlu0 %v4166, 64
        %v4252 = vpop.permute.xlu0 %4251
        %4253 = vrot.lane.b32.xlu0 %v4167, 64
        %v4254 = vpop.permute.xlu0 %4253
        %4255 = vrot.lane.b32.xlu0 %v4168, 64
        %v4256 = vpop.permute.xlu0 %4255
        %4257 = vrot.lane.b32.xlu0 %v4169, 64
        %v4258 = vpop.permute.xlu0 %4257
        %4259 = vrot.lane.b32.xlu0 %v4170, 64
        %v4260 = vpop.permute.xlu0 %4259
        %4261 = vrot.lane.b32.xlu0 %v4171, 64
        %v4262 = vpop.permute.xlu0 %4261
        %4263 = vrot.lane.b32.xlu0 %v4172, 64
        %v4264 = vpop.permute.xlu0 %4263
        %4265 = vrot.lane.b32.xlu0 %v4173, 64
        %v4266 = vpop.permute.xlu0 %4265
        %4267 = vrot.lane.b32.xlu0 %v4174, 64
        %v4268 = vpop.permute.xlu0 %4267
        %4269 = vrot.lane.b32.xlu0 %v4175, 64
        %v4270 = vpop.permute.xlu0 %4269
        %4271 = vrot.lane.b32.xlu0 %v4176, 64
        %v4272 = vpop.permute.xlu0 %4271
        %v4305 = vmul.f32 %v3538, %v4210
        %v4306 = vmul.f32 %v3540, %v4212
        %v4307 = vmul.f32 %v3542, %v4214
        %v4308 = vmul.f32 %v3544, %v4216
        %v4309 = vmul.f32 %v3546, %v4218
        %v4310 = vmul.f32 %v3548, %v4220
        %v4311 = vmul.f32 %v3550, %v4222
        %v4312 = vmul.f32 %v3552, %v4224
        %v4313 = vmul.f32 %v3554, %v4226
        %v4314 = vmul.f32 %v3556, %v4228
        %v4315 = vmul.f32 %v3558, %v4230
        %v4316 = vmul.f32 %v3560, %v4232
        %v4317 = vmul.f32 %v3562, %v4234
        %v4318 = vmul.f32 %v3564, %v4236
        %v4319 = vmul.f32 %v3566, %v4238
        %v4320 = vmul.f32 %v3568, %v4240
        %v4321 = vmul.f32 %v3570, %v4242
        %v4322 = vmul.f32 %v3572, %v4244
        %v4323 = vmul.f32 %v3574, %v4246
        %v4324 = vmul.f32 %v3576, %v4248
        %v4325 = vmul.f32 %v3578, %v4250
        %v4326 = vmul.f32 %v3580, %v4252
        %v4327 = vmul.f32 %v3582, %v4254
        %v4328 = vmul.f32 %v3584, %v4256
        %v4329 = vmul.f32 %v3586, %v4258
        %v4330 = vmul.f32 %v3588, %v4260
        %v4331 = vmul.f32 %v3590, %v4262
        %v4332 = vmul.f32 %v3592, %v4264
        %v4333 = vmul.f32 %v3594, %v4266
        %v4334 = vmul.f32 %v3596, %v4268
        %v4335 = vmul.f32 %v3598, %v4270
        %v4336 = vmul.f32 %v3600, %v4272
        %4369 = vrot.lane.b32.xlu0 %v4113, 96
        %v4370 = vpop.permute.xlu0 %4369
        %4371 = vrot.lane.b32.xlu0 %v4114, 96
        %v4372 = vpop.permute.xlu0 %4371
        %4373 = vrot.lane.b32.xlu0 %v4115, 96
        %v4374 = vpop.permute.xlu0 %4373
        %4375 = vrot.lane.b32.xlu0 %v4116, 96
        %v4376 = vpop.permute.xlu0 %4375
        %4377 = vrot.lane.b32.xlu0 %v4117, 96
        %v4378 = vpop.permute.xlu0 %4377
        %4379 = vrot.lane.b32.xlu0 %v4118, 96
        %v4380 = vpop.permute.xlu0 %4379
        %4381 = vrot.lane.b32.xlu0 %v4119, 96
        %v4382 = vpop.permute.xlu0 %4381
        %4383 = vrot.lane.b32.xlu0 %v4120, 96
        %v4384 = vpop.permute.xlu0 %4383
        %4385 = vrot.lane.b32.xlu0 %v4121, 96
        %v4386 = vpop.permute.xlu0 %4385
        %4387 = vrot.lane.b32.xlu0 %v4122, 96
        %v4388 = vpop.permute.xlu0 %4387
        %4389 = vrot.lane.b32.xlu0 %v4123, 96
        %v4390 = vpop.permute.xlu0 %4389
        %4391 = vrot.lane.b32.xlu0 %v4124, 96
        %v4392 = vpop.permute.xlu0 %4391
        %4393 = vrot.lane.b32.xlu0 %v4125, 96
        %v4394 = vpop.permute.xlu0 %4393
        %4395 = vrot.lane.b32.xlu0 %v4126, 96
        %v4396 = vpop.permute.xlu0 %4395
        %4397 = vrot.lane.b32.xlu0 %v4127, 96
        %v4398 = vpop.permute.xlu0 %4397
        %4399 = vrot.lane.b32.xlu0 %v4128, 96
        %v4400 = vpop.permute.xlu0 %4399
        %4401 = vrot.lane.b32.xlu0 %v4129, 96
        %v4402 = vpop.permute.xlu0 %4401
        %4403 = vrot.lane.b32.xlu0 %v4130, 96
        %v4404 = vpop.permute.xlu0 %4403
        %4405 = vrot.lane.b32.xlu0 %v4131, 96
        %v4406 = vpop.permute.xlu0 %4405
        %4407 = vrot.lane.b32.xlu0 %v4132, 96
        %v4408 = vpop.permute.xlu0 %4407
        %4409 = vrot.lane.b32.xlu0 %v4133, 96
        %v4410 = vpop.permute.xlu0 %4409
        %4411 = vrot.lane.b32.xlu0 %v4134, 96
        %v4412 = vpop.permute.xlu0 %4411
        %4413 = vrot.lane.b32.xlu0 %v4135, 96
        %v4414 = vpop.permute.xlu0 %4413
        %4415 = vrot.lane.b32.xlu0 %v4136, 96
        %v4416 = vpop.permute.xlu0 %4415
        %4417 = vrot.lane.b32.xlu0 %v4137, 96
        %v4418 = vpop.permute.xlu0 %4417
        %4419 = vrot.lane.b32.xlu0 %v4138, 96
        %v4420 = vpop.permute.xlu0 %4419
        %4421 = vrot.lane.b32.xlu0 %v4139, 96
        %v4422 = vpop.permute.xlu0 %4421
        %4423 = vrot.lane.b32.xlu0 %v4140, 96
        %v4424 = vpop.permute.xlu0 %4423
        %4425 = vrot.lane.b32.xlu0 %v4141, 96
        %v4426 = vpop.permute.xlu0 %4425
        %4427 = vrot.lane.b32.xlu0 %v4142, 96
        %v4428 = vpop.permute.xlu0 %4427
        %4429 = vrot.lane.b32.xlu0 %v4143, 96
        %v4430 = vpop.permute.xlu0 %4429
        %4431 = vrot.lane.b32.xlu0 %v4144, 96
        %v4432 = vpop.permute.xlu0 %4431
        %4465 = vst.msk [vmem:[#allocation3] sm:$0xff] %vm847, %v4370
        %4466 = vst.msk [vmem:[#allocation3 + $0x8] sm:$0xff] %vm847, %v4372
        %4467 = vst.msk [vmem:[#allocation3 + $0x10] sm:$0xff] %vm847, %v4374
        %4468 = vst.msk [vmem:[#allocation3 + $0x18] sm:$0xff] %vm847, %v4376
        %4469 = vst.msk [vmem:[#allocation3 + $0x20] sm:$0xff] %vm847, %v4378
        %4470 = vst.msk [vmem:[#allocation3 + $0x28] sm:$0xff] %vm847, %v4380
        %4471 = vst.msk [vmem:[#allocation3 + $0x30] sm:$0xff] %vm847, %v4382
        %4472 = vst.msk [vmem:[#allocation3 + $0x38] sm:$0xff] %vm847, %v4384
        %4473 = vst.msk [vmem:[#allocation3 + $0x40] sm:$0xff] %vm847, %v4386
        %4474 = vst.msk [vmem:[#allocation3 + $0x48] sm:$0xff] %vm847, %v4388
        %4475 = vst.msk [vmem:[#allocation3 + $0x50] sm:$0xff] %vm847, %v4390
        %4476 = vst.msk [vmem:[#allocation3 + $0x58] sm:$0xff] %vm847, %v4392
        %4477 = vst.msk [vmem:[#allocation3 + $0x60] sm:$0xff] %vm847, %v4394
        %4478 = vst.msk [vmem:[#allocation3 + $0x68] sm:$0xff] %vm847, %v4396
        %4479 = vst.msk [vmem:[#allocation3 + $0x70] sm:$0xff] %vm847, %v4398
        %4480 = vst.msk [vmem:[#allocation3 + $0x78] sm:$0xff] %vm847, %v4400
        %4481 = vst.msk [vmem:[#allocation3 + $0x80] sm:$0xff] %vm847, %v4402
        %4482 = vst.msk [vmem:[#allocation3 + $0x88] sm:$0xff] %vm847, %v4404
        %4483 = vst.msk [vmem:[#allocation3 + $0x90] sm:$0xff] %vm847, %v4406
        %4484 = vst.msk [vmem:[#allocation3 + $0x98] sm:$0xff] %vm847, %v4408
        %4485 = vst.msk [vmem:[#allocation3 + $0xa0] sm:$0xff] %vm847, %v4410
        %4486 = vst.msk [vmem:[#allocation3 + $0xa8] sm:$0xff] %vm847, %v4412
        %4487 = vst.msk [vmem:[#allocation3 + $0xb0] sm:$0xff] %vm847, %v4414
        %4488 = vst.msk [vmem:[#allocation3 + $0xb8] sm:$0xff] %vm847, %v4416
        %4489 = vst.msk [vmem:[#allocation3 + $0xc0] sm:$0xff] %vm847, %v4418
        %4490 = vst.msk [vmem:[#allocation3 + $0xc8] sm:$0xff] %vm847, %v4420
        %4491 = vst.msk [vmem:[#allocation3 + $0xd0] sm:$0xff] %vm847, %v4422
        %4492 = vst.msk [vmem:[#allocation3 + $0xd8] sm:$0xff] %vm847, %v4424
        %4493 = vst.msk [vmem:[#allocation3 + $0xe0] sm:$0xff] %vm847, %v4426
        %4494 = vst.msk [vmem:[#allocation3 + $0xe8] sm:$0xff] %vm847, %v4428
        %4495 = vst.msk [vmem:[#allocation3 + $0xf0] sm:$0xff] %vm847, %v4430
        %4496 = vst.msk [vmem:[#allocation3 + $0xf8] sm:$0xff] %vm847, %v4432
        %4529 = vrot.lane.b32.xlu0 %v4305, 32
        %v4530 = vpop.permute.xlu0 %4529
        %4531 = vrot.lane.b32.xlu0 %v4306, 32
        %v4532 = vpop.permute.xlu0 %4531
        %4533 = vrot.lane.b32.xlu0 %v4307, 32
        %v4534 = vpop.permute.xlu0 %4533
        %4535 = vrot.lane.b32.xlu0 %v4308, 32
        %v4536 = vpop.permute.xlu0 %4535
        %4537 = vrot.lane.b32.xlu0 %v4309, 32
        %v4538 = vpop.permute.xlu0 %4537
        %4539 = vrot.lane.b32.xlu0 %v4310, 32
        %v4540 = vpop.permute.xlu0 %4539
        %4541 = vrot.lane.b32.xlu0 %v4311, 32
        %v4542 = vpop.permute.xlu0 %4541
        %4543 = vrot.lane.b32.xlu0 %v4312, 32
        %v4544 = vpop.permute.xlu0 %4543
        %4545 = vrot.lane.b32.xlu0 %v4313, 32
        %v4546 = vpop.permute.xlu0 %4545
        %4547 = vrot.lane.b32.xlu0 %v4314, 32
        %v4548 = vpop.permute.xlu0 %4547
        %4549 = vrot.lane.b32.xlu0 %v4315, 32
        %v4550 = vpop.permute.xlu0 %4549
        %4551 = vrot.lane.b32.xlu0 %v4316, 32
        %v4552 = vpop.permute.xlu0 %4551
        %4553 = vrot.lane.b32.xlu0 %v4317, 32
        %v4554 = vpop.permute.xlu0 %4553
        %4555 = vrot.lane.b32.xlu0 %v4318, 32
        %v4556 = vpop.permute.xlu0 %4555
        %4557 = vrot.lane.b32.xlu0 %v4319, 32
        %v4558 = vpop.permute.xlu0 %4557
        %4559 = vrot.lane.b32.xlu0 %v4320, 32
        %v4560 = vpop.permute.xlu0 %4559
        %4561 = vrot.lane.b32.xlu0 %v4321, 32
        %v4562 = vpop.permute.xlu0 %4561
        %4563 = vrot.lane.b32.xlu0 %v4322, 32
        %v4564 = vpop.permute.xlu0 %4563
        %4565 = vrot.lane.b32.xlu0 %v4323, 32
        %v4566 = vpop.permute.xlu0 %4565
        %4567 = vrot.lane.b32.xlu0 %v4324, 32
        %v4568 = vpop.permute.xlu0 %4567
        %4569 = vrot.lane.b32.xlu0 %v4325, 32
        %v4570 = vpop.permute.xlu0 %4569
        %4571 = vrot.lane.b32.xlu0 %v4326, 32
        %v4572 = vpop.permute.xlu0 %4571
        %4573 = vrot.lane.b32.xlu0 %v4327, 32
        %v4574 = vpop.permute.xlu0 %4573
        %4575 = vrot.lane.b32.xlu0 %v4328, 32
        %v4576 = vpop.permute.xlu0 %4575
        %4577 = vrot.lane.b32.xlu0 %v4329, 32
        %v4578 = vpop.permute.xlu0 %4577
        %4579 = vrot.lane.b32.xlu0 %v4330, 32
        %v4580 = vpop.permute.xlu0 %4579
        %4581 = vrot.lane.b32.xlu0 %v4331, 32
        %v4582 = vpop.permute.xlu0 %4581
        %4583 = vrot.lane.b32.xlu0 %v4332, 32
        %v4584 = vpop.permute.xlu0 %4583
        %4585 = vrot.lane.b32.xlu0 %v4333, 32
        %v4586 = vpop.permute.xlu0 %4585
        %4587 = vrot.lane.b32.xlu0 %v4334, 32
        %v4588 = vpop.permute.xlu0 %4587
        %4589 = vrot.lane.b32.xlu0 %v4335, 32
        %v4590 = vpop.permute.xlu0 %4589
        %4591 = vrot.lane.b32.xlu0 %v4336, 32
        %v4592 = vpop.permute.xlu0 %4591
        %4625 = vst.msk [vmem:[#allocation2] sm:$0xff] %vm847, %v4530
        %4626 = vst.msk [vmem:[#allocation2 + $0x8] sm:$0xff] %vm847, %v4532
        %4627 = vst.msk [vmem:[#allocation2 + $0x10] sm:$0xff] %vm847, %v4534
        %4628 = vst.msk [vmem:[#allocation2 + $0x18] sm:$0xff] %vm847, %v4536
        %4629 = vst.msk [vmem:[#allocation2 + $0x20] sm:$0xff] %vm847, %v4538
        %4630 = vst.msk [vmem:[#allocation2 + $0x28] sm:$0xff] %vm847, %v4540
        %4631 = vst.msk [vmem:[#allocation2 + $0x30] sm:$0xff] %vm847, %v4542
        %4632 = vst.msk [vmem:[#allocation2 + $0x38] sm:$0xff] %vm847, %v4544
        %4633 = vst.msk [vmem:[#allocation2 + $0x40] sm:$0xff] %vm847, %v4546
        %4634 = vst.msk [vmem:[#allocation2 + $0x48] sm:$0xff] %vm847, %v4548
        %4635 = vst.msk [vmem:[#allocation2 + $0x50] sm:$0xff] %vm847, %v4550
        %4636 = vst.msk [vmem:[#allocation2 + $0x58] sm:$0xff] %vm847, %v4552
        %4637 = vst.msk [vmem:[#allocation2 + $0x60] sm:$0xff] %vm847, %v4554
        %4638 = vst.msk [vmem:[#allocation2 + $0x68] sm:$0xff] %vm847, %v4556
        %4639 = vst.msk [vmem:[#allocation2 + $0x70] sm:$0xff] %vm847, %v4558
        %4640 = vst.msk [vmem:[#allocation2 + $0x78] sm:$0xff] %vm847, %v4560
        %4641 = vst.msk [vmem:[#allocation2 + $0x80] sm:$0xff] %vm847, %v4562
        %4642 = vst.msk [vmem:[#allocation2 + $0x88] sm:$0xff] %vm847, %v4564
        %4643 = vst.msk [vmem:[#allocation2 + $0x90] sm:$0xff] %vm847, %v4566
        %4644 = vst.msk [vmem:[#allocation2 + $0x98] sm:$0xff] %vm847, %v4568
        %4645 = vst.msk [vmem:[#allocation2 + $0xa0] sm:$0xff] %vm847, %v4570
        %4646 = vst.msk [vmem:[#allocation2 + $0xa8] sm:$0xff] %vm847, %v4572
        %4647 = vst.msk [vmem:[#allocation2 + $0xb0] sm:$0xff] %vm847, %v4574
        %4648 = vst.msk [vmem:[#allocation2 + $0xb8] sm:$0xff] %vm847, %v4576
        %4649 = vst.msk [vmem:[#allocation2 + $0xc0] sm:$0xff] %vm847, %v4578
        %4650 = vst.msk [vmem:[#allocation2 + $0xc8] sm:$0xff] %vm847, %v4580
        %4651 = vst.msk [vmem:[#allocation2 + $0xd0] sm:$0xff] %vm847, %v4582
        %4652 = vst.msk [vmem:[#allocation2 + $0xd8] sm:$0xff] %vm847, %v4584
        %4653 = vst.msk [vmem:[#allocation2 + $0xe0] sm:$0xff] %vm847, %v4586
        %4654 = vst.msk [vmem:[#allocation2 + $0xe8] sm:$0xff] %vm847, %v4588
        %4655 = vst.msk [vmem:[#allocation2 + $0xf0] sm:$0xff] %vm847, %v4590
        %4656 = vst.msk [vmem:[#allocation2 + $0xf8] sm:$0xff] %vm847, %v4592
        %v4657 = vld [vmem:[#allocation11] sm:$0xff]
        %v4658 = vld [vmem:[#allocation11 + $0x8] sm:$0xff]
        %v4659 = vld [vmem:[#allocation11 + $0x10] sm:$0xff]
        %v4660 = vld [vmem:[#allocation11 + $0x18] sm:$0xff]
        %v4662 = vsel %vm847, %v4657, 0
        %v4665 = vsel %vm847, %v4658, 0
        %v4668 = vsel %vm847, %v4659, 0
        %v4671 = vsel %vm847, %v4660, 0
        %v4673 = vsel %vm847, %v4530, 0
        %v4675 = vsel %vm847, %v4532, 0
        %v4677 = vsel %vm847, %v4534, 0
        %v4679 = vsel %vm847, %v4536, 0
        %v4681 = vsel %vm847, %v4538, 0
        %v4683 = vsel %vm847, %v4540, 0
        %v4685 = vsel %vm847, %v4542, 0
        %v4687 = vsel %vm847, %v4544, 0
        %v4689 = vsel %vm847, %v4546, 0
        %v4691 = vsel %vm847, %v4548, 0
        %v4693 = vsel %vm847, %v4550, 0
        %v4695 = vsel %vm847, %v4552, 0
        %v4697 = vsel %vm847, %v4554, 0
        %v4699 = vsel %vm847, %v4556, 0
        %v4701 = vsel %vm847, %v4558, 0
        %v4703 = vsel %vm847, %v4560, 0
        %v4705 = vsel %vm847, %v4562, 0
        %v4707 = vsel %vm847, %v4564, 0
        %v4709 = vsel %vm847, %v4566, 0
        %v4711 = vsel %vm847, %v4568, 0
        %v4713 = vsel %vm847, %v4570, 0
        %v4715 = vsel %vm847, %v4572, 0
        %v4717 = vsel %vm847, %v4574, 0
        %v4719 = vsel %vm847, %v4576, 0
        %v4721 = vsel %vm847, %v4578, 0
        %v4723 = vsel %vm847, %v4580, 0
        %v4725 = vsel %vm847, %v4582, 0
        %v4727 = vsel %vm847, %v4584, 0
        %v4729 = vsel %vm847, %v4586, 0
        %v4731 = vsel %vm847, %v4588, 0
        %v4733 = vsel %vm847, %v4590, 0
        %v4735 = vsel %vm847, %v4592, 0
        %4737 = vmatprep.subr.mxu0 0.0
        %4738 = vmatpush1.xpose.msra.mxu0 %v4673
        %4739 = vmatprep.subr.mxu0 0.0
        %4740 = vmatpush1.xpose.msra.mxu0 %v4675
        %4741 = vmatprep.subr.mxu0 0.0
        %4742 = vmatpush1.xpose.msra.mxu0 %v4677
        %4743 = vmatprep.subr.mxu0 0.0
        %4744 = vmatpush1.xpose.msra.mxu0 %v4679
        %4745 = vmatprep.subr.mxu0 0.0
        %4746 = vmatpush1.xpose.msra.mxu0 %v4681
        %4747 = vmatprep.subr.mxu0 0.0
        %4748 = vmatpush1.xpose.msra.mxu0 %v4683
        %4749 = vmatprep.subr.mxu0 0.0
        %4750 = vmatpush1.xpose.msra.mxu0 %v4685
        %4751 = vmatprep.subr.mxu0 0.0
        %4752 = vmatpush1.xpose.msra.mxu0 %v4687
        %4753 = vmatprep.subr.mxu0 0.0
        %4754 = vmatpush1.xpose.msra.mxu0 %v4689
        %4755 = vmatprep.subr.mxu0 0.0
        %4756 = vmatpush1.xpose.msra.mxu0 %v4691
        %4757 = vmatprep.subr.mxu0 0.0
        %4758 = vmatpush1.xpose.msra.mxu0 %v4693
        %4759 = vmatprep.subr.mxu0 0.0
        %4760 = vmatpush1.xpose.msra.mxu0 %v4695
        %4761 = vmatprep.subr.mxu0 0.0
        %4762 = vmatpush1.xpose.msra.mxu0 %v4697
        %4763 = vmatprep.subr.mxu0 0.0
        %4764 = vmatpush1.xpose.msra.mxu0 %v4699
        %4765 = vmatprep.subr.mxu0 0.0
        %4766 = vmatpush1.xpose.msra.mxu0 %v4701
        %4767 = vmatprep.subr.mxu0 0.0
        %4768 = vmatpush1.xpose.msra.mxu0 %v4703
        %4769 = vmatprep.subr.mxu0 0.0
        %4770 = vmatpush1.xpose.msra.mxu0 %v4705
        %4771 = vmatprep.subr.mxu0 0.0
        %4772 = vmatpush1.xpose.msra.mxu0 %v4707
        %4773 = vmatprep.subr.mxu0 0.0
        %4774 = vmatpush1.xpose.msra.mxu0 %v4709
        %4775 = vmatprep.subr.mxu0 0.0
        %4776 = vmatpush1.xpose.msra.mxu0 %v4711
        %4777 = vmatprep.subr.mxu0 0.0
        %4778 = vmatpush1.xpose.msra.mxu0 %v4713
        %4779 = vmatprep.subr.mxu0 0.0
        %4780 = vmatpush1.xpose.msra.mxu0 %v4715
        %4781 = vmatprep.subr.mxu0 0.0
        %4782 = vmatpush1.xpose.msra.mxu0 %v4717
        %4783 = vmatprep.subr.mxu0 0.0
        %4784 = vmatpush1.xpose.msra.mxu0 %v4719
        %4785 = vmatprep.subr.mxu0 0.0
        %4786 = vmatpush1.xpose.msra.mxu0 %v4721
        %4787 = vmatprep.subr.mxu0 0.0
        %4788 = vmatpush1.xpose.msra.mxu0 %v4723
        %4789 = vmatprep.subr.mxu0 0.0
        %4790 = vmatpush1.xpose.msra.mxu0 %v4725
        %4791 = vmatprep.subr.mxu0 0.0
        %4792 = vmatpush1.xpose.msra.mxu0 %v4727
        %4793 = vmatprep.subr.mxu0 0.0
        %4794 = vmatpush1.xpose.msra.mxu0 %v4729
        %4795 = vmatprep.subr.mxu0 0.0
        %4796 = vmatpush1.xpose.msra.mxu0 %v4731
        %4797 = vmatprep.subr.mxu0 0.0
        %4798 = vmatpush1.xpose.msra.mxu0 %v4733
        %4799 = vmatprep.subr.mxu0 0.0
        %4800 = vmatpush1.xpose.msra.mxu0 %v4735
        %4801 = vmatprep.mubr.f32.mxu0 0.0
        %4802 = vmatmul.mubr.f32.gmra.mrb[0].mxu0 %v4662
        %v4803 = vpop.f32.mrb[0].mxu0
        %v4804 = vadd.f32 0.0, %v4803
        %v4805 = vpop.f32.mrb[0].mxu0
        %v4806 = vadd.f32 0.0, %v4805
        %4807 = vmatprep.mubr.f32.mxu0 0.0
        %4808 = vmatmul.mubr.f32.gmra.mrb[0].mxu0 %v4665
        %v4809 = vpop.f32.mrb[0].mxu0
        %v4810 = vadd.f32 0.0, %v4809
        %v4811 = vpop.f32.mrb[0].mxu0
        %v4812 = vadd.f32 0.0, %v4811
        %4813 = vmatprep.mubr.f32.mxu0 0.0
        %4814 = vmatmul.mubr.f32.gmra.mrb[0].mxu0 %v4668
        %v4815 = vpop.f32.mrb[0].mxu0
        %v4816 = vadd.f32 0.0, %v4815
        %v4817 = vpop.f32.mrb[0].mxu0
        %v4818 = vadd.f32 0.0, %v4817
        %4819 = vmatprep.mubr.f32.mxu0 0.0
        %4820 = vmatmul.mubr.f32.gmra.mrb[0].mxu0 %v4671
        %v4821 = vpop.f32.mrb[0].mxu0
        %v4822 = vadd.f32 0.0, %v4821
        %v4823 = vpop.f32.mrb[0].mxu0
        %v4824 = vadd.f32 0.0, %v4823
        %4825 = vdwg.mxu0
        %4826 = vst [vmem:[%s471] sm:$0xff] %v4804
        %4827 = vst [vmem:[%s471 + $0x8] sm:$0xff] %v4806
        %4828 = vst [vmem:[%s471 + $0x10] sm:$0xff] %v4810
        %4829 = vst [vmem:[%s471 + $0x18] sm:$0xff] %v4812
        %4830 = vst [vmem:[%s471 + $0x20] sm:$0xff] %v4816
        %4831 = vst [vmem:[%s471 + $0x28] sm:$0xff] %v4818
        %4832 = vst [vmem:[%s471 + $0x30] sm:$0xff] %v4822
        %4833 = vst [vmem:[%s471 + $0x38] sm:$0xff] %v4824
        %p4834 = scmp.eq.s32.totalorder %s38, 7
        // Predicated region
        $region81: #{tpu_custom_call.1} parent=51 // pred_check
          %p4835 = pneg %p4834
        $region82: #{tpu_custom_call.1} parent=51 // pred_check_branch
          %4837 = sbr.rel (%p4835) target = $region84
        $region83: #{tpu_custom_call.1} parent=51 // pred_region
          %v4838 = vld [vmem:[#allocation11] sm:$0xff]
          %v4839 = vld [vmem:[#allocation11 + $0x8] sm:$0xff]
          %v4840 = vld [vmem:[#allocation11 + $0x10] sm:$0xff]
          %v4841 = vld [vmem:[#allocation11 + $0x18] sm:$0xff]
          %v4843 = vsel %vm847, %v4838, 0
          %v4846 = vsel %vm847, %v4839, 0
          %v4849 = vsel %vm847, %v4840, 0
          %v4852 = vsel %vm847, %v4841, 0
          %v4854 = vsel %vm847, %v4370, 0
          %v4856 = vsel %vm847, %v4372, 0
          %v4858 = vsel %vm847, %v4374, 0
          %v4860 = vsel %vm847, %v4376, 0
          %v4862 = vsel %vm847, %v4378, 0
          %v4864 = vsel %vm847, %v4380, 0
          %v4866 = vsel %vm847, %v4382, 0
          %v4868 = vsel %vm847, %v4384, 0
          %v4870 = vsel %vm847, %v4386, 0
          %v4872 = vsel %vm847, %v4388, 0
          %v4874 = vsel %vm847, %v4390, 0
          %v4876 = vsel %vm847, %v4392, 0
          %v4878 = vsel %vm847, %v4394, 0
          %v4880 = vsel %vm847, %v4396, 0
          %v4882 = vsel %vm847, %v4398, 0
          %v4884 = vsel %vm847, %v4400, 0
          %v4886 = vsel %vm847, %v4402, 0
          %v4888 = vsel %vm847, %v4404, 0
          %v4890 = vsel %vm847, %v4406, 0
          %v4892 = vsel %vm847, %v4408, 0
          %v4894 = vsel %vm847, %v4410, 0
          %v4896 = vsel %vm847, %v4412, 0
          %v4898 = vsel %vm847, %v4414, 0
          %v4900 = vsel %vm847, %v4416, 0
          %v4902 = vsel %vm847, %v4418, 0
          %v4904 = vsel %vm847, %v4420, 0
          %v4906 = vsel %vm847, %v4422, 0
          %v4908 = vsel %vm847, %v4424, 0
          %v4910 = vsel %vm847, %v4426, 0
          %v4912 = vsel %vm847, %v4428, 0
          %v4914 = vsel %vm847, %v4430, 0
          %v4916 = vsel %vm847, %v4432, 0
          %4918 = vmatprep.subr.mxu0 0.0
          %4919 = vmatpush1.xpose.msra.mxu0 %v4854
          %4920 = vmatprep.subr.mxu0 0.0
          %4921 = vmatpush1.xpose.msra.mxu0 %v4856
          %4922 = vmatprep.subr.mxu0 0.0
          %4923 = vmatpush1.xpose.msra.mxu0 %v4858
          %4924 = vmatprep.subr.mxu0 0.0
          %4925 = vmatpush1.xpose.msra.mxu0 %v4860
          %4926 = vmatprep.subr.mxu0 0.0
          %4927 = vmatpush1.xpose.msra.mxu0 %v4862
          %4928 = vmatprep.subr.mxu0 0.0
          %4929 = vmatpush1.xpose.msra.mxu0 %v4864
          %4930 = vmatprep.subr.mxu0 0.0
          %4931 = vmatpush1.xpose.msra.mxu0 %v4866
          %4932 = vmatprep.subr.mxu0 0.0
          %4933 = vmatpush1.xpose.msra.mxu0 %v4868
          %4934 = vmatprep.subr.mxu0 0.0
          %4935 = vmatpush1.xpose.msra.mxu0 %v4870
          %4936 = vmatprep.subr.mxu0 0.0
          %4937 = vmatpush1.xpose.msra.mxu0 %v4872
          %4938 = vmatprep.subr.mxu0 0.0
          %4939 = vmatpush1.xpose.msra.mxu0 %v4874
          %4940 = vmatprep.subr.mxu0 0.0
          %4941 = vmatpush1.xpose.msra.mxu0 %v4876
          %4942 = vmatprep.subr.mxu0 0.0
          %4943 = vmatpush1.xpose.msra.mxu0 %v4878
          %4944 = vmatprep.subr.mxu0 0.0
          %4945 = vmatpush1.xpose.msra.mxu0 %v4880
          %4946 = vmatprep.subr.mxu0 0.0
          %4947 = vmatpush1.xpose.msra.mxu0 %v4882
          %4948 = vmatprep.subr.mxu0 0.0
          %4949 = vmatpush1.xpose.msra.mxu0 %v4884
          %4950 = vmatprep.subr.mxu0 0.0
          %4951 = vmatpush1.xpose.msra.mxu0 %v4886
          %4952 = vmatprep.subr.mxu0 0.0
          %4953 = vmatpush1.xpose.msra.mxu0 %v4888
          %4954 = vmatprep.subr.mxu0 0.0
          %4955 = vmatpush1.xpose.msra.mxu0 %v4890
          %4956 = vmatprep.subr.mxu0 0.0
          %4957 = vmatpush1.xpose.msra.mxu0 %v4892
          %4958 = vmatprep.subr.mxu0 0.0
          %4959 = vmatpush1.xpose.msra.mxu0 %v4894
          %4960 = vmatprep.subr.mxu0 0.0
          %4961 = vmatpush1.xpose.msra.mxu0 %v4896
          %4962 = vmatprep.subr.mxu0 0.0
          %4963 = vmatpush1.xpose.msra.mxu0 %v4898
          %4964 = vmatprep.subr.mxu0 0.0
          %4965 = vmatpush1.xpose.msra.mxu0 %v4900
          %4966 = vmatprep.subr.mxu0 0.0
          %4967 = vmatpush1.xpose.msra.mxu0 %v4902
          %4968 = vmatprep.subr.mxu0 0.0
          %4969 = vmatpush1.xpose.msra.mxu0 %v4904
          %4970 = vmatprep.subr.mxu0 0.0
          %4971 = vmatpush1.xpose.msra.mxu0 %v4906
          %4972 = vmatprep.subr.mxu0 0.0
          %4973 = vmatpush1.xpose.msra.mxu0 %v4908
          %4974 = vmatprep.subr.mxu0 0.0
          %4975 = vmatpush1.xpose.msra.mxu0 %v4910
          %4976 = vmatprep.subr.mxu0 0.0
          %4977 = vmatpush1.xpose.msra.mxu0 %v4912
          %4978 = vmatprep.subr.mxu0 0.0
          %4979 = vmatpush1.xpose.msra.mxu0 %v4914
          %4980 = vmatprep.subr.mxu0 0.0
          %4981 = vmatpush1.xpose.msra.mxu0 %v4916
          %4982 = vmatprep.mubr.f32.mxu0 0.0
          %4983 = vmatmul.mubr.f32.gmra.mrb[0].mxu0 %v4843
          %v4984 = vpop.f32.mrb[0].mxu0
          %v4985 = vadd.f32 0.0, %v4984
          %v4986 = vpop.f32.mrb[0].mxu0
          %v4987 = vadd.f32 0.0, %v4986
          %4988 = vmatprep.mubr.f32.mxu0 0.0
          %4989 = vmatmul.mubr.f32.gmra.mrb[0].mxu0 %v4846
          %v4990 = vpop.f32.mrb[0].mxu0
          %v4991 = vadd.f32 0.0, %v4990
          %v4992 = vpop.f32.mrb[0].mxu0
          %v4993 = vadd.f32 0.0, %v4992
          %4994 = vmatprep.mubr.f32.mxu0 0.0
          %4995 = vmatmul.mubr.f32.gmra.mrb[0].mxu0 %v4849
          %v4996 = vpop.f32.mrb[0].mxu0
          %v4997 = vadd.f32 0.0, %v4996
          %v4998 = vpop.f32.mrb[0].mxu0
          %v4999 = vadd.f32 0.0, %v4998
          %5000 = vmatprep.mubr.f32.mxu0 0.0
          %5001 = vmatmul.mubr.f32.gmra.mrb[0].mxu0 %v4852
          %v5002 = vpop.f32.mrb[0].mxu0
          %v5003 = vadd.f32 0.0, %v5002
          %v5004 = vpop.f32.mrb[0].mxu0
          %v5005 = vadd.f32 0.0, %v5004
          %5006 = vdwg.mxu0
          %5007 = vst [vmem:[%s478] sm:$0xff] %v4985
          %5008 = vst [vmem:[%s478 + $0x8] sm:$0xff] %v4987
          %5009 = vst [vmem:[%s478 + $0x10] sm:$0xff] %v4991
          %5010 = vst [vmem:[%s478 + $0x18] sm:$0xff] %v4993
          %5011 = vst [vmem:[%s478 + $0x20] sm:$0xff] %v4997
          %5012 = vst [vmem:[%s478 + $0x28] sm:$0xff] %v4999
          %5013 = vst [vmem:[%s478 + $0x30] sm:$0xff] %v5003
          %5014 = vst [vmem:[%s478 + $0x38] sm:$0xff] %v5005
        $region84: #{tpu_custom_call.1} parent=51 // pred_fallthru
          _
        %s5015 = sand.u32 %s240, 1
        %s5016 = scalar_lea.sflag [#allocation7], %s5015
        %s5017 = sand.u32 %s240, 1
        %s5018 = smul.addr %s5017, 64
        %s5019 = scalar_lea.vmem [#allocation16], %s5018
        %s5020 = sand.u32 %s266, 1
        %s5021 = scalar_lea.sflag [#allocation18], %s5020
        %s5022 = sand.u32 %s266, 1
        %s5023 = smul.addr %s5022, 64
        %s5024 = scalar_lea.vmem [#allocation17], %s5023
        // Predicated region
        $region85: #{tpu_custom_call.1} parent=51 // pred_check
          %p5025 = pneg %p250
        $region86: #{tpu_custom_call.1} parent=51 // pred_check_branch
          %5027 = sbr.rel (%p5025) target = $region88
        $region87: #{tpu_custom_call.1} parent=51 // pred_region
          %s5029 = ssub.s32 1024, 1024
          %5030 = vsyncadd %s5016, %s5029
          %s5031 = smul.addr %s37, 8
          %s5032 = smul.addr %s38, 16
          %s5033 = sadd.s32 %s5031, %s5032
          %s5034 = smul.addr %s5033, 128
          %s5035 = scalar_lea.hbm %s8, %s5034
          %s5036 = sshll.u32 %s5019, 4
          %s5037 = int_to_ptr.vmem [resolvable:$true] %s5036
          %5042 = dma.vmem_to_hbm [thread:$0]  %s5037, 1024, %s5035, %s5016, 256, 256, 16
        $region88: #{tpu_custom_call.1} parent=51 // pred_fallthru
          _
        // Predicated region
        $region89: #{tpu_custom_call.1} parent=51 // pred_check
          %p5043 = pneg %p276
        $region90: #{tpu_custom_call.1} parent=51 // pred_check_branch
          %5045 = sbr.rel (%p5043) target = $region92
        $region91: #{tpu_custom_call.1} parent=51 // pred_region
          %s5047 = ssub.s32 1024, 1024
          %5048 = vsyncadd %s5021, %s5047
          %s5049 = smul.addr %s37, 8
          %s5050 = smul.addr %s5049, 128
          %s5051 = scalar_lea.hbm %s9, %s5050
          %s5052 = sshll.u32 %s5024, 4
          %s5053 = int_to_ptr.vmem [resolvable:$true] %s5052
          %5058 = dma.vmem_to_hbm [thread:$0]  %s5053, 1024, %s5051, %s5021, 256, 256, 16
        $region92: #{tpu_custom_call.1} parent=51 // pred_fallthru
          _
      $region52: #{tpu_custom_call.1} parent=5 // pred_fallthru
        _
      %p5059 = scmp.le.s32.totalorder 2, %s28
      // Predicated region
      $region93: #{tpu_custom_call.1} parent=5 // pred_check
        %p5060 = pneg %p5059
      $region94: #{tpu_custom_call.1} parent=5 // pred_check_branch
        %5062 = sbr.rel (%p5060) target = $region96
      $region95: #{tpu_custom_call.1} parent=5 // pred_region
        %s5063 = ssub.s32 %s28, 2
        // Predicated region
        $region97: #{tpu_custom_call.1} parent=95 // pred_check
          %p5064 = pneg %p256
        $region98: #{tpu_custom_call.1} parent=95 // pred_check_branch
          %5066 = sbr.rel (%p5064) target = $region100
        $region99: #{tpu_custom_call.1} parent=95 // pred_region
          %s5067 = sand.u32 %s241, 1
          %s5068 = scalar_lea.sflag [#allocation7], %s5067
          %s5069 = sand.u32 %s241, 1
          %s5070 = smul.addr %s5069, 64
          %s5071 = scalar_lea.vmem [#allocation16], %s5070
          %5072 = dma.done %s5068, 1024
        $region100: #{tpu_custom_call.1} parent=95 // pred_fallthru
          _
        // Predicated region
        $region101: #{tpu_custom_call.1} parent=95 // pred_check
          %p5073 = pneg %p282
        $region102: #{tpu_custom_call.1} parent=95 // pred_check_branch
          %5075 = sbr.rel (%p5073) target = $region104
        $region103: #{tpu_custom_call.1} parent=95 // pred_region
          %s5076 = sand.u32 %s267, 1
          %s5077 = scalar_lea.sflag [#allocation18], %s5076
          %s5078 = sand.u32 %s267, 1
          %s5079 = smul.addr %s5078, 64
          %s5080 = scalar_lea.vmem [#allocation17], %s5079
          %5081 = dma.done %s5077, 1024
        $region104: #{tpu_custom_call.1} parent=95 // pred_fallthru
          _
      $region96: #{tpu_custom_call.1} parent=5 // pred_fallthru
        _
    $region6: #{tpu_custom_call.1} parent=1 // loop_footer
      %s32 = sadd.s32 1, %s28
    $region7: #{tpu_custom_call.1} parent=1 // loop_footer_branch
      %27 = sbr.rel target = $region3
    $region8: #{tpu_custom_call.1} parent=1 // loop_exit
      _
    %5082 = vsyncpa [#allocation6], 1
    %s5083 = scalar_lea.sflag [#allocation6], 1
    %5084 = vsyncpa %s5083, 1
    %5085 = vsyncpa [#allocation9], 1
    %5086 = vsyncpa [#allocation12], 1
    %5087 = vsyncpa [#allocation15], 1
    %5088 = vsyncpa [#allocation7], 1
    %s5089 = scalar_lea.sflag [#allocation7], 1
    %5090 = vsyncpa %s5089, 1
    %5091 = vsyncpa [#allocation18], 1
    %s5092 = scalar_lea.sflag [#allocation18], 1
    %5093 = vsyncpa %s5092, 1

</llo_original>
